<compile_context>
chip_gen: v7x
topology: tpu7x:2x2x1
jax: 0.10.0
libtpu: 0.0.40
codegen_flags: <defaults>
</compile_context>

<pallas_src>
import functools

import jax
import jax.numpy as jnp
import numpy as np
from jax.experimental import pallas as pl
from jax.experimental.pallas import tpu as pltpu

SUBLANES = 8
LANES = 128
REG_SEQ_BYTES = 64 * 1024   # keep inter-layer hidden sequence as values below this size


def _round_up(x, m):
    return ((x + m - 1) // m) * m


# -----------------------------------------------------------------------------
# Pallas kernel
# -----------------------------------------------------------------------------
def make_lstm_mlp_kernel(num_layers, use_reg_seq):
    """Kernel ref ordering (inputs, outputs, scratch):
      x_ref (T, SB, I) f32,
      per layer l: w_ih_l (Din, 4Hp) bf16, w_hh_l (Hp, 4Hp) bf16, b_l (1, 4Hp) f32,
      fc1_w (Hp, FC1P) bf16, fc1_b (1, FC1P) f32, fc2_w (FC1P, OUTP) bf16,
      fc2_b (1, OUTP) f32,
      out_ref (SB, OUTP) f32,
      [seq_ref (T, SB, Hp) f32 scratch -- only when use_reg_seq is False].
    """
    L = num_layers

    def kernel(x_ref, *rest):
        layer_refs = rest[: 3 * L]
        tail = rest[3 * L:]
        if use_reg_seq:
            fc1_w_ref, fc1_b_ref, fc2_w_ref, fc2_b_ref, out_ref = tail
            seq_ref = None
        else:
            (fc1_w_ref, fc1_b_ref, fc2_w_ref, fc2_b_ref,
             out_ref, seq_ref) = tail

        T, SB, I = x_ref.shape
        Hp = layer_refs[1].shape[0]          # padded (lane-aligned) hidden size

        h = None
        prev_seq = None                      # previous layer's per-step h (value path)
        for layer in range(L):               # static unroll over layers
            w_ih = layer_refs[3 * layer + 0][...]      # (Din, 4Hp) bf16
            w_hh = layer_refs[3 * layer + 1][...]      # (Hp,  4Hp) bf16
            bias = layer_refs[3 * layer + 2][...]      # (1,   4Hp) f32 (b_ih+b_hh)

            # ---- hoisted full-sequence input projection: one big MXU matmul ----
            if layer == 0:
                inp2d = x_ref[...].reshape(T * SB, I)              # (T*SB, I)
            elif use_reg_seq:
                inp2d = jnp.concatenate(prev_seq, axis=0)          # (T*SB, Hp)
            else:
                inp2d = seq_ref[...].reshape(T * SB, Hp)           # (T*SB, Hp)
            proj = jnp.dot(inp2d.astype(w_ih.dtype), w_ih,
                           preferred_element_type=jnp.float32) + bias
            xg = proj.reshape(T, SB, 4 * Hp)                       # (T, SB, 4Hp)

            # ---- recurrence: fully unrolled, only h @ W_hh left per step ----
            h = jnp.zeros((SB, Hp), jnp.float32)                   # h0 = 0
            c = jnp.zeros((SB, Hp), jnp.float32)                   # c0 = 0
            next_seq = []
            for t in range(T):                                      # static unroll
                g_pre = xg[t] + jnp.dot(h.astype(w_hh.dtype), w_hh,
                                        preferred_element_type=jnp.float32)
                # PyTorch gate order i, f, g, o; slices are 128-lane aligned.
                i_g = jax.nn.sigmoid(g_pre[:, 0 * Hp:1 * Hp])
                f_g = jax.nn.sigmoid(g_pre[:, 1 * Hp:2 * Hp])
                g_g = jnp.tanh(g_pre[:, 2 * Hp:3 * Hp])
                o_g = jax.nn.sigmoid(g_pre[:, 3 * Hp:4 * Hp])
                c = f_g * c + i_g * g_g
                h = o_g * jnp.tanh(c)
                if layer < L - 1:            # last layer: only final h is needed
                    if use_reg_seq:
                        next_seq.append(h)   # stays as a value (no VMEM round-trip)
                    else:
                        seq_ref[t] = h       # contiguous full-tile store
            prev_seq = next_seq

        # ---- MLP head: Linear -> ReLU -> Linear (all dims lane-padded) ----
        hid = jnp.maximum(
            jnp.dot(h.astype(fc1_w_ref.dtype), fc1_w_ref[...],
                    preferred_element_type=jnp.float32) + fc1_b_ref[...],
            0.0)
        out_ref[...] = (jnp.dot(hid.astype(fc2_w_ref.dtype), fc2_w_ref[...],
                                preferred_element_type=jnp.float32)
                        + fc2_b_ref[...])

    return kernel


# -----------------------------------------------------------------------------
# One-time parameter preparation (padding + bf16 cast)
# -----------------------------------------------------------------------------
def prepare_params(params, hidden, output):
    """Pad weights so each gate occupies its own 128-lane-aligned column block,
    pad all hidden/head dims to lane multiples, cast matmul weights to bf16."""
    H = hidden
    Hp = _round_up(H, LANES)
    FC1 = output * 8
    FC1P = _round_up(FC1, LANES)
    OUTP = _round_up(output, LANES)

    def pad_gate_cols(w):                       # (Din, 4H) -> (Din, 4Hp)
        din = w.shape[0]
        w4 = w.reshape(din, 4, H)
        return jnp.pad(w4, ((0, 0), (0, 0), (0, Hp - H))).reshape(din, 4 * Hp)

    prep = {"w_ih": [], "w_hh": [], "b": []}
    for l in range(len(params["w_ih"])):
        w_ih = pad_gate_cols(params["w_ih"][l])
        if l > 0:                               # deeper layers consume padded h
            w_ih = jnp.pad(w_ih, ((0, Hp - H), (0, 0)))
        w_hh = jnp.pad(pad_gate_cols(params["w_hh"][l]), ((0, Hp - H), (0, 0)))
        prep["w_ih"].append(w_ih.astype(jnp.bfloat16))
        prep["w_hh"].append(w_hh.astype(jnp.bfloat16))
        prep["b"].append(pad_gate_cols(params["b"][l]).astype(jnp.float32))

    prep["fc1_w"] = jnp.pad(params["fc1_w"],
                            ((0, Hp - H), (0, FC1P - FC1))).astype(jnp.bfloat16)
    prep["fc1_b"] = jnp.pad(params["fc1_b"],
                            ((0, 0), (0, FC1P - FC1))).astype(jnp.float32)
    prep["fc2_w"] = jnp.pad(params["fc2_w"],
                            ((0, FC1P - FC1), (0, OUTP - output))).astype(jnp.bfloat16)
    prep["fc2_b"] = jnp.pad(params["fc2_b"],
                            ((0, 0), (0, OUTP - output))).astype(jnp.float32)
    return prep


# -----------------------------------------------------------------------------
# Wrapper
# -----------------------------------------------------------------------------
@functools.partial(jax.jit, static_argnames=("output",))
def neural_network_lstm_forward(x, prep, *, output):
    """x: (B, T, inputSize) float32, prep: prepare_params(...) -> (B, outputSize)."""
    B, T, I = x.shape
    num_layers = len(prep["w_ih"])
    Hp = prep["w_hh"][0].shape[0]
    OUTP = prep["fc2_w"].shape[1]

    SB = SUBLANES                               # per-shard batch (full sublanes)
    Bp = _round_up(max(B, SB), SB)
    n_shards = Bp // SB

    # Pad batch to full sublanes and go time-major (fuses into one tiny XLA op).
    x_p = jnp.pad(x, ((0, Bp - B), (0, 0), (0, 0)))
    x_tbi = jnp.transpose(x_p, (1, 0, 2))        # (T, Bp, I)

    inputs = [x_tbi]
    for l in range(num_layers):
        inputs += [prep["w_ih"][l], prep["w_hh"][l], prep["b"][l]]
    inputs += [prep["fc1_w"], prep["fc1_b"], prep["fc2_w"], prep["fc2_b"]]

    def full_spec(a):                            # whole array resident, constant block
        return pl.BlockSpec(a.shape, lambda i, _n=a.ndim: (0,) * _n)

    in_specs = [pl.BlockSpec((T, SB, I), lambda i: (0, i, 0))]
    in_specs += [full_spec(a) for a in inputs[1:]]
    out_specs = pl.BlockSpec((SB, OUTP), lambda i: (i, 0))

    # Keep the inter-layer hidden sequence as in-kernel values when small; fall
    # back to a VMEM scratch buffer otherwise (or skip entirely for 1 layer).
    use_reg_seq = (num_layers == 1) or (T * SB * Hp * 4 <= REG_SEQ_BYTES)
    scratch_shapes = [] if use_reg_seq else [pltpu.VMEM((T, SB, Hp), jnp.float32)]

    # VMEM budget sized from the actual footprint (double-buffered I/O + scratch
    # + headroom for in-kernel intermediates such as the hoisted gate tensor).
    in_bytes = sum(int(np.prod(a.shape)) * a.dtype.itemsize for a in inputs)
    scratch_bytes = 0 if use_reg_seq else T * SB * Hp * 4
    out_bytes = SB * OUTP * 4
    vmem_limit = int(min(max(2 * (in_bytes + out_bytes) + scratch_bytes + (8 << 20),
                             16 << 20), 48 << 20))

    out_p = pl.pallas_call(
        make_lstm_mlp_kernel(num_layers, use_reg_seq),
        out_shape=jax.ShapeDtypeStruct((Bp, OUTP), jnp.float32),
        grid=(n_shards,),
        in_specs=in_specs,
        out_specs=out_specs,
        scratch_shapes=scratch_shapes,
        compiler_params=pltpu.CompilerParams(
            dimension_semantics=("parallel",),
            vmem_limit_bytes=vmem_limit),
    )(*inputs)

    return out_p[:B, :output]


# -----------------------------------------------------------------------------
# Deterministic parameter construction (PyTorch-style uniform init, f32 logical)
# -----------------------------------------------------------------------------
def init_params(key, input_size, hidden, num_layers, output):
    def uniform(k, shape, bound):
        return jax.random.uniform(k, shape, jnp.float32, -bound, bound)

    params = {"w_ih": [], "w_hh": [], "b": []}
    bound = 1.0 / np.sqrt(hidden)
    for l in range(num_layers):
        din = input_size if l == 0 else hidden
        key, k1, k2, k3, k4 = jax.random.split(key, 5)
        # PyTorch stores (4H, Din)/(4H, H); kept transposed for row-major matmuls.
        params["w_ih"].append(uniform(k1, (din, 4 * hidden), bound))
        params["w_hh"].append(uniform(k2, (hidden, 4 * hidden), bound))
        b_ih = uniform(k3, (4 * hidden,), bound)
        b_hh = uniform(k4, (4 * hidden,), bound)
        params["b"].append((b_ih + b_hh).reshape(1, 4 * hidden))

    key, k1, k2, k3, k4 = jax.random.split(key, 5)
    b1 = 1.0 / np.sqrt(hidden)
    b2 = 1.0 / np.sqrt(output * 8)
    params["fc1_w"] = uniform(k1, (hidden, output * 8), b1)
    params["fc1_b"] = uniform(k2, (1, output * 8), b1)
    params["fc2_w"] = uniform(k3, (output * 8, output), b2)
    params["fc2_b"] = uniform(k4, (1, output), b2)
    return params


# -----------------------------------------------------------------------------
# Pure-JAX f32 reference (matches the PyTorch forward)
# -----------------------------------------------------------------------------
def reference_forward(x, params, *, num_layers, hidden):
    h_seq = x
    B = x.shape[0]
    H = hidden
    for l in range(num_layers):
        w_ih, w_hh, b = params["w_ih"][l], params["w_hh"][l], params["b"][l]
        h = jnp.zeros((B, H), jnp.float32)
        c = jnp.zeros((B, H), jnp.float32)
        outs = []
        for t in range(h_seq.shape[1]):
            g = h_seq[:, t, :] @ w_ih + h @ w_hh + b
            i_g = jax.nn.sigmoid(g[:, :H])
            f_g = jax.nn.sigmoid(g[:, H:2 * H])
            g_g = jnp.tanh(g[:, 2 * H:3 * H])
            o_g = jax.nn.sigmoid(g[:, 3 * H:])
            c = f_g * c + i_g * g_g
            h = o_g * jnp.tanh(c)
            outs.append(h)
        h_seq = jnp.stack(outs, axis=1)
    last = h_seq[:, -1, :]
    hid = jnp.maximum(last @ params["fc1_w"] + params["fc1_b"], 0.0)
    return hid @ params["fc2_w"] + params["fc2_b"]


# -----------------------------------------------------------------------------
if __name__ == "__main__":
    INPUT_SIZE = 16
    HIDDEN = 32
    NUM_LAYERS = 2
    OUTPUT = 4
    B, T = 2, 8

    key = jax.random.PRNGKey(0)
    key, xk, pk = jax.random.split(key, 3)
    x = jax.random.normal(xk, (B, T, INPUT_SIZE), jnp.float32)
    params = init_params(pk, INPUT_SIZE, HIDDEN, NUM_LAYERS, OUTPUT)
    prep = prepare_params(params, HIDDEN, OUTPUT)

    out = neural_network_lstm_forward(x, prep, output=OUTPUT)
    out = jax.block_until_ready(out)

    ref = reference_forward(x, params, num_layers=NUM_LAYERS, hidden=HIDDEN)
    # bf16 matmul weights with f32 accumulation vs pure-f32 reference.
    np.testing.assert_allclose(np.asarray(out), np.asarray(ref),
                               rtol=3e-2, atol=3e-2)

    assert out.shape == (B, OUTPUT) and out.dtype == jnp.float32
    print("KERNEL_OK")
</pallas_src>

<mosaic_0001>
module attributes {stable_mosaic.version = 11 : i64} {
  func.func @kernel(%arg0: i32, %arg1: memref<8x8x16xf32, #tpu.memory_space<vmem>>, %arg2: memref<16x512xbf16, #tpu.memory_space<vmem>>, %arg3: memref<128x512xbf16, #tpu.memory_space<vmem>>, %arg4: memref<1x512xf32, #tpu.memory_space<vmem>>, %arg5: memref<128x512xbf16, #tpu.memory_space<vmem>>, %arg6: memref<128x512xbf16, #tpu.memory_space<vmem>>, %arg7: memref<1x512xf32, #tpu.memory_space<vmem>>, %arg8: memref<128x128xbf16, #tpu.memory_space<vmem>>, %arg9: memref<1x128xf32, #tpu.memory_space<vmem>>, %arg10: memref<128x128xbf16, #tpu.memory_space<vmem>>, %arg11: memref<1x128xf32, #tpu.memory_space<vmem>>, %arg12: memref<8x128xf32, #tpu.memory_space<vmem>>) attributes {dimension_semantics = [#tpu.dimension_semantics<parallel>], iteration_bounds = array<i64: 1>, scalar_prefetch = 0 : i64, scratch_operands = 0 : i64, tpu.core_type = #tpu.core_type<tc>, window_params = [{transform_indices = @transform_0, window_bounds = array<i64: 8, 8, 16>}, {pipeline_mode = #tpu.pipeline_mode<synchronous>, transform_indices = @transform_1, window_bounds = array<i64: 16, 512>}, {pipeline_mode = #tpu.pipeline_mode<synchronous>, transform_indices = @transform_2, window_bounds = array<i64: 128, 512>}, {pipeline_mode = #tpu.pipeline_mode<synchronous>, transform_indices = @transform_3, window_bounds = array<i64: 1, 512>}, {pipeline_mode = #tpu.pipeline_mode<synchronous>, transform_indices = @transform_4, window_bounds = array<i64: 128, 512>}, {pipeline_mode = #tpu.pipeline_mode<synchronous>, transform_indices = @transform_5, window_bounds = array<i64: 128, 512>}, {pipeline_mode = #tpu.pipeline_mode<synchronous>, transform_indices = @transform_6, window_bounds = array<i64: 1, 512>}, {pipeline_mode = #tpu.pipeline_mode<synchronous>, transform_indices = @transform_7, window_bounds = array<i64: 128, 128>}, {pipeline_mode = #tpu.pipeline_mode<synchronous>, transform_indices = @transform_8, window_bounds = array<i64: 1, 128>}, {pipeline_mode = #tpu.pipeline_mode<synchronous>, transform_indices = @transform_9, window_bounds = array<i64: 128, 128>}, {pipeline_mode = #tpu.pipeline_mode<synchronous>, transform_indices = @transform_10, window_bounds = array<i64: 1, 128>}, {transform_indices = @transform_11, window_bounds = array<i64: 8, 128>}]} {
    %c0 = arith.constant 0 : index
    %c0_0 = arith.constant 0 : index
    %0 = vector.load %arg2[%c0, %c0_0] : memref<16x512xbf16, #tpu.memory_space<vmem>>, vector<16x512xbf16>
    %c0_1 = arith.constant 0 : index
    %c0_2 = arith.constant 0 : index
    %1 = vector.load %arg3[%c0_1, %c0_2] : memref<128x512xbf16, #tpu.memory_space<vmem>>, vector<128x512xbf16>
    %c0_3 = arith.constant 0 : index
    %c0_4 = arith.constant 0 : index
    %2 = vector.load %arg4[%c0_3, %c0_4] : memref<1x512xf32, #tpu.memory_space<vmem>>, vector<1x512xf32>
    %c0_5 = arith.constant 0 : index
    %c0_6 = arith.constant 0 : index
    %c0_7 = arith.constant 0 : index
    %3 = vector.load %arg1[%c0_5, %c0_6, %c0_7] : memref<8x8x16xf32, #tpu.memory_space<vmem>>, vector<8x8x16xf32>
    %4 = vector.shape_cast %3 : vector<8x8x16xf32> to vector<64x16xf32>
    %5 = arith.truncf %4 : vector<64x16xf32> to vector<64x16xbf16>
    %cst = arith.constant dense<0.000000e+00> : vector<64x512xf32>
    %6 = tpu.matmul %5, %0, %cst {dimension_numbers = #tpu.dot_dimension_numbers<[1], [0], [0], [1], [0, 0, 1, 1], [], []>} : vector<64x16xbf16>, vector<16x512xbf16>, vector<64x512xf32> -> vector<64x512xf32>
    %7 = vector.broadcast %2 : vector<1x512xf32> to vector<64x512xf32>
    %8 = arith.addf %6, %7 : vector<64x512xf32>
    %9 = vector.shape_cast %8 : vector<64x512xf32> to vector<8x8x512xf32>
    %cst_8 = arith.constant 0.000000e+00 : f32
    %10 = vector.broadcast %cst_8 : f32 to vector<8x128xf32>
    %cst_9 = arith.constant 0.000000e+00 : f32
    %11 = vector.broadcast %cst_9 : f32 to vector<8x128xf32>
    %12 = vector.extract_strided_slice %9 {offsets = [0, 0, 0], sizes = [1, 8, 512], strides = [1, 1, 1]} : vector<8x8x512xf32> to vector<1x8x512xf32>
    %13 = vector.shape_cast %12 : vector<1x8x512xf32> to vector<8x512xf32>
    %14 = arith.truncf %10 : vector<8x128xf32> to vector<8x128xbf16>
    %cst_10 = arith.constant dense<0.000000e+00> : vector<8x512xf32>
    %15 = tpu.matmul %14, %1, %cst_10 {dimension_numbers = #tpu.dot_dimension_numbers<[1], [0], [0], [1], [0, 0, 1, 1], [], []>} : vector<8x128xbf16>, vector<128x512xbf16>, vector<8x512xf32> -> vector<8x512xf32>
    %16 = arith.addf %13, %15 : vector<8x512xf32>
    %17 = vector.extract_strided_slice %16 {offsets = [0, 0], sizes = [8, 128], strides = [1, 1]} : vector<8x512xf32> to vector<8x128xf32>
    %18 = arith.negf %17 : vector<8x128xf32>
    %19 = math.exp %18 : vector<8x128xf32>
    %cst_11 = arith.constant 1.000000e+00 : f32
    %20 = vector.broadcast %cst_11 : f32 to vector<8x128xf32>
    %21 = arith.addf %20, %19 : vector<8x128xf32>
    %22 = arith.divf %20, %21 : vector<8x128xf32>
    %23 = vector.extract_strided_slice %16 {offsets = [0, 128], sizes = [8, 128], strides = [1, 1]} : vector<8x512xf32> to vector<8x128xf32>
    %24 = arith.negf %23 : vector<8x128xf32>
    %25 = math.exp %24 : vector<8x128xf32>
    %cst_12 = arith.constant 1.000000e+00 : f32
    %26 = vector.broadcast %cst_12 : f32 to vector<8x128xf32>
    %27 = arith.addf %26, %25 : vector<8x128xf32>
    %28 = arith.divf %26, %27 : vector<8x128xf32>
    %29 = vector.extract_strided_slice %16 {offsets = [0, 256], sizes = [8, 128], strides = [1, 1]} : vector<8x512xf32> to vector<8x128xf32>
    %30 = math.tanh %29 : vector<8x128xf32>
    %31 = vector.extract_strided_slice %16 {offsets = [0, 384], sizes = [8, 128], strides = [1, 1]} : vector<8x512xf32> to vector<8x128xf32>
    %32 = arith.negf %31 : vector<8x128xf32>
    %33 = math.exp %32 : vector<8x128xf32>
    %cst_13 = arith.constant 1.000000e+00 : f32
    %34 = vector.broadcast %cst_13 : f32 to vector<8x128xf32>
    %35 = arith.addf %34, %33 : vector<8x128xf32>
    %36 = arith.divf %34, %35 : vector<8x128xf32>
    %37 = arith.mulf %28, %11 : vector<8x128xf32>
    %38 = arith.mulf %22, %30 : vector<8x128xf32>
    %39 = arith.addf %37, %38 : vector<8x128xf32>
    %40 = math.tanh %39 : vector<8x128xf32>
    %41 = arith.mulf %36, %40 : vector<8x128xf32>
    %42 = vector.extract_strided_slice %9 {offsets = [1, 0, 0], sizes = [1, 8, 512], strides = [1, 1, 1]} : vector<8x8x512xf32> to vector<1x8x512xf32>
    %43 = vector.shape_cast %42 : vector<1x8x512xf32> to vector<8x512xf32>
    %44 = arith.truncf %41 : vector<8x128xf32> to vector<8x128xbf16>
    %cst_14 = arith.constant dense<0.000000e+00> : vector<8x512xf32>
    %45 = tpu.matmul %44, %1, %cst_14 {dimension_numbers = #tpu.dot_dimension_numbers<[1], [0], [0], [1], [0, 0, 1, 1], [], []>} : vector<8x128xbf16>, vector<128x512xbf16>, vector<8x512xf32> -> vector<8x512xf32>
    %46 = arith.addf %43, %45 : vector<8x512xf32>
    %47 = vector.extract_strided_slice %46 {offsets = [0, 0], sizes = [8, 128], strides = [1, 1]} : vector<8x512xf32> to vector<8x128xf32>
    %48 = arith.negf %47 : vector<8x128xf32>
    %49 = math.exp %48 : vector<8x128xf32>
    %cst_15 = arith.constant 1.000000e+00 : f32
    %50 = vector.broadcast %cst_15 : f32 to vector<8x128xf32>
    %51 = arith.addf %50, %49 : vector<8x128xf32>
    %52 = arith.divf %50, %51 : vector<8x128xf32>
    %53 = vector.extract_strided_slice %46 {offsets = [0, 128], sizes = [8, 128], strides = [1, 1]} : vector<8x512xf32> to vector<8x128xf32>
    %54 = arith.negf %53 : vector<8x128xf32>
    %55 = math.exp %54 : vector<8x128xf32>
    %cst_16 = arith.constant 1.000000e+00 : f32
    %56 = vector.broadcast %cst_16 : f32 to vector<8x128xf32>
    %57 = arith.addf %56, %55 : vector<8x128xf32>
    %58 = arith.divf %56, %57 : vector<8x128xf32>
    %59 = vector.extract_strided_slice %46 {offsets = [0, 256], sizes = [8, 128], strides = [1, 1]} : vector<8x512xf32> to vector<8x128xf32>
    %60 = math.tanh %59 : vector<8x128xf32>
    %61 = vector.extract_strided_slice %46 {offsets = [0, 384], sizes = [8, 128], strides = [1, 1]} : vector<8x512xf32> to vector<8x128xf32>
    %62 = arith.negf %61 : vector<8x128xf32>
    %63 = math.exp %62 : vector<8x128xf32>
    %cst_17 = arith.constant 1.000000e+00 : f32
    %64 = vector.broadcast %cst_17 : f32 to vector<8x128xf32>
    %65 = arith.addf %64, %63 : vector<8x128xf32>
    %66 = arith.divf %64, %65 : vector<8x128xf32>
    %67 = arith.mulf %58, %39 : vector<8x128xf32>
    %68 = arith.mulf %52, %60 : vector<8x128xf32>
    %69 = arith.addf %67, %68 : vector<8x128xf32>
    %70 = math.tanh %69 : vector<8x128xf32>
    %71 = arith.mulf %66, %70 : vector<8x128xf32>
    %72 = vector.extract_strided_slice %9 {offsets = [2, 0, 0], sizes = [1, 8, 512], strides = [1, 1, 1]} : vector<8x8x512xf32> to vector<1x8x512xf32>
    %73 = vector.shape_cast %72 : vector<1x8x512xf32> to vector<8x512xf32>
    %74 = arith.truncf %71 : vector<8x128xf32> to vector<8x128xbf16>
    %cst_18 = arith.constant dense<0.000000e+00> : vector<8x512xf32>
    %75 = tpu.matmul %74, %1, %cst_18 {dimension_numbers = #tpu.dot_dimension_numbers<[1], [0], [0], [1], [0, 0, 1, 1], [], []>} : vector<8x128xbf16>, vector<128x512xbf16>, vector<8x512xf32> -> vector<8x512xf32>
    %76 = arith.addf %73, %75 : vector<8x512xf32>
    %77 = vector.extract_strided_slice %76 {offsets = [0, 0], sizes = [8, 128], strides = [1, 1]} : vector<8x512xf32> to vector<8x128xf32>
    %78 = arith.negf %77 : vector<8x128xf32>
    %79 = math.exp %78 : vector<8x128xf32>
    %cst_19 = arith.constant 1.000000e+00 : f32
    %80 = vector.broadcast %cst_19 : f32 to vector<8x128xf32>
    %81 = arith.addf %80, %79 : vector<8x128xf32>
    %82 = arith.divf %80, %81 : vector<8x128xf32>
    %83 = vector.extract_strided_slice %76 {offsets = [0, 128], sizes = [8, 128], strides = [1, 1]} : vector<8x512xf32> to vector<8x128xf32>
    %84 = arith.negf %83 : vector<8x128xf32>
    %85 = math.exp %84 : vector<8x128xf32>
    %cst_20 = arith.constant 1.000000e+00 : f32
    %86 = vector.broadcast %cst_20 : f32 to vector<8x128xf32>
    %87 = arith.addf %86, %85 : vector<8x128xf32>
    %88 = arith.divf %86, %87 : vector<8x128xf32>
    %89 = vector.extract_strided_slice %76 {offsets = [0, 256], sizes = [8, 128], strides = [1, 1]} : vector<8x512xf32> to vector<8x128xf32>
    %90 = math.tanh %89 : vector<8x128xf32>
    %91 = vector.extract_strided_slice %76 {offsets = [0, 384], sizes = [8, 128], strides = [1, 1]} : vector<8x512xf32> to vector<8x128xf32>
    %92 = arith.negf %91 : vector<8x128xf32>
    %93 = math.exp %92 : vector<8x128xf32>
    %cst_21 = arith.constant 1.000000e+00 : f32
    %94 = vector.broadcast %cst_21 : f32 to vector<8x128xf32>
    %95 = arith.addf %94, %93 : vector<8x128xf32>
    %96 = arith.divf %94, %95 : vector<8x128xf32>
    %97 = arith.mulf %88, %69 : vector<8x128xf32>
    %98 = arith.mulf %82, %90 : vector<8x128xf32>
    %99 = arith.addf %97, %98 : vector<8x128xf32>
    %100 = math.tanh %99 : vector<8x128xf32>
    %101 = arith.mulf %96, %100 : vector<8x128xf32>
    %102 = vector.extract_strided_slice %9 {offsets = [3, 0, 0], sizes = [1, 8, 512], strides = [1, 1, 1]} : vector<8x8x512xf32> to vector<1x8x512xf32>
    %103 = vector.shape_cast %102 : vector<1x8x512xf32> to vector<8x512xf32>
    %104 = arith.truncf %101 : vector<8x128xf32> to vector<8x128xbf16>
    %cst_22 = arith.constant dense<0.000000e+00> : vector<8x512xf32>
    %105 = tpu.matmul %104, %1, %cst_22 {dimension_numbers = #tpu.dot_dimension_numbers<[1], [0], [0], [1], [0, 0, 1, 1], [], []>} : vector<8x128xbf16>, vector<128x512xbf16>, vector<8x512xf32> -> vector<8x512xf32>
    %106 = arith.addf %103, %105 : vector<8x512xf32>
    %107 = vector.extract_strided_slice %106 {offsets = [0, 0], sizes = [8, 128], strides = [1, 1]} : vector<8x512xf32> to vector<8x128xf32>
    %108 = arith.negf %107 : vector<8x128xf32>
    %109 = math.exp %108 : vector<8x128xf32>
    %cst_23 = arith.constant 1.000000e+00 : f32
    %110 = vector.broadcast %cst_23 : f32 to vector<8x128xf32>
    %111 = arith.addf %110, %109 : vector<8x128xf32>
    %112 = arith.divf %110, %111 : vector<8x128xf32>
    %113 = vector.extract_strided_slice %106 {offsets = [0, 128], sizes = [8, 128], strides = [1, 1]} : vector<8x512xf32> to vector<8x128xf32>
    %114 = arith.negf %113 : vector<8x128xf32>
    %115 = math.exp %114 : vector<8x128xf32>
    %cst_24 = arith.constant 1.000000e+00 : f32
    %116 = vector.broadcast %cst_24 : f32 to vector<8x128xf32>
    %117 = arith.addf %116, %115 : vector<8x128xf32>
    %118 = arith.divf %116, %117 : vector<8x128xf32>
    %119 = vector.extract_strided_slice %106 {offsets = [0, 256], sizes = [8, 128], strides = [1, 1]} : vector<8x512xf32> to vector<8x128xf32>
    %120 = math.tanh %119 : vector<8x128xf32>
    %121 = vector.extract_strided_slice %106 {offsets = [0, 384], sizes = [8, 128], strides = [1, 1]} : vector<8x512xf32> to vector<8x128xf32>
    %122 = arith.negf %121 : vector<8x128xf32>
    %123 = math.exp %122 : vector<8x128xf32>
    %cst_25 = arith.constant 1.000000e+00 : f32
    %124 = vector.broadcast %cst_25 : f32 to vector<8x128xf32>
    %125 = arith.addf %124, %123 : vector<8x128xf32>
    %126 = arith.divf %124, %125 : vector<8x128xf32>
    %127 = arith.mulf %118, %99 : vector<8x128xf32>
    %128 = arith.mulf %112, %120 : vector<8x128xf32>
    %129 = arith.addf %127, %128 : vector<8x128xf32>
    %130 = math.tanh %129 : vector<8x128xf32>
    %131 = arith.mulf %126, %130 : vector<8x128xf32>
    %132 = vector.extract_strided_slice %9 {offsets = [4, 0, 0], sizes = [1, 8, 512], strides = [1, 1, 1]} : vector<8x8x512xf32> to vector<1x8x512xf32>
    %133 = vector.shape_cast %132 : vector<1x8x512xf32> to vector<8x512xf32>
    %134 = arith.truncf %131 : vector<8x128xf32> to vector<8x128xbf16>
    %cst_26 = arith.constant dense<0.000000e+00> : vector<8x512xf32>
    %135 = tpu.matmul %134, %1, %cst_26 {dimension_numbers = #tpu.dot_dimension_numbers<[1], [0], [0], [1], [0, 0, 1, 1], [], []>} : vector<8x128xbf16>, vector<128x512xbf16>, vector<8x512xf32> -> vector<8x512xf32>
    %136 = arith.addf %133, %135 : vector<8x512xf32>
    %137 = vector.extract_strided_slice %136 {offsets = [0, 0], sizes = [8, 128], strides = [1, 1]} : vector<8x512xf32> to vector<8x128xf32>
    %138 = arith.negf %137 : vector<8x128xf32>
    %139 = math.exp %138 : vector<8x128xf32>
    %cst_27 = arith.constant 1.000000e+00 : f32
    %140 = vector.broadcast %cst_27 : f32 to vector<8x128xf32>
    %141 = arith.addf %140, %139 : vector<8x128xf32>
    %142 = arith.divf %140, %141 : vector<8x128xf32>
    %143 = vector.extract_strided_slice %136 {offsets = [0, 128], sizes = [8, 128], strides = [1, 1]} : vector<8x512xf32> to vector<8x128xf32>
    %144 = arith.negf %143 : vector<8x128xf32>
    %145 = math.exp %144 : vector<8x128xf32>
    %cst_28 = arith.constant 1.000000e+00 : f32
    %146 = vector.broadcast %cst_28 : f32 to vector<8x128xf32>
    %147 = arith.addf %146, %145 : vector<8x128xf32>
    %148 = arith.divf %146, %147 : vector<8x128xf32>
    %149 = vector.extract_strided_slice %136 {offsets = [0, 256], sizes = [8, 128], strides = [1, 1]} : vector<8x512xf32> to vector<8x128xf32>
    %150 = math.tanh %149 : vector<8x128xf32>
    %151 = vector.extract_strided_slice %136 {offsets = [0, 384], sizes = [8, 128], strides = [1, 1]} : vector<8x512xf32> to vector<8x128xf32>
    %152 = arith.negf %151 : vector<8x128xf32>
    %153 = math.exp %152 : vector<8x128xf32>
    %cst_29 = arith.constant 1.000000e+00 : f32
    %154 = vector.broadcast %cst_29 : f32 to vector<8x128xf32>
    %155 = arith.addf %154, %153 : vector<8x128xf32>
    %156 = arith.divf %154, %155 : vector<8x128xf32>
    %157 = arith.mulf %148, %129 : vector<8x128xf32>
    %158 = arith.mulf %142, %150 : vector<8x128xf32>
    %159 = arith.addf %157, %158 : vector<8x128xf32>
    %160 = math.tanh %159 : vector<8x128xf32>
    %161 = arith.mulf %156, %160 : vector<8x128xf32>
    %162 = vector.extract_strided_slice %9 {offsets = [5, 0, 0], sizes = [1, 8, 512], strides = [1, 1, 1]} : vector<8x8x512xf32> to vector<1x8x512xf32>
    %163 = vector.shape_cast %162 : vector<1x8x512xf32> to vector<8x512xf32>
    %164 = arith.truncf %161 : vector<8x128xf32> to vector<8x128xbf16>
    %cst_30 = arith.constant dense<0.000000e+00> : vector<8x512xf32>
    %165 = tpu.matmul %164, %1, %cst_30 {dimension_numbers = #tpu.dot_dimension_numbers<[1], [0], [0], [1], [0, 0, 1, 1], [], []>} : vector<8x128xbf16>, vector<128x512xbf16>, vector<8x512xf32> -> vector<8x512xf32>
    %166 = arith.addf %163, %165 : vector<8x512xf32>
    %167 = vector.extract_strided_slice %166 {offsets = [0, 0], sizes = [8, 128], strides = [1, 1]} : vector<8x512xf32> to vector<8x128xf32>
    %168 = arith.negf %167 : vector<8x128xf32>
    %169 = math.exp %168 : vector<8x128xf32>
    %cst_31 = arith.constant 1.000000e+00 : f32
    %170 = vector.broadcast %cst_31 : f32 to vector<8x128xf32>
    %171 = arith.addf %170, %169 : vector<8x128xf32>
    %172 = arith.divf %170, %171 : vector<8x128xf32>
    %173 = vector.extract_strided_slice %166 {offsets = [0, 128], sizes = [8, 128], strides = [1, 1]} : vector<8x512xf32> to vector<8x128xf32>
    %174 = arith.negf %173 : vector<8x128xf32>
    %175 = math.exp %174 : vector<8x128xf32>
    %cst_32 = arith.constant 1.000000e+00 : f32
    %176 = vector.broadcast %cst_32 : f32 to vector<8x128xf32>
    %177 = arith.addf %176, %175 : vector<8x128xf32>
    %178 = arith.divf %176, %177 : vector<8x128xf32>
    %179 = vector.extract_strided_slice %166 {offsets = [0, 256], sizes = [8, 128], strides = [1, 1]} : vector<8x512xf32> to vector<8x128xf32>
    %180 = math.tanh %179 : vector<8x128xf32>
    %181 = vector.extract_strided_slice %166 {offsets = [0, 384], sizes = [8, 128], strides = [1, 1]} : vector<8x512xf32> to vector<8x128xf32>
    %182 = arith.negf %181 : vector<8x128xf32>
    %183 = math.exp %182 : vector<8x128xf32>
    %cst_33 = arith.constant 1.000000e+00 : f32
    %184 = vector.broadcast %cst_33 : f32 to vector<8x128xf32>
    %185 = arith.addf %184, %183 : vector<8x128xf32>
    %186 = arith.divf %184, %185 : vector<8x128xf32>
    %187 = arith.mulf %178, %159 : vector<8x128xf32>
    %188 = arith.mulf %172, %180 : vector<8x128xf32>
    %189 = arith.addf %187, %188 : vector<8x128xf32>
    %190 = math.tanh %189 : vector<8x128xf32>
    %191 = arith.mulf %186, %190 : vector<8x128xf32>
    %192 = vector.extract_strided_slice %9 {offsets = [6, 0, 0], sizes = [1, 8, 512], strides = [1, 1, 1]} : vector<8x8x512xf32> to vector<1x8x512xf32>
    %193 = vector.shape_cast %192 : vector<1x8x512xf32> to vector<8x512xf32>
    %194 = arith.truncf %191 : vector<8x128xf32> to vector<8x128xbf16>
    %cst_34 = arith.constant dense<0.000000e+00> : vector<8x512xf32>
    %195 = tpu.matmul %194, %1, %cst_34 {dimension_numbers = #tpu.dot_dimension_numbers<[1], [0], [0], [1], [0, 0, 1, 1], [], []>} : vector<8x128xbf16>, vector<128x512xbf16>, vector<8x512xf32> -> vector<8x512xf32>
    %196 = arith.addf %193, %195 : vector<8x512xf32>
    %197 = vector.extract_strided_slice %196 {offsets = [0, 0], sizes = [8, 128], strides = [1, 1]} : vector<8x512xf32> to vector<8x128xf32>
    %198 = arith.negf %197 : vector<8x128xf32>
    %199 = math.exp %198 : vector<8x128xf32>
    %cst_35 = arith.constant 1.000000e+00 : f32
    %200 = vector.broadcast %cst_35 : f32 to vector<8x128xf32>
    %201 = arith.addf %200, %199 : vector<8x128xf32>
    %202 = arith.divf %200, %201 : vector<8x128xf32>
    %203 = vector.extract_strided_slice %196 {offsets = [0, 128], sizes = [8, 128], strides = [1, 1]} : vector<8x512xf32> to vector<8x128xf32>
    %204 = arith.negf %203 : vector<8x128xf32>
    %205 = math.exp %204 : vector<8x128xf32>
    %cst_36 = arith.constant 1.000000e+00 : f32
    %206 = vector.broadcast %cst_36 : f32 to vector<8x128xf32>
    %207 = arith.addf %206, %205 : vector<8x128xf32>
    %208 = arith.divf %206, %207 : vector<8x128xf32>
    %209 = vector.extract_strided_slice %196 {offsets = [0, 256], sizes = [8, 128], strides = [1, 1]} : vector<8x512xf32> to vector<8x128xf32>
    %210 = math.tanh %209 : vector<8x128xf32>
    %211 = vector.extract_strided_slice %196 {offsets = [0, 384], sizes = [8, 128], strides = [1, 1]} : vector<8x512xf32> to vector<8x128xf32>
    %212 = arith.negf %211 : vector<8x128xf32>
    %213 = math.exp %212 : vector<8x128xf32>
    %cst_37 = arith.constant 1.000000e+00 : f32
    %214 = vector.broadcast %cst_37 : f32 to vector<8x128xf32>
    %215 = arith.addf %214, %213 : vector<8x128xf32>
    %216 = arith.divf %214, %215 : vector<8x128xf32>
    %217 = arith.mulf %208, %189 : vector<8x128xf32>
    %218 = arith.mulf %202, %210 : vector<8x128xf32>
    %219 = arith.addf %217, %218 : vector<8x128xf32>
    %220 = math.tanh %219 : vector<8x128xf32>
    %221 = arith.mulf %216, %220 : vector<8x128xf32>
    %222 = vector.extract_strided_slice %9 {offsets = [7, 0, 0], sizes = [1, 8, 512], strides = [1, 1, 1]} : vector<8x8x512xf32> to vector<1x8x512xf32>
    %223 = vector.shape_cast %222 : vector<1x8x512xf32> to vector<8x512xf32>
    %224 = arith.truncf %221 : vector<8x128xf32> to vector<8x128xbf16>
    %cst_38 = arith.constant dense<0.000000e+00> : vector<8x512xf32>
    %225 = tpu.matmul %224, %1, %cst_38 {dimension_numbers = #tpu.dot_dimension_numbers<[1], [0], [0], [1], [0, 0, 1, 1], [], []>} : vector<8x128xbf16>, vector<128x512xbf16>, vector<8x512xf32> -> vector<8x512xf32>
    %226 = arith.addf %223, %225 : vector<8x512xf32>
    %227 = vector.extract_strided_slice %226 {offsets = [0, 0], sizes = [8, 128], strides = [1, 1]} : vector<8x512xf32> to vector<8x128xf32>
    %228 = arith.negf %227 : vector<8x128xf32>
    %229 = math.exp %228 : vector<8x128xf32>
    %cst_39 = arith.constant 1.000000e+00 : f32
    %230 = vector.broadcast %cst_39 : f32 to vector<8x128xf32>
    %231 = arith.addf %230, %229 : vector<8x128xf32>
    %232 = arith.divf %230, %231 : vector<8x128xf32>
    %233 = vector.extract_strided_slice %226 {offsets = [0, 128], sizes = [8, 128], strides = [1, 1]} : vector<8x512xf32> to vector<8x128xf32>
    %234 = arith.negf %233 : vector<8x128xf32>
    %235 = math.exp %234 : vector<8x128xf32>
    %cst_40 = arith.constant 1.000000e+00 : f32
    %236 = vector.broadcast %cst_40 : f32 to vector<8x128xf32>
    %237 = arith.addf %236, %235 : vector<8x128xf32>
    %238 = arith.divf %236, %237 : vector<8x128xf32>
    %239 = vector.extract_strided_slice %226 {offsets = [0, 256], sizes = [8, 128], strides = [1, 1]} : vector<8x512xf32> to vector<8x128xf32>
    %240 = math.tanh %239 : vector<8x128xf32>
    %241 = vector.extract_strided_slice %226 {offsets = [0, 384], sizes = [8, 128], strides = [1, 1]} : vector<8x512xf32> to vector<8x128xf32>
    %242 = arith.negf %241 : vector<8x128xf32>
    %243 = math.exp %242 : vector<8x128xf32>
    %cst_41 = arith.constant 1.000000e+00 : f32
    %244 = vector.broadcast %cst_41 : f32 to vector<8x128xf32>
    %245 = arith.addf %244, %243 : vector<8x128xf32>
    %246 = arith.divf %244, %245 : vector<8x128xf32>
    %247 = arith.mulf %238, %219 : vector<8x128xf32>
    %248 = arith.mulf %232, %240 : vector<8x128xf32>
    %249 = arith.addf %247, %248 : vector<8x128xf32>
    %250 = math.tanh %249 : vector<8x128xf32>
    %251 = arith.mulf %246, %250 : vector<8x128xf32>
    %c0_42 = arith.constant 0 : index
    %c0_43 = arith.constant 0 : index
    %252 = vector.load %arg5[%c0_42, %c0_43] : memref<128x512xbf16, #tpu.memory_space<vmem>>, vector<128x512xbf16>
    %c0_44 = arith.constant 0 : index
    %c0_45 = arith.constant 0 : index
    %253 = vector.load %arg6[%c0_44, %c0_45] : memref<128x512xbf16, #tpu.memory_space<vmem>>, vector<128x512xbf16>
    %c0_46 = arith.constant 0 : index
    %c0_47 = arith.constant 0 : index
    %254 = vector.load %arg7[%c0_46, %c0_47] : memref<1x512xf32, #tpu.memory_space<vmem>>, vector<1x512xf32>
    %255 = tpu.concatenate %41, %71, %101, %131, %161, %191, %221, %251 in 0 : vector<8x128xf32>, vector<8x128xf32>, vector<8x128xf32>, vector<8x128xf32>, vector<8x128xf32>, vector<8x128xf32>, vector<8x128xf32>, vector<8x128xf32> -> vector<64x128xf32>
    %256 = arith.truncf %255 : vector<64x128xf32> to vector<64x128xbf16>
    %cst_48 = arith.constant dense<0.000000e+00> : vector<64x512xf32>
    %257 = tpu.matmul %256, %252, %cst_48 {dimension_numbers = #tpu.dot_dimension_numbers<[1], [0], [0], [1], [0, 0, 1, 1], [], []>} : vector<64x128xbf16>, vector<128x512xbf16>, vector<64x512xf32> -> vector<64x512xf32>
    %258 = vector.broadcast %254 : vector<1x512xf32> to vector<64x512xf32>
    %259 = arith.addf %257, %258 : vector<64x512xf32>
    %260 = vector.shape_cast %259 : vector<64x512xf32> to vector<8x8x512xf32>
    %cst_49 = arith.constant 0.000000e+00 : f32
    %261 = vector.broadcast %cst_49 : f32 to vector<8x128xf32>
    %cst_50 = arith.constant 0.000000e+00 : f32
    %262 = vector.broadcast %cst_50 : f32 to vector<8x128xf32>
    %263 = vector.extract_strided_slice %260 {offsets = [0, 0, 0], sizes = [1, 8, 512], strides = [1, 1, 1]} : vector<8x8x512xf32> to vector<1x8x512xf32>
    %264 = vector.shape_cast %263 : vector<1x8x512xf32> to vector<8x512xf32>
    %265 = arith.truncf %261 : vector<8x128xf32> to vector<8x128xbf16>
    %cst_51 = arith.constant dense<0.000000e+00> : vector<8x512xf32>
    %266 = tpu.matmul %265, %253, %cst_51 {dimension_numbers = #tpu.dot_dimension_numbers<[1], [0], [0], [1], [0, 0, 1, 1], [], []>} : vector<8x128xbf16>, vector<128x512xbf16>, vector<8x512xf32> -> vector<8x512xf32>
    %267 = arith.addf %264, %266 : vector<8x512xf32>
    %268 = vector.extract_strided_slice %267 {offsets = [0, 0], sizes = [8, 128], strides = [1, 1]} : vector<8x512xf32> to vector<8x128xf32>
    %269 = arith.negf %268 : vector<8x128xf32>
    %270 = math.exp %269 : vector<8x128xf32>
    %cst_52 = arith.constant 1.000000e+00 : f32
    %271 = vector.broadcast %cst_52 : f32 to vector<8x128xf32>
    %272 = arith.addf %271, %270 : vector<8x128xf32>
    %273 = arith.divf %271, %272 : vector<8x128xf32>
    %274 = vector.extract_strided_slice %267 {offsets = [0, 128], sizes = [8, 128], strides = [1, 1]} : vector<8x512xf32> to vector<8x128xf32>
    %275 = arith.negf %274 : vector<8x128xf32>
    %276 = math.exp %275 : vector<8x128xf32>
    %cst_53 = arith.constant 1.000000e+00 : f32
    %277 = vector.broadcast %cst_53 : f32 to vector<8x128xf32>
    %278 = arith.addf %277, %276 : vector<8x128xf32>
    %279 = arith.divf %277, %278 : vector<8x128xf32>
    %280 = vector.extract_strided_slice %267 {offsets = [0, 256], sizes = [8, 128], strides = [1, 1]} : vector<8x512xf32> to vector<8x128xf32>
    %281 = math.tanh %280 : vector<8x128xf32>
    %282 = vector.extract_strided_slice %267 {offsets = [0, 384], sizes = [8, 128], strides = [1, 1]} : vector<8x512xf32> to vector<8x128xf32>
    %283 = arith.negf %282 : vector<8x128xf32>
    %284 = math.exp %283 : vector<8x128xf32>
    %cst_54 = arith.constant 1.000000e+00 : f32
    %285 = vector.broadcast %cst_54 : f32 to vector<8x128xf32>
    %286 = arith.addf %285, %284 : vector<8x128xf32>
    %287 = arith.divf %285, %286 : vector<8x128xf32>
    %288 = arith.mulf %279, %262 : vector<8x128xf32>
    %289 = arith.mulf %273, %281 : vector<8x128xf32>
    %290 = arith.addf %288, %289 : vector<8x128xf32>
    %291 = math.tanh %290 : vector<8x128xf32>
    %292 = arith.mulf %287, %291 : vector<8x128xf32>
    %293 = vector.extract_strided_slice %260 {offsets = [1, 0, 0], sizes = [1, 8, 512], strides = [1, 1, 1]} : vector<8x8x512xf32> to vector<1x8x512xf32>
    %294 = vector.shape_cast %293 : vector<1x8x512xf32> to vector<8x512xf32>
    %295 = arith.truncf %292 : vector<8x128xf32> to vector<8x128xbf16>
    %cst_55 = arith.constant dense<0.000000e+00> : vector<8x512xf32>
    %296 = tpu.matmul %295, %253, %cst_55 {dimension_numbers = #tpu.dot_dimension_numbers<[1], [0], [0], [1], [0, 0, 1, 1], [], []>} : vector<8x128xbf16>, vector<128x512xbf16>, vector<8x512xf32> -> vector<8x512xf32>
    %297 = arith.addf %294, %296 : vector<8x512xf32>
    %298 = vector.extract_strided_slice %297 {offsets = [0, 0], sizes = [8, 128], strides = [1, 1]} : vector<8x512xf32> to vector<8x128xf32>
    %299 = arith.negf %298 : vector<8x128xf32>
    %300 = math.exp %299 : vector<8x128xf32>
    %cst_56 = arith.constant 1.000000e+00 : f32
    %301 = vector.broadcast %cst_56 : f32 to vector<8x128xf32>
    %302 = arith.addf %301, %300 : vector<8x128xf32>
    %303 = arith.divf %301, %302 : vector<8x128xf32>
    %304 = vector.extract_strided_slice %297 {offsets = [0, 128], sizes = [8, 128], strides = [1, 1]} : vector<8x512xf32> to vector<8x128xf32>
    %305 = arith.negf %304 : vector<8x128xf32>
    %306 = math.exp %305 : vector<8x128xf32>
    %cst_57 = arith.constant 1.000000e+00 : f32
    %307 = vector.broadcast %cst_57 : f32 to vector<8x128xf32>
    %308 = arith.addf %307, %306 : vector<8x128xf32>
    %309 = arith.divf %307, %308 : vector<8x128xf32>
    %310 = vector.extract_strided_slice %297 {offsets = [0, 256], sizes = [8, 128], strides = [1, 1]} : vector<8x512xf32> to vector<8x128xf32>
    %311 = math.tanh %310 : vector<8x128xf32>
    %312 = vector.extract_strided_slice %297 {offsets = [0, 384], sizes = [8, 128], strides = [1, 1]} : vector<8x512xf32> to vector<8x128xf32>
    %313 = arith.negf %312 : vector<8x128xf32>
    %314 = math.exp %313 : vector<8x128xf32>
    %cst_58 = arith.constant 1.000000e+00 : f32
    %315 = vector.broadcast %cst_58 : f32 to vector<8x128xf32>
    %316 = arith.addf %315, %314 : vector<8x128xf32>
    %317 = arith.divf %315, %316 : vector<8x128xf32>
    %318 = arith.mulf %309, %290 : vector<8x128xf32>
    %319 = arith.mulf %303, %311 : vector<8x128xf32>
    %320 = arith.addf %318, %319 : vector<8x128xf32>
    %321 = math.tanh %320 : vector<8x128xf32>
    %322 = arith.mulf %317, %321 : vector<8x128xf32>
    %323 = vector.extract_strided_slice %260 {offsets = [2, 0, 0], sizes = [1, 8, 512], strides = [1, 1, 1]} : vector<8x8x512xf32> to vector<1x8x512xf32>
    %324 = vector.shape_cast %323 : vector<1x8x512xf32> to vector<8x512xf32>
    %325 = arith.truncf %322 : vector<8x128xf32> to vector<8x128xbf16>
    %cst_59 = arith.constant dense<0.000000e+00> : vector<8x512xf32>
    %326 = tpu.matmul %325, %253, %cst_59 {dimension_numbers = #tpu.dot_dimension_numbers<[1], [0], [0], [1], [0, 0, 1, 1], [], []>} : vector<8x128xbf16>, vector<128x512xbf16>, vector<8x512xf32> -> vector<8x512xf32>
    %327 = arith.addf %324, %326 : vector<8x512xf32>
    %328 = vector.extract_strided_slice %327 {offsets = [0, 0], sizes = [8, 128], strides = [1, 1]} : vector<8x512xf32> to vector<8x128xf32>
    %329 = arith.negf %328 : vector<8x128xf32>
    %330 = math.exp %329 : vector<8x128xf32>
    %cst_60 = arith.constant 1.000000e+00 : f32
    %331 = vector.broadcast %cst_60 : f32 to vector<8x128xf32>
    %332 = arith.addf %331, %330 : vector<8x128xf32>
    %333 = arith.divf %331, %332 : vector<8x128xf32>
    %334 = vector.extract_strided_slice %327 {offsets = [0, 128], sizes = [8, 128], strides = [1, 1]} : vector<8x512xf32> to vector<8x128xf32>
    %335 = arith.negf %334 : vector<8x128xf32>
    %336 = math.exp %335 : vector<8x128xf32>
    %cst_61 = arith.constant 1.000000e+00 : f32
    %337 = vector.broadcast %cst_61 : f32 to vector<8x128xf32>
    %338 = arith.addf %337, %336 : vector<8x128xf32>
    %339 = arith.divf %337, %338 : vector<8x128xf32>
    %340 = vector.extract_strided_slice %327 {offsets = [0, 256], sizes = [8, 128], strides = [1, 1]} : vector<8x512xf32> to vector<8x128xf32>
    %341 = math.tanh %340 : vector<8x128xf32>
    %342 = vector.extract_strided_slice %327 {offsets = [0, 384], sizes = [8, 128], strides = [1, 1]} : vector<8x512xf32> to vector<8x128xf32>
    %343 = arith.negf %342 : vector<8x128xf32>
    %344 = math.exp %343 : vector<8x128xf32>
    %cst_62 = arith.constant 1.000000e+00 : f32
    %345 = vector.broadcast %cst_62 : f32 to vector<8x128xf32>
    %346 = arith.addf %345, %344 : vector<8x128xf32>
    %347 = arith.divf %345, %346 : vector<8x128xf32>
    %348 = arith.mulf %339, %320 : vector<8x128xf32>
    %349 = arith.mulf %333, %341 : vector<8x128xf32>
    %350 = arith.addf %348, %349 : vector<8x128xf32>
    %351 = math.tanh %350 : vector<8x128xf32>
    %352 = arith.mulf %347, %351 : vector<8x128xf32>
    %353 = vector.extract_strided_slice %260 {offsets = [3, 0, 0], sizes = [1, 8, 512], strides = [1, 1, 1]} : vector<8x8x512xf32> to vector<1x8x512xf32>
    %354 = vector.shape_cast %353 : vector<1x8x512xf32> to vector<8x512xf32>
    %355 = arith.truncf %352 : vector<8x128xf32> to vector<8x128xbf16>
    %cst_63 = arith.constant dense<0.000000e+00> : vector<8x512xf32>
    %356 = tpu.matmul %355, %253, %cst_63 {dimension_numbers = #tpu.dot_dimension_numbers<[1], [0], [0], [1], [0, 0, 1, 1], [], []>} : vector<8x128xbf16>, vector<128x512xbf16>, vector<8x512xf32> -> vector<8x512xf32>
    %357 = arith.addf %354, %356 : vector<8x512xf32>
    %358 = vector.extract_strided_slice %357 {offsets = [0, 0], sizes = [8, 128], strides = [1, 1]} : vector<8x512xf32> to vector<8x128xf32>
    %359 = arith.negf %358 : vector<8x128xf32>
    %360 = math.exp %359 : vector<8x128xf32>
    %cst_64 = arith.constant 1.000000e+00 : f32
    %361 = vector.broadcast %cst_64 : f32 to vector<8x128xf32>
    %362 = arith.addf %361, %360 : vector<8x128xf32>
    %363 = arith.divf %361, %362 : vector<8x128xf32>
    %364 = vector.extract_strided_slice %357 {offsets = [0, 128], sizes = [8, 128], strides = [1, 1]} : vector<8x512xf32> to vector<8x128xf32>
    %365 = arith.negf %364 : vector<8x128xf32>
    %366 = math.exp %365 : vector<8x128xf32>
    %cst_65 = arith.constant 1.000000e+00 : f32
    %367 = vector.broadcast %cst_65 : f32 to vector<8x128xf32>
    %368 = arith.addf %367, %366 : vector<8x128xf32>
    %369 = arith.divf %367, %368 : vector<8x128xf32>
    %370 = vector.extract_strided_slice %357 {offsets = [0, 256], sizes = [8, 128], strides = [1, 1]} : vector<8x512xf32> to vector<8x128xf32>
    %371 = math.tanh %370 : vector<8x128xf32>
    %372 = vector.extract_strided_slice %357 {offsets = [0, 384], sizes = [8, 128], strides = [1, 1]} : vector<8x512xf32> to vector<8x128xf32>
    %373 = arith.negf %372 : vector<8x128xf32>
    %374 = math.exp %373 : vector<8x128xf32>
    %cst_66 = arith.constant 1.000000e+00 : f32
    %375 = vector.broadcast %cst_66 : f32 to vector<8x128xf32>
    %376 = arith.addf %375, %374 : vector<8x128xf32>
    %377 = arith.divf %375, %376 : vector<8x128xf32>
    %378 = arith.mulf %369, %350 : vector<8x128xf32>
    %379 = arith.mulf %363, %371 : vector<8x128xf32>
    %380 = arith.addf %378, %379 : vector<8x128xf32>
    %381 = math.tanh %380 : vector<8x128xf32>
    %382 = arith.mulf %377, %381 : vector<8x128xf32>
    %383 = vector.extract_strided_slice %260 {offsets = [4, 0, 0], sizes = [1, 8, 512], strides = [1, 1, 1]} : vector<8x8x512xf32> to vector<1x8x512xf32>
    %384 = vector.shape_cast %383 : vector<1x8x512xf32> to vector<8x512xf32>
    %385 = arith.truncf %382 : vector<8x128xf32> to vector<8x128xbf16>
    %cst_67 = arith.constant dense<0.000000e+00> : vector<8x512xf32>
    %386 = tpu.matmul %385, %253, %cst_67 {dimension_numbers = #tpu.dot_dimension_numbers<[1], [0], [0], [1], [0, 0, 1, 1], [], []>} : vector<8x128xbf16>, vector<128x512xbf16>, vector<8x512xf32> -> vector<8x512xf32>
    %387 = arith.addf %384, %386 : vector<8x512xf32>
    %388 = vector.extract_strided_slice %387 {offsets = [0, 0], sizes = [8, 128], strides = [1, 1]} : vector<8x512xf32> to vector<8x128xf32>
    %389 = arith.negf %388 : vector<8x128xf32>
    %390 = math.exp %389 : vector<8x128xf32>
    %cst_68 = arith.constant 1.000000e+00 : f32
    %391 = vector.broadcast %cst_68 : f32 to vector<8x128xf32>
    %392 = arith.addf %391, %390 : vector<8x128xf32>
    %393 = arith.divf %391, %392 : vector<8x128xf32>
    %394 = vector.extract_strided_slice %387 {offsets = [0, 128], sizes = [8, 128], strides = [1, 1]} : vector<8x512xf32> to vector<8x128xf32>
    %395 = arith.negf %394 : vector<8x128xf32>
    %396 = math.exp %395 : vector<8x128xf32>
    %cst_69 = arith.constant 1.000000e+00 : f32
    %397 = vector.broadcast %cst_69 : f32 to vector<8x128xf32>
    %398 = arith.addf %397, %396 : vector<8x128xf32>
    %399 = arith.divf %397, %398 : vector<8x128xf32>
    %400 = vector.extract_strided_slice %387 {offsets = [0, 256], sizes = [8, 128], strides = [1, 1]} : vector<8x512xf32> to vector<8x128xf32>
    %401 = math.tanh %400 : vector<8x128xf32>
    %402 = vector.extract_strided_slice %387 {offsets = [0, 384], sizes = [8, 128], strides = [1, 1]} : vector<8x512xf32> to vector<8x128xf32>
    %403 = arith.negf %402 : vector<8x128xf32>
    %404 = math.exp %403 : vector<8x128xf32>
    %cst_70 = arith.constant 1.000000e+00 : f32
    %405 = vector.broadcast %cst_70 : f32 to vector<8x128xf32>
    %406 = arith.addf %405, %404 : vector<8x128xf32>
    %407 = arith.divf %405, %406 : vector<8x128xf32>
    %408 = arith.mulf %399, %380 : vector<8x128xf32>
    %409 = arith.mulf %393, %401 : vector<8x128xf32>
    %410 = arith.addf %408, %409 : vector<8x128xf32>
    %411 = math.tanh %410 : vector<8x128xf32>
    %412 = arith.mulf %407, %411 : vector<8x128xf32>
    %413 = vector.extract_strided_slice %260 {offsets = [5, 0, 0], sizes = [1, 8, 512], strides = [1, 1, 1]} : vector<8x8x512xf32> to vector<1x8x512xf32>
    %414 = vector.shape_cast %413 : vector<1x8x512xf32> to vector<8x512xf32>
    %415 = arith.truncf %412 : vector<8x128xf32> to vector<8x128xbf16>
    %cst_71 = arith.constant dense<0.000000e+00> : vector<8x512xf32>
    %416 = tpu.matmul %415, %253, %cst_71 {dimension_numbers = #tpu.dot_dimension_numbers<[1], [0], [0], [1], [0, 0, 1, 1], [], []>} : vector<8x128xbf16>, vector<128x512xbf16>, vector<8x512xf32> -> vector<8x512xf32>
    %417 = arith.addf %414, %416 : vector<8x512xf32>
    %418 = vector.extract_strided_slice %417 {offsets = [0, 0], sizes = [8, 128], strides = [1, 1]} : vector<8x512xf32> to vector<8x128xf32>
    %419 = arith.negf %418 : vector<8x128xf32>
    %420 = math.exp %419 : vector<8x128xf32>
    %cst_72 = arith.constant 1.000000e+00 : f32
    %421 = vector.broadcast %cst_72 : f32 to vector<8x128xf32>
    %422 = arith.addf %421, %420 : vector<8x128xf32>
    %423 = arith.divf %421, %422 : vector<8x128xf32>
    %424 = vector.extract_strided_slice %417 {offsets = [0, 128], sizes = [8, 128], strides = [1, 1]} : vector<8x512xf32> to vector<8x128xf32>
    %425 = arith.negf %424 : vector<8x128xf32>
    %426 = math.exp %425 : vector<8x128xf32>
    %cst_73 = arith.constant 1.000000e+00 : f32
    %427 = vector.broadcast %cst_73 : f32 to vector<8x128xf32>
    %428 = arith.addf %427, %426 : vector<8x128xf32>
    %429 = arith.divf %427, %428 : vector<8x128xf32>
    %430 = vector.extract_strided_slice %417 {offsets = [0, 256], sizes = [8, 128], strides = [1, 1]} : vector<8x512xf32> to vector<8x128xf32>
    %431 = math.tanh %430 : vector<8x128xf32>
    %432 = vector.extract_strided_slice %417 {offsets = [0, 384], sizes = [8, 128], strides = [1, 1]} : vector<8x512xf32> to vector<8x128xf32>
    %433 = arith.negf %432 : vector<8x128xf32>
    %434 = math.exp %433 : vector<8x128xf32>
    %cst_74 = arith.constant 1.000000e+00 : f32
    %435 = vector.broadcast %cst_74 : f32 to vector<8x128xf32>
    %436 = arith.addf %435, %434 : vector<8x128xf32>
    %437 = arith.divf %435, %436 : vector<8x128xf32>
    %438 = arith.mulf %429, %410 : vector<8x128xf32>
    %439 = arith.mulf %423, %431 : vector<8x128xf32>
    %440 = arith.addf %438, %439 : vector<8x128xf32>
    %441 = math.tanh %440 : vector<8x128xf32>
    %442 = arith.mulf %437, %441 : vector<8x128xf32>
    %443 = vector.extract_strided_slice %260 {offsets = [6, 0, 0], sizes = [1, 8, 512], strides = [1, 1, 1]} : vector<8x8x512xf32> to vector<1x8x512xf32>
    %444 = vector.shape_cast %443 : vector<1x8x512xf32> to vector<8x512xf32>
    %445 = arith.truncf %442 : vector<8x128xf32> to vector<8x128xbf16>
    %cst_75 = arith.constant dense<0.000000e+00> : vector<8x512xf32>
    %446 = tpu.matmul %445, %253, %cst_75 {dimension_numbers = #tpu.dot_dimension_numbers<[1], [0], [0], [1], [0, 0, 1, 1], [], []>} : vector<8x128xbf16>, vector<128x512xbf16>, vector<8x512xf32> -> vector<8x512xf32>
    %447 = arith.addf %444, %446 : vector<8x512xf32>
    %448 = vector.extract_strided_slice %447 {offsets = [0, 0], sizes = [8, 128], strides = [1, 1]} : vector<8x512xf32> to vector<8x128xf32>
    %449 = arith.negf %448 : vector<8x128xf32>
    %450 = math.exp %449 : vector<8x128xf32>
    %cst_76 = arith.constant 1.000000e+00 : f32
    %451 = vector.broadcast %cst_76 : f32 to vector<8x128xf32>
    %452 = arith.addf %451, %450 : vector<8x128xf32>
    %453 = arith.divf %451, %452 : vector<8x128xf32>
    %454 = vector.extract_strided_slice %447 {offsets = [0, 128], sizes = [8, 128], strides = [1, 1]} : vector<8x512xf32> to vector<8x128xf32>
    %455 = arith.negf %454 : vector<8x128xf32>
    %456 = math.exp %455 : vector<8x128xf32>
    %cst_77 = arith.constant 1.000000e+00 : f32
    %457 = vector.broadcast %cst_77 : f32 to vector<8x128xf32>
    %458 = arith.addf %457, %456 : vector<8x128xf32>
    %459 = arith.divf %457, %458 : vector<8x128xf32>
    %460 = vector.extract_strided_slice %447 {offsets = [0, 256], sizes = [8, 128], strides = [1, 1]} : vector<8x512xf32> to vector<8x128xf32>
    %461 = math.tanh %460 : vector<8x128xf32>
    %462 = vector.extract_strided_slice %447 {offsets = [0, 384], sizes = [8, 128], strides = [1, 1]} : vector<8x512xf32> to vector<8x128xf32>
    %463 = arith.negf %462 : vector<8x128xf32>
    %464 = math.exp %463 : vector<8x128xf32>
    %cst_78 = arith.constant 1.000000e+00 : f32
    %465 = vector.broadcast %cst_78 : f32 to vector<8x128xf32>
    %466 = arith.addf %465, %464 : vector<8x128xf32>
    %467 = arith.divf %465, %466 : vector<8x128xf32>
    %468 = arith.mulf %459, %440 : vector<8x128xf32>
    %469 = arith.mulf %453, %461 : vector<8x128xf32>
    %470 = arith.addf %468, %469 : vector<8x128xf32>
    %471 = math.tanh %470 : vector<8x128xf32>
    %472 = arith.mulf %467, %471 : vector<8x128xf32>
    %473 = vector.extract_strided_slice %260 {offsets = [7, 0, 0], sizes = [1, 8, 512], strides = [1, 1, 1]} : vector<8x8x512xf32> to vector<1x8x512xf32>
    %474 = vector.shape_cast %473 : vector<1x8x512xf32> to vector<8x512xf32>
    %475 = arith.truncf %472 : vector<8x128xf32> to vector<8x128xbf16>
    %cst_79 = arith.constant dense<0.000000e+00> : vector<8x512xf32>
    %476 = tpu.matmul %475, %253, %cst_79 {dimension_numbers = #tpu.dot_dimension_numbers<[1], [0], [0], [1], [0, 0, 1, 1], [], []>} : vector<8x128xbf16>, vector<128x512xbf16>, vector<8x512xf32> -> vector<8x512xf32>
    %477 = arith.addf %474, %476 : vector<8x512xf32>
    %478 = vector.extract_strided_slice %477 {offsets = [0, 0], sizes = [8, 128], strides = [1, 1]} : vector<8x512xf32> to vector<8x128xf32>
    %479 = arith.negf %478 : vector<8x128xf32>
    %480 = math.exp %479 : vector<8x128xf32>
    %cst_80 = arith.constant 1.000000e+00 : f32
    %481 = vector.broadcast %cst_80 : f32 to vector<8x128xf32>
    %482 = arith.addf %481, %480 : vector<8x128xf32>
    %483 = arith.divf %481, %482 : vector<8x128xf32>
    %484 = vector.extract_strided_slice %477 {offsets = [0, 128], sizes = [8, 128], strides = [1, 1]} : vector<8x512xf32> to vector<8x128xf32>
    %485 = arith.negf %484 : vector<8x128xf32>
    %486 = math.exp %485 : vector<8x128xf32>
    %cst_81 = arith.constant 1.000000e+00 : f32
    %487 = vector.broadcast %cst_81 : f32 to vector<8x128xf32>
    %488 = arith.addf %487, %486 : vector<8x128xf32>
    %489 = arith.divf %487, %488 : vector<8x128xf32>
    %490 = vector.extract_strided_slice %477 {offsets = [0, 256], sizes = [8, 128], strides = [1, 1]} : vector<8x512xf32> to vector<8x128xf32>
    %491 = math.tanh %490 : vector<8x128xf32>
    %492 = vector.extract_strided_slice %477 {offsets = [0, 384], sizes = [8, 128], strides = [1, 1]} : vector<8x512xf32> to vector<8x128xf32>
    %493 = arith.negf %492 : vector<8x128xf32>
    %494 = math.exp %493 : vector<8x128xf32>
    %cst_82 = arith.constant 1.000000e+00 : f32
    %495 = vector.broadcast %cst_82 : f32 to vector<8x128xf32>
    %496 = arith.addf %495, %494 : vector<8x128xf32>
    %497 = arith.divf %495, %496 : vector<8x128xf32>
    %498 = arith.mulf %489, %470 : vector<8x128xf32>
    %499 = arith.mulf %483, %491 : vector<8x128xf32>
    %500 = arith.addf %498, %499 : vector<8x128xf32>
    %501 = math.tanh %500 : vector<8x128xf32>
    %502 = arith.mulf %497, %501 : vector<8x128xf32>
    %503 = arith.truncf %502 : vector<8x128xf32> to vector<8x128xbf16>
    %c0_83 = arith.constant 0 : index
    %c0_84 = arith.constant 0 : index
    %504 = vector.load %arg8[%c0_83, %c0_84] : memref<128x128xbf16, #tpu.memory_space<vmem>>, vector<128x128xbf16>
    %cst_85 = arith.constant dense<0.000000e+00> : vector<8x128xf32>
    %505 = tpu.matmul %503, %504, %cst_85 {dimension_numbers = #tpu.dot_dimension_numbers<[1], [0], [0], [1], [0, 0, 1, 1], [], []>} : vector<8x128xbf16>, vector<128x128xbf16>, vector<8x128xf32> -> vector<8x128xf32>
    %c0_86 = arith.constant 0 : index
    %c0_87 = arith.constant 0 : index
    %506 = vector.load %arg9[%c0_86, %c0_87] : memref<1x128xf32, #tpu.memory_space<vmem>>, vector<1x128xf32>
    %507 = vector.broadcast %506 : vector<1x128xf32> to vector<8x128xf32>
    %508 = arith.addf %505, %507 : vector<8x128xf32>
    %cst_88 = arith.constant 0.000000e+00 : f32
    %509 = vector.broadcast %cst_88 : f32 to vector<8x128xf32>
    %510 = arith.maximumf %508, %509 : vector<8x128xf32>
    %511 = arith.truncf %510 : vector<8x128xf32> to vector<8x128xbf16>
    %c0_89 = arith.constant 0 : index
    %c0_90 = arith.constant 0 : index
    %512 = vector.load %arg10[%c0_89, %c0_90] : memref<128x128xbf16, #tpu.memory_space<vmem>>, vector<128x128xbf16>
    %cst_91 = arith.constant dense<0.000000e+00> : vector<8x128xf32>
    %513 = tpu.matmul %511, %512, %cst_91 {dimension_numbers = #tpu.dot_dimension_numbers<[1], [0], [0], [1], [0, 0, 1, 1], [], []>} : vector<8x128xbf16>, vector<128x128xbf16>, vector<8x128xf32> -> vector<8x128xf32>
    %c0_92 = arith.constant 0 : index
    %c0_93 = arith.constant 0 : index
    %514 = vector.load %arg11[%c0_92, %c0_93] : memref<1x128xf32, #tpu.memory_space<vmem>>, vector<1x128xf32>
    %515 = vector.broadcast %514 : vector<1x128xf32> to vector<8x128xf32>
    %516 = arith.addf %513, %515 : vector<8x128xf32>
    %c0_94 = arith.constant 0 : index
    %c0_95 = arith.constant 0 : index
    %517 = vector.load %arg12[%c0_94, %c0_95] : memref<8x128xf32, #tpu.memory_space<vmem>>, vector<8x128xf32>
    tpu.vector_store %arg12[%c0_94, %c0_95], %516 {strides = array<i32>} : memref<8x128xf32, #tpu.memory_space<vmem>>, vector<8x128xf32>,
    return
  }
  func.func @transform_0(%arg0: i32) -> (i32, i32, i32) {
    %c0_i32 = arith.constant 0 : i32
    %c0_i32_0 = arith.constant 0 : i32
    %c0_i32_1 = arith.constant 0 : i32
    return %c0_i32, %arg0, %c0_i32_0 : i32, i32, i32
  }
  func.func @transform_1(%arg0: i32) -> (i32, i32) {
    %c0_i32 = arith.constant 0 : i32
    %c0_i32_0 = arith.constant 0 : i32
    %c0_i32_1 = arith.constant 0 : i32
    return %c0_i32, %c0_i32_0 : i32, i32
  }
  func.func @transform_2(%arg0: i32) -> (i32, i32) {
    %c0_i32 = arith.constant 0 : i32
    %c0_i32_0 = arith.constant 0 : i32
    %c0_i32_1 = arith.constant 0 : i32
    return %c0_i32, %c0_i32_0 : i32, i32
  }
  func.func @transform_3(%arg0: i32) -> (i32, i32) {
    %c0_i32 = arith.constant 0 : i32
    %c0_i32_0 = arith.constant 0 : i32
    %c0_i32_1 = arith.constant 0 : i32
    return %c0_i32, %c0_i32_0 : i32, i32
  }
  func.func @transform_4(%arg0: i32) -> (i32, i32) {
    %c0_i32 = arith.constant 0 : i32
    %c0_i32_0 = arith.constant 0 : i32
    %c0_i32_1 = arith.constant 0 : i32
    return %c0_i32, %c0_i32_0 : i32, i32
  }
  func.func @transform_5(%arg0: i32) -> (i32, i32) {
    %c0_i32 = arith.constant 0 : i32
    %c0_i32_0 = arith.constant 0 : i32
    %c0_i32_1 = arith.constant 0 : i32
    return %c0_i32, %c0_i32_0 : i32, i32
  }
  func.func @transform_6(%arg0: i32) -> (i32, i32) {
    %c0_i32 = arith.constant 0 : i32
    %c0_i32_0 = arith.constant 0 : i32
    %c0_i32_1 = arith.constant 0 : i32
    return %c0_i32, %c0_i32_0 : i32, i32
  }
  func.func @transform_7(%arg0: i32) -> (i32, i32) {
    %c0_i32 = arith.constant 0 : i32
    %c0_i32_0 = arith.constant 0 : i32
    %c0_i32_1 = arith.constant 0 : i32
    return %c0_i32, %c0_i32_0 : i32, i32
  }
  func.func @transform_8(%arg0: i32) -> (i32, i32) {
    %c0_i32 = arith.constant 0 : i32
    %c0_i32_0 = arith.constant 0 : i32
    %c0_i32_1 = arith.constant 0 : i32
    return %c0_i32, %c0_i32_0 : i32, i32
  }
  func.func @transform_9(%arg0: i32) -> (i32, i32) {
    %c0_i32 = arith.constant 0 : i32
    %c0_i32_0 = arith.constant 0 : i32
    %c0_i32_1 = arith.constant 0 : i32
    return %c0_i32, %c0_i32_0 : i32, i32
  }
  func.func @transform_10(%arg0: i32) -> (i32, i32) {
    %c0_i32 = arith.constant 0 : i32
    %c0_i32_0 = arith.constant 0 : i32
    %c0_i32_1 = arith.constant 0 : i32
    return %c0_i32, %c0_i32_0 : i32, i32
  }
  func.func @transform_11(%arg0: i32) -> (i32, i32) {
    %c0_i32 = arith.constant 0 : i32
    %c0_i32_0 = arith.constant 0 : i32
    return %arg0, %c0_i32 : i32, i32
  }
}

</mosaic_0001>

<llo_original>
// kernel: neural_network_lstm_forward.1
$region0: #{neural_network_lstm_forward.1}
  #allocation0 [shape = 'u32[]', space=smem, size = 0x4, offset = 0x4, fixed_abs, tag = 'smem constant byte address 0x4 - core index']
  #allocation1 [shape = 'u32[144,128]{1,0:T(1,128)}', space=vmem, size = 0x12000, scoped, tag = 'internal scratch']
  %s0 = inlined_call_operand.vmem [shape: f32[8,8,16], index: 0, kind: input, shape index: {}]
  %s1 = inlined_call_operand.hbm [shape: bf16[16,512], index: 1, kind: input, shape index: {}]
  %s2 = inlined_call_operand.hbm [shape: bf16[128,512], index: 2, kind: input, shape index: {}]
  %s3 = inlined_call_operand.hbm [shape: f32[1,512], index: 3, kind: input, shape index: {}]
  %s4 = inlined_call_operand.hbm [shape: bf16[128,512], index: 4, kind: input, shape index: {}]
  %s5 = inlined_call_operand.hbm [shape: bf16[128,512], index: 5, kind: input, shape index: {}]
  %s6 = inlined_call_operand.hbm [shape: f32[1,512], index: 6, kind: input, shape index: {}]
  %s7 = inlined_call_operand.vmem [shape: bf16[128,128], index: 7, kind: input, shape index: {}]
  %s8 = inlined_call_operand.vmem [shape: f32[1,128], index: 8, kind: input, shape index: {}]
  %s9 = inlined_call_operand.vmem [shape: bf16[128,128], index: 9, kind: input, shape index: {}]
  %s10 = inlined_call_operand.vmem [shape: f32[1,128], index: 10, kind: input, shape index: {}]
  %s11 = inlined_call_operand.vmem [shape: f32[8,128], index: 11, kind: output, shape index: {}]
  %s12 = sld [smem:[#allocation0]]
  $region78: #{neural_network_lstm_forward.1} parent=0
    _
  %s14 = ssub.s32 1, %s12
  %s15 = scalar_select 0, %s14, %s12
  $region1: #{neural_network_lstm_forward.1} parent=0
    #allocation2 [shape = 'u8[16384]{0}', space=vmem, size = 0x4000, scoped, tag = 'input window, operand 1, single buffered']
    #allocation3 [shape = 's32[1]{0}', space=sflag, size = 0x4, scoped, tag = 'scoped memory for neural_network_lstm_forward.1']
    #allocation4 [shape = 'u8[131072]{0}', space=vmem, size = 0x20000, scoped, tag = 'input window, operand 2, single buffered']
    #allocation5 [shape = 's32[1]{0}', space=sflag, size = 0x4, scoped, tag = 'scoped memory for neural_network_lstm_forward.1']
    #allocation6 [shape = 'u8[2048]{0}', space=vmem, size = 0x800, scoped, tag = 'input window, operand 3, single buffered']
    #allocation7 [shape = 'u8[131072]{0}', space=vmem, size = 0x20000, scoped, tag = 'input window, operand 4, single buffered']
    #allocation8 [shape = 's32[1]{0}', space=sflag, size = 0x4, scoped, tag = 'scoped memory for neural_network_lstm_forward.1']
    #allocation9 [shape = 'u8[131072]{0}', space=vmem, size = 0x20000, scoped, tag = 'input window, operand 5, single buffered']
    #allocation10 [shape = 'u8[2048]{0}', space=vmem, size = 0x800, scoped, tag = 'input window, operand 6, single buffered']
    #allocation11 [shape = 's32[1]{0}', space=sflag, size = 0x4, scoped, tag = 'scoped memory for neural_network_lstm_forward.1']
    %16 = vsyncpa [#allocation3], 0
    %17 = vsyncpa [#allocation5], 0
    %18 = vsyncpa [#allocation8], 0
    %19 = vsyncpa [#allocation11], 0
    // Predicated region
    $region2: #{neural_network_lstm_forward.1} parent=1 // pred_check
      _
    $region3: #{neural_network_lstm_forward.1} parent=1 // pred_check_branch
      %21 = sbr.rel (0) target = $region5
    $region4: #{neural_network_lstm_forward.1} parent=1 // pred_region
      _
    $region5: #{neural_network_lstm_forward.1} parent=1 // pred_fallthru
      _
    // Predicated region
    $region6: #{neural_network_lstm_forward.1} parent=1 // pred_check
      _
    $region7: #{neural_network_lstm_forward.1} parent=1 // pred_check_branch
      %23 = sbr.rel (0) target = $region9
    $region8: #{neural_network_lstm_forward.1} parent=1 // pred_region
      %s25 = ssub.s32 512, 512
      %26 = vsyncadd [#allocation3], %s25
      %s27 = sshll.u32 [#allocation2], 4
      %s28 = int_to_ptr.vmem [resolvable:$true] %s27
      %33 = dma.hbm_to_vmem [thread:$0]  %s1, 512, %s28, [#allocation3], 256, 256, 16
    $region9: #{neural_network_lstm_forward.1} parent=1 // pred_fallthru
      _
    // Predicated region
    $region10: #{neural_network_lstm_forward.1} parent=1 // pred_check
      _
    $region11: #{neural_network_lstm_forward.1} parent=1 // pred_check_branch
      %35 = sbr.rel (0) target = $region13
    $region12: #{neural_network_lstm_forward.1} parent=1 // pred_region
      %s37 = ssub.s32 4096, 4096
      %38 = vsyncadd [#allocation5], %s37
      %s39 = sshll.u32 [#allocation4], 4
      %s40 = int_to_ptr.vmem [resolvable:$true] %s39
      %45 = dma.hbm_to_vmem [thread:$0]  %s2, 4096, %s40, [#allocation5], 256, 256, 16
    $region13: #{neural_network_lstm_forward.1} parent=1 // pred_fallthru
      _
    // Predicated region
    $region14: #{neural_network_lstm_forward.1} parent=1 // pred_check
      _
    $region15: #{neural_network_lstm_forward.1} parent=1 // pred_check_branch
      %47 = sbr.rel (0) target = $region17
    $region16: #{neural_network_lstm_forward.1} parent=1 // pred_region
      %s49 = ssub.s32 64, 64
      %50 = vsyncadd [#allocation5], %s49
      %s52 = sshll.u32 [#allocation6], 4
      %s53 = int_to_ptr.vmem [resolvable:$true] %s52
      %55 = dma.hbm_to_vmem [thread:$0]  %s3, 64, %s53, [#allocation5]
    $region17: #{neural_network_lstm_forward.1} parent=1 // pred_fallthru
      _
    // Predicated region
    $region18: #{neural_network_lstm_forward.1} parent=1 // pred_check
      _
    $region19: #{neural_network_lstm_forward.1} parent=1 // pred_check_branch
      %57 = sbr.rel (0) target = $region21
    $region20: #{neural_network_lstm_forward.1} parent=1 // pred_region
      %s59 = ssub.s32 4096, 4096
      %60 = vsyncadd [#allocation8], %s59
      %s61 = sshll.u32 [#allocation7], 4
      %s62 = int_to_ptr.vmem [resolvable:$true] %s61
      %67 = dma.hbm_to_vmem [thread:$0]  %s4, 4096, %s62, [#allocation8], 256, 256, 16
    $region21: #{neural_network_lstm_forward.1} parent=1 // pred_fallthru
      _
    // Predicated region
    $region22: #{neural_network_lstm_forward.1} parent=1 // pred_check
      _
    $region23: #{neural_network_lstm_forward.1} parent=1 // pred_check_branch
      %69 = sbr.rel (0) target = $region25
    $region24: #{neural_network_lstm_forward.1} parent=1 // pred_region
      %s71 = ssub.s32 4096, 4096
      %72 = vsyncadd [#allocation8], %s71
      %s73 = sshll.u32 [#allocation9], 4
      %s74 = int_to_ptr.vmem [resolvable:$true] %s73
      %79 = dma.hbm_to_vmem [thread:$0]  %s5, 4096, %s74, [#allocation8], 256, 256, 16
    $region25: #{neural_network_lstm_forward.1} parent=1 // pred_fallthru
      _
    // Predicated region
    $region26: #{neural_network_lstm_forward.1} parent=1 // pred_check
      _
    $region27: #{neural_network_lstm_forward.1} parent=1 // pred_check_branch
      %81 = sbr.rel (0) target = $region29
    $region28: #{neural_network_lstm_forward.1} parent=1 // pred_region
      %s83 = ssub.s32 64, 64
      %84 = vsyncadd [#allocation11], %s83
      %s86 = sshll.u32 [#allocation10], 4
      %s87 = int_to_ptr.vmem [resolvable:$true] %s86
      %89 = dma.hbm_to_vmem [thread:$0]  %s6, 64, %s87, [#allocation11]
    $region29: #{neural_network_lstm_forward.1} parent=1 // pred_fallthru
      _
    // Predicated region
    $region30: #{neural_network_lstm_forward.1} parent=1 // pred_check
      _
    $region31: #{neural_network_lstm_forward.1} parent=1 // pred_check_branch
      %91 = sbr.rel (0) target = $region33
    $region32: #{neural_network_lstm_forward.1} parent=1 // pred_region
      _
    $region33: #{neural_network_lstm_forward.1} parent=1 // pred_fallthru
      _
    // Predicated region
    $region34: #{neural_network_lstm_forward.1} parent=1 // pred_check
      _
    $region35: #{neural_network_lstm_forward.1} parent=1 // pred_check_branch
      %93 = sbr.rel (0) target = $region37
    $region36: #{neural_network_lstm_forward.1} parent=1 // pred_region
      _
    $region37: #{neural_network_lstm_forward.1} parent=1 // pred_fallthru
      _
    // Predicated region
    $region38: #{neural_network_lstm_forward.1} parent=1 // pred_check
      _
    $region39: #{neural_network_lstm_forward.1} parent=1 // pred_check_branch
      %95 = sbr.rel (0) target = $region41
    $region40: #{neural_network_lstm_forward.1} parent=1 // pred_region
      _
    $region41: #{neural_network_lstm_forward.1} parent=1 // pred_fallthru
      _
    // Predicated region
    $region42: #{neural_network_lstm_forward.1} parent=1 // pred_check
      _
    $region43: #{neural_network_lstm_forward.1} parent=1 // pred_check_branch
      %97 = sbr.rel (0) target = $region45
    $region44: #{neural_network_lstm_forward.1} parent=1 // pred_region
      _
    $region45: #{neural_network_lstm_forward.1} parent=1 // pred_fallthru
      _
    // Predicated region
    $region46: #{neural_network_lstm_forward.1} parent=1 // pred_check
      _
    $region47: #{neural_network_lstm_forward.1} parent=1 // pred_check_branch
      %99 = sbr.rel (0) target = $region49
    $region48: #{neural_network_lstm_forward.1} parent=1 // pred_region
      %100 = dma.done [#allocation3], 512
    $region49: #{neural_network_lstm_forward.1} parent=1 // pred_fallthru
      _
    // Predicated region
    $region50: #{neural_network_lstm_forward.1} parent=1 // pred_check
      _
    $region51: #{neural_network_lstm_forward.1} parent=1 // pred_check_branch
      %102 = sbr.rel (0) target = $region53
    $region52: #{neural_network_lstm_forward.1} parent=1 // pred_region
      %103 = dma.done [#allocation5], 4096
    $region53: #{neural_network_lstm_forward.1} parent=1 // pred_fallthru
      _
    // Predicated region
    $region54: #{neural_network_lstm_forward.1} parent=1 // pred_check
      _
    $region55: #{neural_network_lstm_forward.1} parent=1 // pred_check_branch
      %105 = sbr.rel (0) target = $region57
    $region56: #{neural_network_lstm_forward.1} parent=1 // pred_region
      %106 = dma.done [#allocation5], 64
    $region57: #{neural_network_lstm_forward.1} parent=1 // pred_fallthru
      _
    // Predicated region
    $region58: #{neural_network_lstm_forward.1} parent=1 // pred_check
      _
    $region59: #{neural_network_lstm_forward.1} parent=1 // pred_check_branch
      %108 = sbr.rel (0) target = $region61
    $region60: #{neural_network_lstm_forward.1} parent=1 // pred_region
      %109 = dma.done [#allocation8], 4096
    $region61: #{neural_network_lstm_forward.1} parent=1 // pred_fallthru
      _
    // Predicated region
    $region62: #{neural_network_lstm_forward.1} parent=1 // pred_check
      _
    $region63: #{neural_network_lstm_forward.1} parent=1 // pred_check_branch
      %111 = sbr.rel (0) target = $region65
    $region64: #{neural_network_lstm_forward.1} parent=1 // pred_region
      %112 = dma.done [#allocation8], 4096
    $region65: #{neural_network_lstm_forward.1} parent=1 // pred_fallthru
      _
    // Predicated region
    $region66: #{neural_network_lstm_forward.1} parent=1 // pred_check
      _
    $region67: #{neural_network_lstm_forward.1} parent=1 // pred_check_branch
      %114 = sbr.rel (0) target = $region69
    $region68: #{neural_network_lstm_forward.1} parent=1 // pred_region
      %115 = dma.done [#allocation11], 64
    $region69: #{neural_network_lstm_forward.1} parent=1 // pred_fallthru
      _
    %v117 = vld [vmem:[#allocation2] sm:$0xff]
    %v118 = vld [vmem:[#allocation2 + $0x8] sm:$0xff]
    %v119 = vld [vmem:[#allocation2 + $0x10] sm:$0xff]
    %v120 = vld [vmem:[#allocation2 + $0x18] sm:$0xff]
    %v121 = vld [vmem:[#allocation4] sm:$0xff]
    %v122 = vld [vmem:[#allocation4 + $0x8] sm:$0xff]
    %v123 = vld [vmem:[#allocation4 + $0x10] sm:$0xff]
    %v124 = vld [vmem:[#allocation4 + $0x18] sm:$0xff]
    %v125 = vld [vmem:[#allocation4 + $0x20] sm:$0xff]
    %v126 = vld [vmem:[#allocation4 + $0x28] sm:$0xff]
    %v127 = vld [vmem:[#allocation4 + $0x30] sm:$0xff]
    %v128 = vld [vmem:[#allocation4 + $0x38] sm:$0xff]
    %v129 = vld [vmem:[#allocation4 + $0x40] sm:$0xff]
    %v130 = vld [vmem:[#allocation4 + $0x48] sm:$0xff]
    %v131 = vld [vmem:[#allocation4 + $0x50] sm:$0xff]
    %v132 = vld [vmem:[#allocation4 + $0x58] sm:$0xff]
    %v133 = vld [vmem:[#allocation4 + $0x60] sm:$0xff]
    %v134 = vld [vmem:[#allocation4 + $0x68] sm:$0xff]
    %v135 = vld [vmem:[#allocation4 + $0x70] sm:$0xff]
    %v136 = vld [vmem:[#allocation4 + $0x78] sm:$0xff]
    %v137 = vld [vmem:[#allocation4 + $0x80] sm:$0xff]
    %v138 = vld [vmem:[#allocation4 + $0x88] sm:$0xff]
    %v139 = vld [vmem:[#allocation4 + $0x90] sm:$0xff]
    %v140 = vld [vmem:[#allocation4 + $0x98] sm:$0xff]
    %v141 = vld [vmem:[#allocation4 + $0xa0] sm:$0xff]
    %v142 = vld [vmem:[#allocation4 + $0xa8] sm:$0xff]
    %v143 = vld [vmem:[#allocation4 + $0xb0] sm:$0xff]
    %v144 = vld [vmem:[#allocation4 + $0xb8] sm:$0xff]
    %v145 = vld [vmem:[#allocation4 + $0xc0] sm:$0xff]
    %v146 = vld [vmem:[#allocation4 + $0xc8] sm:$0xff]
    %v147 = vld [vmem:[#allocation4 + $0xd0] sm:$0xff]
    %v148 = vld [vmem:[#allocation4 + $0xd8] sm:$0xff]
    %v149 = vld [vmem:[#allocation4 + $0xe0] sm:$0xff]
    %v150 = vld [vmem:[#allocation4 + $0xe8] sm:$0xff]
    %v151 = vld [vmem:[#allocation4 + $0xf0] sm:$0xff]
    %v152 = vld [vmem:[#allocation4 + $0xf8] sm:$0xff]
    %v153 = vld [vmem:[#allocation6] sm:$0xf]
    %v154 = vld [vmem:[%s0] sm:$0xff]
    %v155 = vld [vmem:[%s0 + $0x8] sm:$0xff]
    %v156 = vld [vmem:[%s0 + $0x10] sm:$0xff]
    %v157 = vld [vmem:[%s0 + $0x18] sm:$0xff]
    %v158 = vld [vmem:[%s0 + $0x20] sm:$0xff]
    %v159 = vld [vmem:[%s0 + $0x28] sm:$0xff]
    %v160 = vld [vmem:[%s0 + $0x30] sm:$0xff]
    %v161 = vld [vmem:[%s0 + $0x38] sm:$0xff]
    %v162 = vpack.c.bf16 %v155, %v154
    %v163 = vpack.c.bf16 %v157, %v156
    %v164 = vpack.c.bf16 %v159, %v158
    %v165 = vpack.c.bf16 %v161, %v160
    %v167 = vlaneseq
    %v168 = vshrl.u32 %v167, 7
    %v169 = vsub.s32 0, %v168
    %v170 = vrot.slane %v153, %v169
    %v171 = vlaneseq
    %v172 = vshrl.u32 %v171, 7
    %v173 = vsub.s32 1, %v172
    %v174 = vrot.slane %v153, %v173
    %v175 = vlaneseq
    %v176 = vshrl.u32 %v175, 7
    %v177 = vsub.s32 2, %v176
    %v178 = vrot.slane %v153, %v177
    %v179 = vlaneseq
    %v180 = vshrl.u32 %v179, 7
    %v181 = vsub.s32 3, %v180
    %v182 = vrot.slane %v153, %v181
    %v191 = vunpack.c.l.b16 %v117
    %v192 = vunpack.c.h.b16 %v117
    %v193 = vunpack.c.l.b16 %v118
    %v194 = vunpack.c.h.b16 %v118
    %v195 = vunpack.c.l.b16 %v119
    %v196 = vunpack.c.h.b16 %v119
    %v197 = vunpack.c.l.b16 %v120
    %v198 = vunpack.c.h.b16 %v120
    %v199 = vpack.c.b16 %v195, %v191
    %v200 = vpack.c.b16 %v196, %v192
    %v201 = vpack.c.b16 %v197, %v193
    %v202 = vpack.c.b16 %v198, %v194
    %vm207 = vcmask 130048
    %v209 = vsel %vm207, %v162, 0
    %v212 = vsel %vm207, %v163, 0
    %v215 = vsel %vm207, %v164, 0
    %v218 = vsel %vm207, %v165, 0
    %220 = vmatprep.subr.bf16.mxu0 %v200
    %221 = vmatpush1.bf16.msra.mxu0 %v199
    %222 = vmatprep.subr.bf16.mxu0 0
    %223 = vmatpush1.bf16.msra.mxu0 0
    %224 = vmatprep.subr.bf16.mxu0 0
    %225 = vmatpush1.bf16.msra.mxu0 0
    %226 = vmatprep.subr.bf16.mxu0 0
    %227 = vmatpush1.bf16.msra.mxu0 0
    %228 = vmatprep.subr.bf16.mxu0 0
    %229 = vmatpush1.bf16.msra.mxu0 0
    %230 = vmatprep.subr.bf16.mxu0 0
    %231 = vmatpush1.bf16.msra.mxu0 0
    %232 = vmatprep.subr.bf16.mxu0 0
    %233 = vmatpush1.bf16.msra.mxu0 0
    %234 = vmatprep.subr.bf16.mxu0 0
    %235 = vmatpush1.bf16.msra.mxu0 0
    %236 = vmatprep.subr.bf16.mxu0 0
    %237 = vmatpush1.bf16.msra.mxu0 0
    %238 = vmatprep.subr.bf16.mxu0 0
    %239 = vmatpush1.bf16.msra.mxu0 0
    %240 = vmatprep.subr.bf16.mxu0 0
    %241 = vmatpush1.bf16.msra.mxu0 0
    %242 = vmatprep.subr.bf16.mxu0 0
    %243 = vmatpush1.bf16.msra.mxu0 0
    %244 = vmatprep.subr.bf16.mxu0 0
    %245 = vmatpush1.bf16.msra.mxu0 0
    %246 = vmatprep.subr.bf16.mxu0 0
    %247 = vmatpush1.bf16.msra.mxu0 0
    %248 = vmatprep.subr.bf16.mxu0 0
    %249 = vmatpush1.bf16.msra.mxu0 0
    %250 = vmatprep.subr.bf16.mxu0 0
    %251 = vmatpush1.bf16.msra.mxu0 0
    %252 = vmatprep.mubr.bf16.mxu0 0
    %253 = vmatmul.mubr.bf16.gmra.mrb[0].mxu0 %v209
    %v254 = vpop.f32.mrb[0].mxu0
    %v255 = vadd.f32 %v170, %v254
    %v256 = vpop.f32.mrb[0].mxu0
    %v257 = vadd.f32 %v174, %v256
    %v258 = vpop.f32.mrb[0].mxu0
    %v259 = vadd.f32 %v170, %v258
    %v260 = vpop.f32.mrb[0].mxu0
    %v261 = vadd.f32 %v174, %v260
    %262 = vmatprep.mubr.bf16.mxu0 0
    %263 = vmatmul.mubr.bf16.gmra.mrb[0].mxu0 %v212
    %v264 = vpop.f32.mrb[0].mxu0
    %v265 = vadd.f32 %v170, %v264
    %v266 = vpop.f32.mrb[0].mxu0
    %v267 = vadd.f32 %v174, %v266
    %v268 = vpop.f32.mrb[0].mxu0
    %v269 = vadd.f32 %v170, %v268
    %v270 = vpop.f32.mrb[0].mxu0
    %v271 = vadd.f32 %v174, %v270
    %272 = vmatprep.mubr.bf16.mxu0 0
    %273 = vmatmul.mubr.bf16.gmra.mrb[0].mxu0 %v215
    %v274 = vpop.f32.mrb[0].mxu0
    %v275 = vadd.f32 %v170, %v274
    %v276 = vpop.f32.mrb[0].mxu0
    %v277 = vadd.f32 %v174, %v276
    %v278 = vpop.f32.mrb[0].mxu0
    %v279 = vadd.f32 %v170, %v278
    %v280 = vpop.f32.mrb[0].mxu0
    %v281 = vadd.f32 %v174, %v280
    %282 = vmatprep.mubr.bf16.mxu0 0
    %283 = vmatmul.mubr.bf16.gmra.mrb[0].mxu0 %v218
    %v284 = vpop.f32.mrb[0].mxu0
    %v285 = vadd.f32 %v170, %v284
    %v286 = vpop.f32.mrb[0].mxu0
    %v287 = vadd.f32 %v174, %v286
    %v288 = vpop.f32.mrb[0].mxu0
    %v289 = vadd.f32 %v170, %v288
    %v290 = vpop.f32.mrb[0].mxu0
    %v291 = vadd.f32 %v174, %v290
    %292 = vdwg.mxu0
    %293 = vmatprep.subr.bf16.mxu0 %v202
    %294 = vmatpush1.bf16.msra.mxu0 %v201
    %295 = vmatprep.subr.bf16.mxu0 0
    %296 = vmatpush1.bf16.msra.mxu0 0
    %297 = vmatprep.subr.bf16.mxu0 0
    %298 = vmatpush1.bf16.msra.mxu0 0
    %299 = vmatprep.subr.bf16.mxu0 0
    %300 = vmatpush1.bf16.msra.mxu0 0
    %301 = vmatprep.subr.bf16.mxu0 0
    %302 = vmatpush1.bf16.msra.mxu0 0
    %303 = vmatprep.subr.bf16.mxu0 0
    %304 = vmatpush1.bf16.msra.mxu0 0
    %305 = vmatprep.subr.bf16.mxu0 0
    %306 = vmatpush1.bf16.msra.mxu0 0
    %307 = vmatprep.subr.bf16.mxu0 0
    %308 = vmatpush1.bf16.msra.mxu0 0
    %309 = vmatprep.subr.bf16.mxu0 0
    %310 = vmatpush1.bf16.msra.mxu0 0
    %311 = vmatprep.subr.bf16.mxu0 0
    %312 = vmatpush1.bf16.msra.mxu0 0
    %313 = vmatprep.subr.bf16.mxu0 0
    %314 = vmatpush1.bf16.msra.mxu0 0
    %315 = vmatprep.subr.bf16.mxu0 0
    %316 = vmatpush1.bf16.msra.mxu0 0
    %317 = vmatprep.subr.bf16.mxu0 0
    %318 = vmatpush1.bf16.msra.mxu0 0
    %319 = vmatprep.subr.bf16.mxu0 0
    %320 = vmatpush1.bf16.msra.mxu0 0
    %321 = vmatprep.subr.bf16.mxu0 0
    %322 = vmatpush1.bf16.msra.mxu0 0
    %323 = vmatprep.subr.bf16.mxu0 0
    %324 = vmatpush1.bf16.msra.mxu0 0
    %325 = vmatprep.mubr.bf16.mxu0 0
    %326 = vmatmul.mubr.bf16.gmra.mrb[0].mxu0 %v209
    %v327 = vpop.f32.mrb[0].mxu0
    %v328 = vadd.f32 %v178, %v327
    %v329 = vpop.f32.mrb[0].mxu0
    %v330 = vadd.f32 %v182, %v329
    %v331 = vpop.f32.mrb[0].mxu0
    %v332 = vadd.f32 %v178, %v331
    %v333 = vpop.f32.mrb[0].mxu0
    %v334 = vadd.f32 %v182, %v333
    %335 = vmatprep.mubr.bf16.mxu0 0
    %336 = vmatmul.mubr.bf16.gmra.mrb[0].mxu0 %v212
    %v337 = vpop.f32.mrb[0].mxu0
    %v338 = vadd.f32 %v178, %v337
    %v339 = vpop.f32.mrb[0].mxu0
    %v340 = vadd.f32 %v182, %v339
    %v341 = vpop.f32.mrb[0].mxu0
    %v342 = vadd.f32 %v178, %v341
    %v343 = vpop.f32.mrb[0].mxu0
    %v344 = vadd.f32 %v182, %v343
    %345 = vmatprep.mubr.bf16.mxu0 0
    %346 = vmatmul.mubr.bf16.gmra.mrb[0].mxu0 %v215
    %v347 = vpop.f32.mrb[0].mxu0
    %v348 = vadd.f32 %v178, %v347
    %v349 = vpop.f32.mrb[0].mxu0
    %v350 = vadd.f32 %v182, %v349
    %v351 = vpop.f32.mrb[0].mxu0
    %v352 = vadd.f32 %v178, %v351
    %v353 = vpop.f32.mrb[0].mxu0
    %v354 = vadd.f32 %v182, %v353
    %355 = vmatprep.mubr.bf16.mxu0 0
    %356 = vmatmul.mubr.bf16.gmra.mrb[0].mxu0 %v218
    %v357 = vpop.f32.mrb[0].mxu0
    %v358 = vadd.f32 %v178, %v357
    %v359 = vpop.f32.mrb[0].mxu0
    %v360 = vadd.f32 %v182, %v359
    %v361 = vpop.f32.mrb[0].mxu0
    %v362 = vadd.f32 %v178, %v361
    %v363 = vpop.f32.mrb[0].mxu0
    %v364 = vadd.f32 %v182, %v363
    %365 = vdwg.mxu0
    %v398 = vunpack.c.l.b16 %v121
    %v399 = vunpack.c.h.b16 %v121
    %v400 = vunpack.c.l.b16 %v122
    %v401 = vunpack.c.h.b16 %v122
    %v402 = vunpack.c.l.b16 %v123
    %v403 = vunpack.c.h.b16 %v123
    %v404 = vunpack.c.l.b16 %v124
    %v405 = vunpack.c.h.b16 %v124
    %v406 = vunpack.c.l.b16 %v125
    %v407 = vunpack.c.h.b16 %v125
    %v408 = vunpack.c.l.b16 %v126
    %v409 = vunpack.c.h.b16 %v126
    %v410 = vunpack.c.l.b16 %v127
    %v411 = vunpack.c.h.b16 %v127
    %v412 = vunpack.c.l.b16 %v128
    %v413 = vunpack.c.h.b16 %v128
    %v414 = vunpack.c.l.b16 %v129
    %v415 = vunpack.c.h.b16 %v129
    %v416 = vunpack.c.l.b16 %v130
    %v417 = vunpack.c.h.b16 %v130
    %v418 = vunpack.c.l.b16 %v131
    %v419 = vunpack.c.h.b16 %v131
    %v420 = vunpack.c.l.b16 %v132
    %v421 = vunpack.c.h.b16 %v132
    %v422 = vunpack.c.l.b16 %v133
    %v423 = vunpack.c.h.b16 %v133
    %v424 = vunpack.c.l.b16 %v134
    %v425 = vunpack.c.h.b16 %v134
    %v426 = vunpack.c.l.b16 %v135
    %v427 = vunpack.c.h.b16 %v135
    %v428 = vunpack.c.l.b16 %v136
    %v429 = vunpack.c.h.b16 %v136
    %v430 = vunpack.c.l.b16 %v137
    %v431 = vunpack.c.h.b16 %v137
    %v432 = vunpack.c.l.b16 %v138
    %v433 = vunpack.c.h.b16 %v138
    %v434 = vunpack.c.l.b16 %v139
    %v435 = vunpack.c.h.b16 %v139
    %v436 = vunpack.c.l.b16 %v140
    %v437 = vunpack.c.h.b16 %v140
    %v438 = vunpack.c.l.b16 %v141
    %v439 = vunpack.c.h.b16 %v141
    %v440 = vunpack.c.l.b16 %v142
    %v441 = vunpack.c.h.b16 %v142
    %v442 = vunpack.c.l.b16 %v143
    %v443 = vunpack.c.h.b16 %v143
    %v444 = vunpack.c.l.b16 %v144
    %v445 = vunpack.c.h.b16 %v144
    %v446 = vunpack.c.l.b16 %v145
    %v447 = vunpack.c.h.b16 %v145
    %v448 = vunpack.c.l.b16 %v146
    %v449 = vunpack.c.h.b16 %v146
    %v450 = vunpack.c.l.b16 %v147
    %v451 = vunpack.c.h.b16 %v147
    %v452 = vunpack.c.l.b16 %v148
    %v453 = vunpack.c.h.b16 %v148
    %v454 = vunpack.c.l.b16 %v149
    %v455 = vunpack.c.h.b16 %v149
    %v456 = vunpack.c.l.b16 %v150
    %v457 = vunpack.c.h.b16 %v150
    %v458 = vunpack.c.l.b16 %v151
    %v459 = vunpack.c.h.b16 %v151
    %v460 = vunpack.c.l.b16 %v152
    %v461 = vunpack.c.h.b16 %v152
    %v462 = vpack.c.b16 %v402, %v398
    %v463 = vpack.c.b16 %v403, %v399
    %v464 = vpack.c.b16 %v404, %v400
    %v465 = vpack.c.b16 %v405, %v401
    %v466 = vpack.c.b16 %v410, %v406
    %v467 = vpack.c.b16 %v411, %v407
    %v468 = vpack.c.b16 %v412, %v408
    %v469 = vpack.c.b16 %v413, %v409
    %v470 = vpack.c.b16 %v418, %v414
    %v471 = vpack.c.b16 %v419, %v415
    %v472 = vpack.c.b16 %v420, %v416
    %v473 = vpack.c.b16 %v421, %v417
    %v474 = vpack.c.b16 %v426, %v422
    %v475 = vpack.c.b16 %v427, %v423
    %v476 = vpack.c.b16 %v428, %v424
    %v477 = vpack.c.b16 %v429, %v425
    %v478 = vpack.c.b16 %v434, %v430
    %v479 = vpack.c.b16 %v435, %v431
    %v480 = vpack.c.b16 %v436, %v432
    %v481 = vpack.c.b16 %v437, %v433
    %v482 = vpack.c.b16 %v442, %v438
    %v483 = vpack.c.b16 %v443, %v439
    %v484 = vpack.c.b16 %v444, %v440
    %v485 = vpack.c.b16 %v445, %v441
    %v486 = vpack.c.b16 %v450, %v446
    %v487 = vpack.c.b16 %v451, %v447
    %v488 = vpack.c.b16 %v452, %v448
    %v489 = vpack.c.b16 %v453, %v449
    %v490 = vpack.c.b16 %v458, %v454
    %v491 = vpack.c.b16 %v459, %v455
    %v492 = vpack.c.b16 %v460, %v456
    %v493 = vpack.c.b16 %v461, %v457
    %526 = vmatprep.subr.bf16.mxu0 %v463
    %527 = vmatpush1.bf16.msra.mxu0 %v462
    %528 = vmatprep.subr.bf16.mxu0 %v467
    %529 = vmatpush1.bf16.msra.mxu0 %v466
    %530 = vmatprep.subr.bf16.mxu0 %v471
    %531 = vmatpush1.bf16.msra.mxu0 %v470
    %532 = vmatprep.subr.bf16.mxu0 %v475
    %533 = vmatpush1.bf16.msra.mxu0 %v474
    %534 = vmatprep.subr.bf16.mxu0 %v479
    %535 = vmatpush1.bf16.msra.mxu0 %v478
    %536 = vmatprep.subr.bf16.mxu0 %v483
    %537 = vmatpush1.bf16.msra.mxu0 %v482
    %538 = vmatprep.subr.bf16.mxu0 %v487
    %539 = vmatpush1.bf16.msra.mxu0 %v486
    %540 = vmatprep.subr.bf16.mxu0 %v491
    %541 = vmatpush1.bf16.msra.mxu0 %v490
    %542 = vmatprep.subr.bf16.mxu0 0
    %543 = vmatpush1.bf16.msra.mxu0 0
    %544 = vmatprep.subr.bf16.mxu0 0
    %545 = vmatpush1.bf16.msra.mxu0 0
    %546 = vmatprep.subr.bf16.mxu0 0
    %547 = vmatpush1.bf16.msra.mxu0 0
    %548 = vmatprep.subr.bf16.mxu0 0
    %549 = vmatpush1.bf16.msra.mxu0 0
    %550 = vmatprep.subr.bf16.mxu0 0
    %551 = vmatpush1.bf16.msra.mxu0 0
    %552 = vmatprep.subr.bf16.mxu0 0
    %553 = vmatpush1.bf16.msra.mxu0 0
    %554 = vmatprep.subr.bf16.mxu0 0
    %555 = vmatpush1.bf16.msra.mxu0 0
    %556 = vmatprep.subr.bf16.mxu0 0
    %557 = vmatpush1.bf16.msra.mxu0 0
    %558 = vmatprep.mubr.bf16.mxu0 0
    %559 = vmatmul.mubr.bf16.gmra.mrb[0].mxu0 0
    %v560 = vpop.f32.mrb[0].mxu0
    %v561 = vadd.f32 0.0, %v560
    %v562 = vpop.f32.mrb[0].mxu0
    %v563 = vadd.f32 0.0, %v562
    %v564 = vpop.f32.mrb[0].mxu0
    %v565 = vpop.f32.mrb[0].mxu0
    %566 = vdwg.mxu0
    %567 = vmatprep.subr.bf16.mxu0 %v465
    %568 = vmatpush1.bf16.msra.mxu0 %v464
    %569 = vmatprep.subr.bf16.mxu0 %v469
    %570 = vmatpush1.bf16.msra.mxu0 %v468
    %571 = vmatprep.subr.bf16.mxu0 %v473
    %572 = vmatpush1.bf16.msra.mxu0 %v472
    %573 = vmatprep.subr.bf16.mxu0 %v477
    %574 = vmatpush1.bf16.msra.mxu0 %v476
    %575 = vmatprep.subr.bf16.mxu0 %v481
    %576 = vmatpush1.bf16.msra.mxu0 %v480
    %577 = vmatprep.subr.bf16.mxu0 %v485
    %578 = vmatpush1.bf16.msra.mxu0 %v484
    %579 = vmatprep.subr.bf16.mxu0 %v489
    %580 = vmatpush1.bf16.msra.mxu0 %v488
    %581 = vmatprep.subr.bf16.mxu0 %v493
    %582 = vmatpush1.bf16.msra.mxu0 %v492
    %583 = vmatprep.subr.bf16.mxu0 0
    %584 = vmatpush1.bf16.msra.mxu0 0
    %585 = vmatprep.subr.bf16.mxu0 0
    %586 = vmatpush1.bf16.msra.mxu0 0
    %587 = vmatprep.subr.bf16.mxu0 0
    %588 = vmatpush1.bf16.msra.mxu0 0
    %589 = vmatprep.subr.bf16.mxu0 0
    %590 = vmatpush1.bf16.msra.mxu0 0
    %591 = vmatprep.subr.bf16.mxu0 0
    %592 = vmatpush1.bf16.msra.mxu0 0
    %593 = vmatprep.subr.bf16.mxu0 0
    %594 = vmatpush1.bf16.msra.mxu0 0
    %595 = vmatprep.subr.bf16.mxu0 0
    %596 = vmatpush1.bf16.msra.mxu0 0
    %597 = vmatprep.subr.bf16.mxu0 0
    %598 = vmatpush1.bf16.msra.mxu0 0
    %599 = vmatprep.mubr.bf16.mxu0 0
    %600 = vmatmul.mubr.bf16.gmra.mrb[0].mxu0 0
    %v601 = vpop.f32.mrb[0].mxu0
    %v602 = vadd.f32 0.0, %v601
    %v603 = vpop.f32.mrb[0].mxu0
    %v604 = vadd.f32 0.0, %v603
    %v605 = vpop.f32.mrb[0].mxu0
    %v606 = vpop.f32.mrb[0].mxu0
    %607 = vdwg.mxu0
    %v608 = vadd.f32 %v255, %v561
    %v609 = vadd.f32 %v257, %v563
    %v610 = vadd.f32 %v328, %v602
    %v611 = vadd.f32 %v330, %v604
    %v612 = vxor.u32 %v608, 2147483648
    %v613 = vmul.f32 %v612, 1.442695
    %v614 = vpow.pop %v613
    %v615 = vadd.f32 %v614, 1.0
    %v616 = vrcp.pop %v615
    %v617 = vmul.f32 1.0, %v616
    %v618 = vxor.u32 %v609, 2147483648
    %v619 = vmul.f32 %v618, 1.442695
    %v620 = vpow.pop %v619
    %v621 = vadd.f32 %v620, 1.0
    %v622 = vrcp.pop %v621
    %v623 = vmul.f32 1.0, %v622
    %v624 = vtanh.pop %v610
    %v625 = vxor.u32 %v611, 2147483648
    %v626 = vmul.f32 %v625, 1.442695
    %v627 = vpow.pop %v626
    %v628 = vadd.f32 %v627, 1.0
    %v629 = vrcp.pop %v628
    %v630 = vmul.f32 1.0, %v629
    %v631 = vmul.f32 %v623, 0.0
    %v632 = vmul.f32 %v617, %v624
    %v633 = vadd.f32 %v631, %v632
    %v634 = vtanh.pop %v633
    %v635 = vmul.f32 %v630, %v634
    %v636 = vpack.c.bf16 %v635, %v635
    %637 = vmatprep.subr.bf16.mxu0 %v463
    %638 = vmatpush1.bf16.msra.mxu0 %v462
    %639 = vmatprep.subr.bf16.mxu0 %v467
    %640 = vmatpush1.bf16.msra.mxu0 %v466
    %641 = vmatprep.subr.bf16.mxu0 %v471
    %642 = vmatpush1.bf16.msra.mxu0 %v470
    %643 = vmatprep.subr.bf16.mxu0 %v475
    %644 = vmatpush1.bf16.msra.mxu0 %v474
    %645 = vmatprep.subr.bf16.mxu0 %v479
    %646 = vmatpush1.bf16.msra.mxu0 %v478
    %647 = vmatprep.subr.bf16.mxu0 %v483
    %648 = vmatpush1.bf16.msra.mxu0 %v482
    %649 = vmatprep.subr.bf16.mxu0 %v487
    %650 = vmatpush1.bf16.msra.mxu0 %v486
    %651 = vmatprep.subr.bf16.mxu0 %v491
    %652 = vmatpush1.bf16.msra.mxu0 %v490
    %653 = vmatprep.subr.bf16.mxu0 0
    %654 = vmatpush1.bf16.msra.mxu0 0
    %655 = vmatprep.subr.bf16.mxu0 0
    %656 = vmatpush1.bf16.msra.mxu0 0
    %657 = vmatprep.subr.bf16.mxu0 0
    %658 = vmatpush1.bf16.msra.mxu0 0
    %659 = vmatprep.subr.bf16.mxu0 0
    %660 = vmatpush1.bf16.msra.mxu0 0
    %661 = vmatprep.subr.bf16.mxu0 0
    %662 = vmatpush1.bf16.msra.mxu0 0
    %663 = vmatprep.subr.bf16.mxu0 0
    %664 = vmatpush1.bf16.msra.mxu0 0
    %665 = vmatprep.subr.bf16.mxu0 0
    %666 = vmatpush1.bf16.msra.mxu0 0
    %667 = vmatprep.subr.bf16.mxu0 0
    %668 = vmatpush1.bf16.msra.mxu0 0
    %669 = vmatprep.mubr.bf16.mxu0 0
    %670 = vmatmul.mubr.bf16.gmra.mrb[0].mxu0 %v636
    %v671 = vpop.f32.mrb[0].mxu0
    %v672 = vadd.f32 0.0, %v671
    %v673 = vpop.f32.mrb[0].mxu0
    %v674 = vadd.f32 0.0, %v673
    %v675 = vpop.f32.mrb[0].mxu0
    %v676 = vpop.f32.mrb[0].mxu0
    %677 = vdwg.mxu0
    %678 = vmatprep.subr.bf16.mxu0 %v465
    %679 = vmatpush1.bf16.msra.mxu0 %v464
    %680 = vmatprep.subr.bf16.mxu0 %v469
    %681 = vmatpush1.bf16.msra.mxu0 %v468
    %682 = vmatprep.subr.bf16.mxu0 %v473
    %683 = vmatpush1.bf16.msra.mxu0 %v472
    %684 = vmatprep.subr.bf16.mxu0 %v477
    %685 = vmatpush1.bf16.msra.mxu0 %v476
    %686 = vmatprep.subr.bf16.mxu0 %v481
    %687 = vmatpush1.bf16.msra.mxu0 %v480
    %688 = vmatprep.subr.bf16.mxu0 %v485
    %689 = vmatpush1.bf16.msra.mxu0 %v484
    %690 = vmatprep.subr.bf16.mxu0 %v489
    %691 = vmatpush1.bf16.msra.mxu0 %v488
    %692 = vmatprep.subr.bf16.mxu0 %v493
    %693 = vmatpush1.bf16.msra.mxu0 %v492
    %694 = vmatprep.subr.bf16.mxu0 0
    %695 = vmatpush1.bf16.msra.mxu0 0
    %696 = vmatprep.subr.bf16.mxu0 0
    %697 = vmatpush1.bf16.msra.mxu0 0
    %698 = vmatprep.subr.bf16.mxu0 0
    %699 = vmatpush1.bf16.msra.mxu0 0
    %700 = vmatprep.subr.bf16.mxu0 0
    %701 = vmatpush1.bf16.msra.mxu0 0
    %702 = vmatprep.subr.bf16.mxu0 0
    %703 = vmatpush1.bf16.msra.mxu0 0
    %704 = vmatprep.subr.bf16.mxu0 0
    %705 = vmatpush1.bf16.msra.mxu0 0
    %706 = vmatprep.subr.bf16.mxu0 0
    %707 = vmatpush1.bf16.msra.mxu0 0
    %708 = vmatprep.subr.bf16.mxu0 0
    %709 = vmatpush1.bf16.msra.mxu0 0
    %710 = vmatprep.mubr.bf16.mxu0 0
    %711 = vmatmul.mubr.bf16.gmra.mrb[0].mxu0 %v636
    %v712 = vpop.f32.mrb[0].mxu0
    %v713 = vadd.f32 0.0, %v712
    %v714 = vpop.f32.mrb[0].mxu0
    %v715 = vadd.f32 0.0, %v714
    %v716 = vpop.f32.mrb[0].mxu0
    %v717 = vpop.f32.mrb[0].mxu0
    %718 = vdwg.mxu0
    %v719 = vadd.f32 %v259, %v672
    %v720 = vadd.f32 %v261, %v674
    %v721 = vadd.f32 %v332, %v713
    %v722 = vadd.f32 %v334, %v715
    %v723 = vxor.u32 %v719, 2147483648
    %v724 = vmul.f32 %v723, 1.442695
    %v725 = vpow.pop %v724
    %v726 = vadd.f32 %v725, 1.0
    %v727 = vrcp.pop %v726
    %v728 = vmul.f32 1.0, %v727
    %v729 = vxor.u32 %v720, 2147483648
    %v730 = vmul.f32 %v729, 1.442695
    %v731 = vpow.pop %v730
    %v732 = vadd.f32 %v731, 1.0
    %v733 = vrcp.pop %v732
    %v734 = vmul.f32 1.0, %v733
    %v735 = vtanh.pop %v721
    %v736 = vxor.u32 %v722, 2147483648
    %v737 = vmul.f32 %v736, 1.442695
    %v738 = vpow.pop %v737
    %v739 = vadd.f32 %v738, 1.0
    %v740 = vrcp.pop %v739
    %v741 = vmul.f32 1.0, %v740
    %v742 = vmul.f32 %v734, %v633
    %v743 = vmul.f32 %v728, %v735
    %v744 = vadd.f32 %v742, %v743
    %v745 = vtanh.pop %v744
    %v746 = vmul.f32 %v741, %v745
    %v747 = vpack.c.bf16 %v746, %v746
    %748 = vmatprep.subr.bf16.mxu0 %v463
    %749 = vmatpush1.bf16.msra.mxu0 %v462
    %750 = vmatprep.subr.bf16.mxu0 %v467
    %751 = vmatpush1.bf16.msra.mxu0 %v466
    %752 = vmatprep.subr.bf16.mxu0 %v471
    %753 = vmatpush1.bf16.msra.mxu0 %v470
    %754 = vmatprep.subr.bf16.mxu0 %v475
    %755 = vmatpush1.bf16.msra.mxu0 %v474
    %756 = vmatprep.subr.bf16.mxu0 %v479
    %757 = vmatpush1.bf16.msra.mxu0 %v478
    %758 = vmatprep.subr.bf16.mxu0 %v483
    %759 = vmatpush1.bf16.msra.mxu0 %v482
    %760 = vmatprep.subr.bf16.mxu0 %v487
    %761 = vmatpush1.bf16.msra.mxu0 %v486
    %762 = vmatprep.subr.bf16.mxu0 %v491
    %763 = vmatpush1.bf16.msra.mxu0 %v490
    %764 = vmatprep.subr.bf16.mxu0 0
    %765 = vmatpush1.bf16.msra.mxu0 0
    %766 = vmatprep.subr.bf16.mxu0 0
    %767 = vmatpush1.bf16.msra.mxu0 0
    %768 = vmatprep.subr.bf16.mxu0 0
    %769 = vmatpush1.bf16.msra.mxu0 0
    %770 = vmatprep.subr.bf16.mxu0 0
    %771 = vmatpush1.bf16.msra.mxu0 0
    %772 = vmatprep.subr.bf16.mxu0 0
    %773 = vmatpush1.bf16.msra.mxu0 0
    %774 = vmatprep.subr.bf16.mxu0 0
    %775 = vmatpush1.bf16.msra.mxu0 0
    %776 = vmatprep.subr.bf16.mxu0 0
    %777 = vmatpush1.bf16.msra.mxu0 0
    %778 = vmatprep.subr.bf16.mxu0 0
    %779 = vmatpush1.bf16.msra.mxu0 0
    %780 = vmatprep.mubr.bf16.mxu0 0
    %781 = vmatmul.mubr.bf16.gmra.mrb[0].mxu0 %v747
    %v782 = vpop.f32.mrb[0].mxu0
    %v783 = vadd.f32 0.0, %v782
    %v784 = vpop.f32.mrb[0].mxu0
    %v785 = vadd.f32 0.0, %v784
    %v786 = vpop.f32.mrb[0].mxu0
    %v787 = vpop.f32.mrb[0].mxu0
    %788 = vdwg.mxu0
    %789 = vmatprep.subr.bf16.mxu0 %v465
    %790 = vmatpush1.bf16.msra.mxu0 %v464
    %791 = vmatprep.subr.bf16.mxu0 %v469
    %792 = vmatpush1.bf16.msra.mxu0 %v468
    %793 = vmatprep.subr.bf16.mxu0 %v473
    %794 = vmatpush1.bf16.msra.mxu0 %v472
    %795 = vmatprep.subr.bf16.mxu0 %v477
    %796 = vmatpush1.bf16.msra.mxu0 %v476
    %797 = vmatprep.subr.bf16.mxu0 %v481
    %798 = vmatpush1.bf16.msra.mxu0 %v480
    %799 = vmatprep.subr.bf16.mxu0 %v485
    %800 = vmatpush1.bf16.msra.mxu0 %v484
    %801 = vmatprep.subr.bf16.mxu0 %v489
    %802 = vmatpush1.bf16.msra.mxu0 %v488
    %803 = vmatprep.subr.bf16.mxu0 %v493
    %804 = vmatpush1.bf16.msra.mxu0 %v492
    %805 = vmatprep.subr.bf16.mxu0 0
    %806 = vmatpush1.bf16.msra.mxu0 0
    %807 = vmatprep.subr.bf16.mxu0 0
    %808 = vmatpush1.bf16.msra.mxu0 0
    %809 = vmatprep.subr.bf16.mxu0 0
    %810 = vmatpush1.bf16.msra.mxu0 0
    %811 = vmatprep.subr.bf16.mxu0 0
    %812 = vmatpush1.bf16.msra.mxu0 0
    %813 = vmatprep.subr.bf16.mxu0 0
    %814 = vmatpush1.bf16.msra.mxu0 0
    %815 = vmatprep.subr.bf16.mxu0 0
    %816 = vmatpush1.bf16.msra.mxu0 0
    %817 = vmatprep.subr.bf16.mxu0 0
    %818 = vmatpush1.bf16.msra.mxu0 0
    %819 = vmatprep.subr.bf16.mxu0 0
    %820 = vmatpush1.bf16.msra.mxu0 0
    %821 = vmatprep.mubr.bf16.mxu0 0
    %822 = vmatmul.mubr.bf16.gmra.mrb[0].mxu0 %v747
    %v823 = vpop.f32.mrb[0].mxu0
    %v824 = vadd.f32 0.0, %v823
    %v825 = vpop.f32.mrb[0].mxu0
    %v826 = vadd.f32 0.0, %v825
    %v827 = vpop.f32.mrb[0].mxu0
    %v828 = vpop.f32.mrb[0].mxu0
    %829 = vdwg.mxu0
    %v830 = vadd.f32 %v265, %v783
    %v831 = vadd.f32 %v267, %v785
    %v832 = vadd.f32 %v338, %v824
    %v833 = vadd.f32 %v340, %v826
    %v834 = vxor.u32 %v830, 2147483648
    %v835 = vmul.f32 %v834, 1.442695
    %v836 = vpow.pop %v835
    %v837 = vadd.f32 %v836, 1.0
    %v838 = vrcp.pop %v837
    %v839 = vmul.f32 1.0, %v838
    %v840 = vxor.u32 %v831, 2147483648
    %v841 = vmul.f32 %v840, 1.442695
    %v842 = vpow.pop %v841
    %v843 = vadd.f32 %v842, 1.0
    %v844 = vrcp.pop %v843
    %v845 = vmul.f32 1.0, %v844
    %v846 = vtanh.pop %v832
    %v847 = vxor.u32 %v833, 2147483648
    %v848 = vmul.f32 %v847, 1.442695
    %v849 = vpow.pop %v848
    %v850 = vadd.f32 %v849, 1.0
    %v851 = vrcp.pop %v850
    %v852 = vmul.f32 1.0, %v851
    %v853 = vmul.f32 %v845, %v744
    %v854 = vmul.f32 %v839, %v846
    %v855 = vadd.f32 %v853, %v854
    %v856 = vtanh.pop %v855
    %v857 = vmul.f32 %v852, %v856
    %v858 = vpack.c.bf16 %v857, %v857
    %859 = vmatprep.subr.bf16.mxu0 %v463
    %860 = vmatpush1.bf16.msra.mxu0 %v462
    %861 = vmatprep.subr.bf16.mxu0 %v467
    %862 = vmatpush1.bf16.msra.mxu0 %v466
    %863 = vmatprep.subr.bf16.mxu0 %v471
    %864 = vmatpush1.bf16.msra.mxu0 %v470
    %865 = vmatprep.subr.bf16.mxu0 %v475
    %866 = vmatpush1.bf16.msra.mxu0 %v474
    %867 = vmatprep.subr.bf16.mxu0 %v479
    %868 = vmatpush1.bf16.msra.mxu0 %v478
    %869 = vmatprep.subr.bf16.mxu0 %v483
    %870 = vmatpush1.bf16.msra.mxu0 %v482
    %871 = vmatprep.subr.bf16.mxu0 %v487
    %872 = vmatpush1.bf16.msra.mxu0 %v486
    %873 = vmatprep.subr.bf16.mxu0 %v491
    %874 = vmatpush1.bf16.msra.mxu0 %v490
    %875 = vmatprep.subr.bf16.mxu0 0
    %876 = vmatpush1.bf16.msra.mxu0 0
    %877 = vmatprep.subr.bf16.mxu0 0
    %878 = vmatpush1.bf16.msra.mxu0 0
    %879 = vmatprep.subr.bf16.mxu0 0
    %880 = vmatpush1.bf16.msra.mxu0 0
    %881 = vmatprep.subr.bf16.mxu0 0
    %882 = vmatpush1.bf16.msra.mxu0 0
    %883 = vmatprep.subr.bf16.mxu0 0
    %884 = vmatpush1.bf16.msra.mxu0 0
    %885 = vmatprep.subr.bf16.mxu0 0
    %886 = vmatpush1.bf16.msra.mxu0 0
    %887 = vmatprep.subr.bf16.mxu0 0
    %888 = vmatpush1.bf16.msra.mxu0 0
    %889 = vmatprep.subr.bf16.mxu0 0
    %890 = vmatpush1.bf16.msra.mxu0 0
    %891 = vmatprep.mubr.bf16.mxu0 0
    %892 = vmatmul.mubr.bf16.gmra.mrb[0].mxu0 %v858
    %v893 = vpop.f32.mrb[0].mxu0
    %v894 = vadd.f32 0.0, %v893
    %v895 = vpop.f32.mrb[0].mxu0
    %v896 = vadd.f32 0.0, %v895
    %v897 = vpop.f32.mrb[0].mxu0
    %v898 = vpop.f32.mrb[0].mxu0
    %899 = vdwg.mxu0
    %900 = vmatprep.subr.bf16.mxu0 %v465
    %901 = vmatpush1.bf16.msra.mxu0 %v464
    %902 = vmatprep.subr.bf16.mxu0 %v469
    %903 = vmatpush1.bf16.msra.mxu0 %v468
    %904 = vmatprep.subr.bf16.mxu0 %v473
    %905 = vmatpush1.bf16.msra.mxu0 %v472
    %906 = vmatprep.subr.bf16.mxu0 %v477
    %907 = vmatpush1.bf16.msra.mxu0 %v476
    %908 = vmatprep.subr.bf16.mxu0 %v481
    %909 = vmatpush1.bf16.msra.mxu0 %v480
    %910 = vmatprep.subr.bf16.mxu0 %v485
    %911 = vmatpush1.bf16.msra.mxu0 %v484
    %912 = vmatprep.subr.bf16.mxu0 %v489
    %913 = vmatpush1.bf16.msra.mxu0 %v488
    %914 = vmatprep.subr.bf16.mxu0 %v493
    %915 = vmatpush1.bf16.msra.mxu0 %v492
    %916 = vmatprep.subr.bf16.mxu0 0
    %917 = vmatpush1.bf16.msra.mxu0 0
    %918 = vmatprep.subr.bf16.mxu0 0
    %919 = vmatpush1.bf16.msra.mxu0 0
    %920 = vmatprep.subr.bf16.mxu0 0
    %921 = vmatpush1.bf16.msra.mxu0 0
    %922 = vmatprep.subr.bf16.mxu0 0
    %923 = vmatpush1.bf16.msra.mxu0 0
    %924 = vmatprep.subr.bf16.mxu0 0
    %925 = vmatpush1.bf16.msra.mxu0 0
    %926 = vmatprep.subr.bf16.mxu0 0
    %927 = vmatpush1.bf16.msra.mxu0 0
    %928 = vmatprep.subr.bf16.mxu0 0
    %929 = vmatpush1.bf16.msra.mxu0 0
    %930 = vmatprep.subr.bf16.mxu0 0
    %931 = vmatpush1.bf16.msra.mxu0 0
    %932 = vmatprep.mubr.bf16.mxu0 0
    %933 = vmatmul.mubr.bf16.gmra.mrb[0].mxu0 %v858
    %v934 = vpop.f32.mrb[0].mxu0
    %v935 = vadd.f32 0.0, %v934
    %v936 = vpop.f32.mrb[0].mxu0
    %v937 = vadd.f32 0.0, %v936
    %v938 = vpop.f32.mrb[0].mxu0
    %v939 = vpop.f32.mrb[0].mxu0
    %940 = vdwg.mxu0
    %v941 = vadd.f32 %v269, %v894
    %v942 = vadd.f32 %v271, %v896
    %v943 = vadd.f32 %v342, %v935
    %v944 = vadd.f32 %v344, %v937
    %v945 = vxor.u32 %v941, 2147483648
    %v946 = vmul.f32 %v945, 1.442695
    %v947 = vpow.pop %v946
    %v948 = vadd.f32 %v947, 1.0
    %v949 = vrcp.pop %v948
    %v950 = vmul.f32 1.0, %v949
    %v951 = vxor.u32 %v942, 2147483648
    %v952 = vmul.f32 %v951, 1.442695
    %v953 = vpow.pop %v952
    %v954 = vadd.f32 %v953, 1.0
    %v955 = vrcp.pop %v954
    %v956 = vmul.f32 1.0, %v955
    %v957 = vtanh.pop %v943
    %v958 = vxor.u32 %v944, 2147483648
    %v959 = vmul.f32 %v958, 1.442695
    %v960 = vpow.pop %v959
    %v961 = vadd.f32 %v960, 1.0
    %v962 = vrcp.pop %v961
    %v963 = vmul.f32 1.0, %v962
    %v964 = vmul.f32 %v956, %v855
    %v965 = vmul.f32 %v950, %v957
    %v966 = vadd.f32 %v964, %v965
    %v967 = vtanh.pop %v966
    %v968 = vmul.f32 %v963, %v967
    %v969 = vpack.c.bf16 %v968, %v968
    %970 = vmatprep.subr.bf16.mxu0 %v463
    %971 = vmatpush1.bf16.msra.mxu0 %v462
    %972 = vmatprep.subr.bf16.mxu0 %v467
    %973 = vmatpush1.bf16.msra.mxu0 %v466
    %974 = vmatprep.subr.bf16.mxu0 %v471
    %975 = vmatpush1.bf16.msra.mxu0 %v470
    %976 = vmatprep.subr.bf16.mxu0 %v475
    %977 = vmatpush1.bf16.msra.mxu0 %v474
    %978 = vmatprep.subr.bf16.mxu0 %v479
    %979 = vmatpush1.bf16.msra.mxu0 %v478
    %980 = vmatprep.subr.bf16.mxu0 %v483
    %981 = vmatpush1.bf16.msra.mxu0 %v482
    %982 = vmatprep.subr.bf16.mxu0 %v487
    %983 = vmatpush1.bf16.msra.mxu0 %v486
    %984 = vmatprep.subr.bf16.mxu0 %v491
    %985 = vmatpush1.bf16.msra.mxu0 %v490
    %986 = vmatprep.subr.bf16.mxu0 0
    %987 = vmatpush1.bf16.msra.mxu0 0
    %988 = vmatprep.subr.bf16.mxu0 0
    %989 = vmatpush1.bf16.msra.mxu0 0
    %990 = vmatprep.subr.bf16.mxu0 0
    %991 = vmatpush1.bf16.msra.mxu0 0
    %992 = vmatprep.subr.bf16.mxu0 0
    %993 = vmatpush1.bf16.msra.mxu0 0
    %994 = vmatprep.subr.bf16.mxu0 0
    %995 = vmatpush1.bf16.msra.mxu0 0
    %996 = vmatprep.subr.bf16.mxu0 0
    %997 = vmatpush1.bf16.msra.mxu0 0
    %998 = vmatprep.subr.bf16.mxu0 0
    %999 = vmatpush1.bf16.msra.mxu0 0
    %1000 = vmatprep.subr.bf16.mxu0 0
    %1001 = vmatpush1.bf16.msra.mxu0 0
    %1002 = vmatprep.mubr.bf16.mxu0 0
    %1003 = vmatmul.mubr.bf16.gmra.mrb[0].mxu0 %v969
    %v1004 = vpop.f32.mrb[0].mxu0
    %v1005 = vadd.f32 0.0, %v1004
    %v1006 = vpop.f32.mrb[0].mxu0
    %v1007 = vadd.f32 0.0, %v1006
    %v1008 = vpop.f32.mrb[0].mxu0
    %v1009 = vpop.f32.mrb[0].mxu0
    %1010 = vdwg.mxu0
    %1011 = vmatprep.subr.bf16.mxu0 %v465
    %1012 = vmatpush1.bf16.msra.mxu0 %v464
    %1013 = vmatprep.subr.bf16.mxu0 %v469
    %1014 = vmatpush1.bf16.msra.mxu0 %v468
    %1015 = vmatprep.subr.bf16.mxu0 %v473
    %1016 = vmatpush1.bf16.msra.mxu0 %v472
    %1017 = vmatprep.subr.bf16.mxu0 %v477
    %1018 = vmatpush1.bf16.msra.mxu0 %v476
    %1019 = vmatprep.subr.bf16.mxu0 %v481
    %1020 = vmatpush1.bf16.msra.mxu0 %v480
    %1021 = vmatprep.subr.bf16.mxu0 %v485
    %1022 = vmatpush1.bf16.msra.mxu0 %v484
    %1023 = vmatprep.subr.bf16.mxu0 %v489
    %1024 = vmatpush1.bf16.msra.mxu0 %v488
    %1025 = vmatprep.subr.bf16.mxu0 %v493
    %1026 = vmatpush1.bf16.msra.mxu0 %v492
    %1027 = vmatprep.subr.bf16.mxu0 0
    %1028 = vmatpush1.bf16.msra.mxu0 0
    %1029 = vmatprep.subr.bf16.mxu0 0
    %1030 = vmatpush1.bf16.msra.mxu0 0
    %1031 = vmatprep.subr.bf16.mxu0 0
    %1032 = vmatpush1.bf16.msra.mxu0 0
    %1033 = vmatprep.subr.bf16.mxu0 0
    %1034 = vmatpush1.bf16.msra.mxu0 0
    %1035 = vmatprep.subr.bf16.mxu0 0
    %1036 = vmatpush1.bf16.msra.mxu0 0
    %1037 = vmatprep.subr.bf16.mxu0 0
    %1038 = vmatpush1.bf16.msra.mxu0 0
    %1039 = vmatprep.subr.bf16.mxu0 0
    %1040 = vmatpush1.bf16.msra.mxu0 0
    %1041 = vmatprep.subr.bf16.mxu0 0
    %1042 = vmatpush1.bf16.msra.mxu0 0
    %1043 = vmatprep.mubr.bf16.mxu0 0
    %1044 = vmatmul.mubr.bf16.gmra.mrb[0].mxu0 %v969
    %v1045 = vpop.f32.mrb[0].mxu0
    %v1046 = vadd.f32 0.0, %v1045
    %v1047 = vpop.f32.mrb[0].mxu0
    %v1048 = vadd.f32 0.0, %v1047
    %v1049 = vpop.f32.mrb[0].mxu0
    %v1050 = vpop.f32.mrb[0].mxu0
    %1051 = vdwg.mxu0
    %v1052 = vadd.f32 %v275, %v1005
    %v1053 = vadd.f32 %v277, %v1007
    %v1054 = vadd.f32 %v348, %v1046
    %v1055 = vadd.f32 %v350, %v1048
    %v1056 = vxor.u32 %v1052, 2147483648
    %v1057 = vmul.f32 %v1056, 1.442695
    %v1058 = vpow.pop %v1057
    %v1059 = vadd.f32 %v1058, 1.0
    %v1060 = vrcp.pop %v1059
    %v1061 = vmul.f32 1.0, %v1060
    %v1062 = vxor.u32 %v1053, 2147483648
    %v1063 = vmul.f32 %v1062, 1.442695
    %v1064 = vpow.pop %v1063
    %v1065 = vadd.f32 %v1064, 1.0
    %v1066 = vrcp.pop %v1065
    %v1067 = vmul.f32 1.0, %v1066
    %v1068 = vtanh.pop %v1054
    %v1069 = vxor.u32 %v1055, 2147483648
    %v1070 = vmul.f32 %v1069, 1.442695
    %v1071 = vpow.pop %v1070
    %v1072 = vadd.f32 %v1071, 1.0
    %v1073 = vrcp.pop %v1072
    %v1074 = vmul.f32 1.0, %v1073
    %v1075 = vmul.f32 %v1067, %v966
    %v1076 = vmul.f32 %v1061, %v1068
    %v1077 = vadd.f32 %v1075, %v1076
    %v1078 = vtanh.pop %v1077
    %v1079 = vmul.f32 %v1074, %v1078
    %v1080 = vpack.c.bf16 %v1079, %v1079
    %1081 = vmatprep.subr.bf16.mxu0 %v463
    %1082 = vmatpush1.bf16.msra.mxu0 %v462
    %1083 = vmatprep.subr.bf16.mxu0 %v467
    %1084 = vmatpush1.bf16.msra.mxu0 %v466
    %1085 = vmatprep.subr.bf16.mxu0 %v471
    %1086 = vmatpush1.bf16.msra.mxu0 %v470
    %1087 = vmatprep.subr.bf16.mxu0 %v475
    %1088 = vmatpush1.bf16.msra.mxu0 %v474
    %1089 = vmatprep.subr.bf16.mxu0 %v479
    %1090 = vmatpush1.bf16.msra.mxu0 %v478
    %1091 = vmatprep.subr.bf16.mxu0 %v483
    %1092 = vmatpush1.bf16.msra.mxu0 %v482
    %1093 = vmatprep.subr.bf16.mxu0 %v487
    %1094 = vmatpush1.bf16.msra.mxu0 %v486
    %1095 = vmatprep.subr.bf16.mxu0 %v491
    %1096 = vmatpush1.bf16.msra.mxu0 %v490
    %1097 = vmatprep.subr.bf16.mxu0 0
    %1098 = vmatpush1.bf16.msra.mxu0 0
    %1099 = vmatprep.subr.bf16.mxu0 0
    %1100 = vmatpush1.bf16.msra.mxu0 0
    %1101 = vmatprep.subr.bf16.mxu0 0
    %1102 = vmatpush1.bf16.msra.mxu0 0
    %1103 = vmatprep.subr.bf16.mxu0 0
    %1104 = vmatpush1.bf16.msra.mxu0 0
    %1105 = vmatprep.subr.bf16.mxu0 0
    %1106 = vmatpush1.bf16.msra.mxu0 0
    %1107 = vmatprep.subr.bf16.mxu0 0
    %1108 = vmatpush1.bf16.msra.mxu0 0
    %1109 = vmatprep.subr.bf16.mxu0 0
    %1110 = vmatpush1.bf16.msra.mxu0 0
    %1111 = vmatprep.subr.bf16.mxu0 0
    %1112 = vmatpush1.bf16.msra.mxu0 0
    %1113 = vmatprep.mubr.bf16.mxu0 0
    %1114 = vmatmul.mubr.bf16.gmra.mrb[0].mxu0 %v1080
    %v1115 = vpop.f32.mrb[0].mxu0
    %v1116 = vadd.f32 0.0, %v1115
    %v1117 = vpop.f32.mrb[0].mxu0
    %v1118 = vadd.f32 0.0, %v1117
    %v1119 = vpop.f32.mrb[0].mxu0
    %v1120 = vpop.f32.mrb[0].mxu0
    %1121 = vdwg.mxu0
    %1122 = vmatprep.subr.bf16.mxu0 %v465
    %1123 = vmatpush1.bf16.msra.mxu0 %v464
    %1124 = vmatprep.subr.bf16.mxu0 %v469
    %1125 = vmatpush1.bf16.msra.mxu0 %v468
    %1126 = vmatprep.subr.bf16.mxu0 %v473
    %1127 = vmatpush1.bf16.msra.mxu0 %v472
    %1128 = vmatprep.subr.bf16.mxu0 %v477
    %1129 = vmatpush1.bf16.msra.mxu0 %v476
    %1130 = vmatprep.subr.bf16.mxu0 %v481
    %1131 = vmatpush1.bf16.msra.mxu0 %v480
    %1132 = vmatprep.subr.bf16.mxu0 %v485
    %1133 = vmatpush1.bf16.msra.mxu0 %v484
    %1134 = vmatprep.subr.bf16.mxu0 %v489
    %1135 = vmatpush1.bf16.msra.mxu0 %v488
    %1136 = vmatprep.subr.bf16.mxu0 %v493
    %1137 = vmatpush1.bf16.msra.mxu0 %v492
    %1138 = vmatprep.subr.bf16.mxu0 0
    %1139 = vmatpush1.bf16.msra.mxu0 0
    %1140 = vmatprep.subr.bf16.mxu0 0
    %1141 = vmatpush1.bf16.msra.mxu0 0
    %1142 = vmatprep.subr.bf16.mxu0 0
    %1143 = vmatpush1.bf16.msra.mxu0 0
    %1144 = vmatprep.subr.bf16.mxu0 0
    %1145 = vmatpush1.bf16.msra.mxu0 0
    %1146 = vmatprep.subr.bf16.mxu0 0
    %1147 = vmatpush1.bf16.msra.mxu0 0
    %1148 = vmatprep.subr.bf16.mxu0 0
    %1149 = vmatpush1.bf16.msra.mxu0 0
    %1150 = vmatprep.subr.bf16.mxu0 0
    %1151 = vmatpush1.bf16.msra.mxu0 0
    %1152 = vmatprep.subr.bf16.mxu0 0
    %1153 = vmatpush1.bf16.msra.mxu0 0
    %1154 = vmatprep.mubr.bf16.mxu0 0
    %1155 = vmatmul.mubr.bf16.gmra.mrb[0].mxu0 %v1080
    %v1156 = vpop.f32.mrb[0].mxu0
    %v1157 = vadd.f32 0.0, %v1156
    %v1158 = vpop.f32.mrb[0].mxu0
    %v1159 = vadd.f32 0.0, %v1158
    %v1160 = vpop.f32.mrb[0].mxu0
    %v1161 = vpop.f32.mrb[0].mxu0
    %1162 = vdwg.mxu0
    %v1163 = vadd.f32 %v279, %v1116
    %v1164 = vadd.f32 %v281, %v1118
    %v1165 = vadd.f32 %v352, %v1157
    %v1166 = vadd.f32 %v354, %v1159
    %v1167 = vxor.u32 %v1163, 2147483648
    %v1168 = vmul.f32 %v1167, 1.442695
    %v1169 = vpow.pop %v1168
    %v1170 = vadd.f32 %v1169, 1.0
    %v1171 = vrcp.pop %v1170
    %v1172 = vmul.f32 1.0, %v1171
    %v1173 = vxor.u32 %v1164, 2147483648
    %v1174 = vmul.f32 %v1173, 1.442695
    %v1175 = vpow.pop %v1174
    %v1176 = vadd.f32 %v1175, 1.0
    %v1177 = vrcp.pop %v1176
    %v1178 = vmul.f32 1.0, %v1177
    %v1179 = vtanh.pop %v1165
    %v1180 = vxor.u32 %v1166, 2147483648
    %v1181 = vmul.f32 %v1180, 1.442695
    %v1182 = vpow.pop %v1181
    %v1183 = vadd.f32 %v1182, 1.0
    %v1184 = vrcp.pop %v1183
    %v1185 = vmul.f32 1.0, %v1184
    %v1186 = vmul.f32 %v1178, %v1077
    %v1187 = vmul.f32 %v1172, %v1179
    %v1188 = vadd.f32 %v1186, %v1187
    %v1189 = vtanh.pop %v1188
    %v1190 = vmul.f32 %v1185, %v1189
    %v1191 = vpack.c.bf16 %v1190, %v1190
    %1192 = vmatprep.subr.bf16.mxu0 %v463
    %1193 = vmatpush1.bf16.msra.mxu0 %v462
    %1194 = vmatprep.subr.bf16.mxu0 %v467
    %1195 = vmatpush1.bf16.msra.mxu0 %v466
    %1196 = vmatprep.subr.bf16.mxu0 %v471
    %1197 = vmatpush1.bf16.msra.mxu0 %v470
    %1198 = vmatprep.subr.bf16.mxu0 %v475
    %1199 = vmatpush1.bf16.msra.mxu0 %v474
    %1200 = vmatprep.subr.bf16.mxu0 %v479
    %1201 = vmatpush1.bf16.msra.mxu0 %v478
    %1202 = vmatprep.subr.bf16.mxu0 %v483
    %1203 = vmatpush1.bf16.msra.mxu0 %v482
    %1204 = vmatprep.subr.bf16.mxu0 %v487
    %1205 = vmatpush1.bf16.msra.mxu0 %v486
    %1206 = vmatprep.subr.bf16.mxu0 %v491
    %1207 = vmatpush1.bf16.msra.mxu0 %v490
    %1208 = vmatprep.subr.bf16.mxu0 0
    %1209 = vmatpush1.bf16.msra.mxu0 0
    %1210 = vmatprep.subr.bf16.mxu0 0
    %1211 = vmatpush1.bf16.msra.mxu0 0
    %1212 = vmatprep.subr.bf16.mxu0 0
    %1213 = vmatpush1.bf16.msra.mxu0 0
    %1214 = vmatprep.subr.bf16.mxu0 0
    %1215 = vmatpush1.bf16.msra.mxu0 0
    %1216 = vmatprep.subr.bf16.mxu0 0
    %1217 = vmatpush1.bf16.msra.mxu0 0
    %1218 = vmatprep.subr.bf16.mxu0 0
    %1219 = vmatpush1.bf16.msra.mxu0 0
    %1220 = vmatprep.subr.bf16.mxu0 0
    %1221 = vmatpush1.bf16.msra.mxu0 0
    %1222 = vmatprep.subr.bf16.mxu0 0
    %1223 = vmatpush1.bf16.msra.mxu0 0
    %1224 = vmatprep.mubr.bf16.mxu0 0
    %1225 = vmatmul.mubr.bf16.gmra.mrb[0].mxu0 %v1191
    %v1226 = vpop.f32.mrb[0].mxu0
    %v1227 = vadd.f32 0.0, %v1226
    %v1228 = vpop.f32.mrb[0].mxu0
    %v1229 = vadd.f32 0.0, %v1228
    %v1230 = vpop.f32.mrb[0].mxu0
    %v1231 = vpop.f32.mrb[0].mxu0
    %1232 = vdwg.mxu0
    %1233 = vmatprep.subr.bf16.mxu0 %v465
    %1234 = vmatpush1.bf16.msra.mxu0 %v464
    %1235 = vmatprep.subr.bf16.mxu0 %v469
    %1236 = vmatpush1.bf16.msra.mxu0 %v468
    %1237 = vmatprep.subr.bf16.mxu0 %v473
    %1238 = vmatpush1.bf16.msra.mxu0 %v472
    %1239 = vmatprep.subr.bf16.mxu0 %v477
    %1240 = vmatpush1.bf16.msra.mxu0 %v476
    %1241 = vmatprep.subr.bf16.mxu0 %v481
    %1242 = vmatpush1.bf16.msra.mxu0 %v480
    %1243 = vmatprep.subr.bf16.mxu0 %v485
    %1244 = vmatpush1.bf16.msra.mxu0 %v484
    %1245 = vmatprep.subr.bf16.mxu0 %v489
    %1246 = vmatpush1.bf16.msra.mxu0 %v488
    %1247 = vmatprep.subr.bf16.mxu0 %v493
    %1248 = vmatpush1.bf16.msra.mxu0 %v492
    %1249 = vmatprep.subr.bf16.mxu0 0
    %1250 = vmatpush1.bf16.msra.mxu0 0
    %1251 = vmatprep.subr.bf16.mxu0 0
    %1252 = vmatpush1.bf16.msra.mxu0 0
    %1253 = vmatprep.subr.bf16.mxu0 0
    %1254 = vmatpush1.bf16.msra.mxu0 0
    %1255 = vmatprep.subr.bf16.mxu0 0
    %1256 = vmatpush1.bf16.msra.mxu0 0
    %1257 = vmatprep.subr.bf16.mxu0 0
    %1258 = vmatpush1.bf16.msra.mxu0 0
    %1259 = vmatprep.subr.bf16.mxu0 0
    %1260 = vmatpush1.bf16.msra.mxu0 0
    %1261 = vmatprep.subr.bf16.mxu0 0
    %1262 = vmatpush1.bf16.msra.mxu0 0
    %1263 = vmatprep.subr.bf16.mxu0 0
    %1264 = vmatpush1.bf16.msra.mxu0 0
    %1265 = vmatprep.mubr.bf16.mxu0 0
    %1266 = vmatmul.mubr.bf16.gmra.mrb[0].mxu0 %v1191
    %v1267 = vpop.f32.mrb[0].mxu0
    %v1268 = vadd.f32 0.0, %v1267
    %v1269 = vpop.f32.mrb[0].mxu0
    %v1270 = vadd.f32 0.0, %v1269
    %v1271 = vpop.f32.mrb[0].mxu0
    %v1272 = vpop.f32.mrb[0].mxu0
    %1273 = vdwg.mxu0
    %v1274 = vadd.f32 %v285, %v1227
    %v1275 = vadd.f32 %v287, %v1229
    %v1276 = vadd.f32 %v358, %v1268
    %v1277 = vadd.f32 %v360, %v1270
    %v1278 = vxor.u32 %v1274, 2147483648
    %v1279 = vmul.f32 %v1278, 1.442695
    %v1280 = vpow.pop %v1279
    %v1281 = vadd.f32 %v1280, 1.0
    %v1282 = vrcp.pop %v1281
    %v1283 = vmul.f32 1.0, %v1282
    %v1284 = vxor.u32 %v1275, 2147483648
    %v1285 = vmul.f32 %v1284, 1.442695
    %v1286 = vpow.pop %v1285
    %v1287 = vadd.f32 %v1286, 1.0
    %v1288 = vrcp.pop %v1287
    %v1289 = vmul.f32 1.0, %v1288
    %v1290 = vtanh.pop %v1276
    %v1291 = vxor.u32 %v1277, 2147483648
    %v1292 = vmul.f32 %v1291, 1.442695
    %v1293 = vpow.pop %v1292
    %v1294 = vadd.f32 %v1293, 1.0
    %v1295 = vrcp.pop %v1294
    %v1296 = vmul.f32 1.0, %v1295
    %v1297 = vmul.f32 %v1289, %v1188
    %v1298 = vmul.f32 %v1283, %v1290
    %v1299 = vadd.f32 %v1297, %v1298
    %v1300 = vtanh.pop %v1299
    %v1301 = vmul.f32 %v1296, %v1300
    %v1302 = vpack.c.bf16 %v1301, %v1301
    %1303 = vmatprep.subr.bf16.mxu0 %v463
    %1304 = vmatpush1.bf16.msra.mxu0 %v462
    %1305 = vmatprep.subr.bf16.mxu0 %v467
    %1306 = vmatpush1.bf16.msra.mxu0 %v466
    %1307 = vmatprep.subr.bf16.mxu0 %v471
    %1308 = vmatpush1.bf16.msra.mxu0 %v470
    %1309 = vmatprep.subr.bf16.mxu0 %v475
    %1310 = vmatpush1.bf16.msra.mxu0 %v474
    %1311 = vmatprep.subr.bf16.mxu0 %v479
    %1312 = vmatpush1.bf16.msra.mxu0 %v478
    %1313 = vmatprep.subr.bf16.mxu0 %v483
    %1314 = vmatpush1.bf16.msra.mxu0 %v482
    %1315 = vmatprep.subr.bf16.mxu0 %v487
    %1316 = vmatpush1.bf16.msra.mxu0 %v486
    %1317 = vmatprep.subr.bf16.mxu0 %v491
    %1318 = vmatpush1.bf16.msra.mxu0 %v490
    %1319 = vmatprep.subr.bf16.mxu0 0
    %1320 = vmatpush1.bf16.msra.mxu0 0
    %1321 = vmatprep.subr.bf16.mxu0 0
    %1322 = vmatpush1.bf16.msra.mxu0 0
    %1323 = vmatprep.subr.bf16.mxu0 0
    %1324 = vmatpush1.bf16.msra.mxu0 0
    %1325 = vmatprep.subr.bf16.mxu0 0
    %1326 = vmatpush1.bf16.msra.mxu0 0
    %1327 = vmatprep.subr.bf16.mxu0 0
    %1328 = vmatpush1.bf16.msra.mxu0 0
    %1329 = vmatprep.subr.bf16.mxu0 0
    %1330 = vmatpush1.bf16.msra.mxu0 0
    %1331 = vmatprep.subr.bf16.mxu0 0
    %1332 = vmatpush1.bf16.msra.mxu0 0
    %1333 = vmatprep.subr.bf16.mxu0 0
    %1334 = vmatpush1.bf16.msra.mxu0 0
    %1335 = vmatprep.mubr.bf16.mxu0 0
    %1336 = vmatmul.mubr.bf16.gmra.mrb[0].mxu0 %v1302
    %v1337 = vpop.f32.mrb[0].mxu0
    %v1338 = vadd.f32 0.0, %v1337
    %v1339 = vpop.f32.mrb[0].mxu0
    %v1340 = vadd.f32 0.0, %v1339
    %v1341 = vpop.f32.mrb[0].mxu0
    %v1342 = vpop.f32.mrb[0].mxu0
    %1343 = vdwg.mxu0
    %1344 = vmatprep.subr.bf16.mxu0 %v465
    %1345 = vmatpush1.bf16.msra.mxu0 %v464
    %1346 = vmatprep.subr.bf16.mxu0 %v469
    %1347 = vmatpush1.bf16.msra.mxu0 %v468
    %1348 = vmatprep.subr.bf16.mxu0 %v473
    %1349 = vmatpush1.bf16.msra.mxu0 %v472
    %1350 = vmatprep.subr.bf16.mxu0 %v477
    %1351 = vmatpush1.bf16.msra.mxu0 %v476
    %1352 = vmatprep.subr.bf16.mxu0 %v481
    %1353 = vmatpush1.bf16.msra.mxu0 %v480
    %1354 = vmatprep.subr.bf16.mxu0 %v485
    %1355 = vmatpush1.bf16.msra.mxu0 %v484
    %1356 = vmatprep.subr.bf16.mxu0 %v489
    %1357 = vmatpush1.bf16.msra.mxu0 %v488
    %1358 = vmatprep.subr.bf16.mxu0 %v493
    %1359 = vmatpush1.bf16.msra.mxu0 %v492
    %1360 = vmatprep.subr.bf16.mxu0 0
    %1361 = vmatpush1.bf16.msra.mxu0 0
    %1362 = vmatprep.subr.bf16.mxu0 0
    %1363 = vmatpush1.bf16.msra.mxu0 0
    %1364 = vmatprep.subr.bf16.mxu0 0
    %1365 = vmatpush1.bf16.msra.mxu0 0
    %1366 = vmatprep.subr.bf16.mxu0 0
    %1367 = vmatpush1.bf16.msra.mxu0 0
    %1368 = vmatprep.subr.bf16.mxu0 0
    %1369 = vmatpush1.bf16.msra.mxu0 0
    %1370 = vmatprep.subr.bf16.mxu0 0
    %1371 = vmatpush1.bf16.msra.mxu0 0
    %1372 = vmatprep.subr.bf16.mxu0 0
    %1373 = vmatpush1.bf16.msra.mxu0 0
    %1374 = vmatprep.subr.bf16.mxu0 0
    %1375 = vmatpush1.bf16.msra.mxu0 0
    %1376 = vmatprep.mubr.bf16.mxu0 0
    %1377 = vmatmul.mubr.bf16.gmra.mrb[0].mxu0 %v1302
    %v1378 = vpop.f32.mrb[0].mxu0
    %v1379 = vadd.f32 0.0, %v1378
    %v1380 = vpop.f32.mrb[0].mxu0
    %v1381 = vadd.f32 0.0, %v1380
    %v1382 = vpop.f32.mrb[0].mxu0
    %v1383 = vpop.f32.mrb[0].mxu0
    %1384 = vdwg.mxu0
    %v1385 = vadd.f32 %v289, %v1338
    %v1386 = vadd.f32 %v291, %v1340
    %v1387 = vadd.f32 %v362, %v1379
    %v1388 = vadd.f32 %v364, %v1381
    %v1389 = vxor.u32 %v1385, 2147483648
    %v1390 = vmul.f32 %v1389, 1.442695
    %v1391 = vpow.pop %v1390
    %v1392 = vadd.f32 %v1391, 1.0
    %v1393 = vrcp.pop %v1392
    %v1394 = vmul.f32 1.0, %v1393
    %v1395 = vxor.u32 %v1386, 2147483648
    %v1396 = vmul.f32 %v1395, 1.442695
    %v1397 = vpow.pop %v1396
    %v1398 = vadd.f32 %v1397, 1.0
    %v1399 = vrcp.pop %v1398
    %v1400 = vmul.f32 1.0, %v1399
    %v1401 = vtanh.pop %v1387
    %v1402 = vxor.u32 %v1388, 2147483648
    %v1403 = vmul.f32 %v1402, 1.442695
    %v1404 = vpow.pop %v1403
    %v1405 = vadd.f32 %v1404, 1.0
    %v1406 = vrcp.pop %v1405
    %v1407 = vmul.f32 1.0, %v1406
    %v1408 = vmul.f32 %v1400, %v1299
    %v1409 = vmul.f32 %v1394, %v1401
    %v1410 = vadd.f32 %v1408, %v1409
    %v1411 = vtanh.pop %v1410
    %v1412 = vmul.f32 %v1407, %v1411
    %v1413 = vld [vmem:[#allocation7] sm:$0xff]
    %v1414 = vld [vmem:[#allocation7 + $0x8] sm:$0xff]
    %v1415 = vld [vmem:[#allocation7 + $0x10] sm:$0xff]
    %v1416 = vld [vmem:[#allocation7 + $0x18] sm:$0xff]
    %v1417 = vld [vmem:[#allocation7 + $0x20] sm:$0xff]
    %v1418 = vld [vmem:[#allocation7 + $0x28] sm:$0xff]
    %v1419 = vld [vmem:[#allocation7 + $0x30] sm:$0xff]
    %v1420 = vld [vmem:[#allocation7 + $0x38] sm:$0xff]
    %v1421 = vld [vmem:[#allocation7 + $0x40] sm:$0xff]
    %v1422 = vld [vmem:[#allocation7 + $0x48] sm:$0xff]
    %v1423 = vld [vmem:[#allocation7 + $0x50] sm:$0xff]
    %v1424 = vld [vmem:[#allocation7 + $0x58] sm:$0xff]
    %v1425 = vld [vmem:[#allocation7 + $0x60] sm:$0xff]
    %v1426 = vld [vmem:[#allocation7 + $0x68] sm:$0xff]
    %v1427 = vld [vmem:[#allocation7 + $0x70] sm:$0xff]
    %v1428 = vld [vmem:[#allocation7 + $0x78] sm:$0xff]
    %v1429 = vld [vmem:[#allocation7 + $0x80] sm:$0xff]
    %v1430 = vld [vmem:[#allocation7 + $0x88] sm:$0xff]
    %v1431 = vld [vmem:[#allocation7 + $0x90] sm:$0xff]
    %v1432 = vld [vmem:[#allocation7 + $0x98] sm:$0xff]
    %v1433 = vld [vmem:[#allocation7 + $0xa0] sm:$0xff]
    %v1434 = vld [vmem:[#allocation7 + $0xa8] sm:$0xff]
    %v1435 = vld [vmem:[#allocation7 + $0xb0] sm:$0xff]
    %v1436 = vld [vmem:[#allocation7 + $0xb8] sm:$0xff]
    %v1437 = vld [vmem:[#allocation7 + $0xc0] sm:$0xff]
    %v1438 = vld [vmem:[#allocation7 + $0xc8] sm:$0xff]
    %v1439 = vld [vmem:[#allocation7 + $0xd0] sm:$0xff]
    %v1440 = vld [vmem:[#allocation7 + $0xd8] sm:$0xff]
    %v1441 = vld [vmem:[#allocation7 + $0xe0] sm:$0xff]
    %v1442 = vld [vmem:[#allocation7 + $0xe8] sm:$0xff]
    %v1443 = vld [vmem:[#allocation7 + $0xf0] sm:$0xff]
    %v1444 = vld [vmem:[#allocation7 + $0xf8] sm:$0xff]
    %v1445 = vld [vmem:[#allocation9] sm:$0xff]
    %v1446 = vld [vmem:[#allocation9 + $0x8] sm:$0xff]
    %v1447 = vld [vmem:[#allocation9 + $0x10] sm:$0xff]
    %v1448 = vld [vmem:[#allocation9 + $0x18] sm:$0xff]
    %v1449 = vld [vmem:[#allocation9 + $0x20] sm:$0xff]
    %v1450 = vld [vmem:[#allocation9 + $0x28] sm:$0xff]
    %v1451 = vld [vmem:[#allocation9 + $0x30] sm:$0xff]
    %v1452 = vld [vmem:[#allocation9 + $0x38] sm:$0xff]
    %v1453 = vld [vmem:[#allocation9 + $0x40] sm:$0xff]
    %v1454 = vld [vmem:[#allocation9 + $0x48] sm:$0xff]
    %v1455 = vld [vmem:[#allocation9 + $0x50] sm:$0xff]
    %v1456 = vld [vmem:[#allocation9 + $0x58] sm:$0xff]
    %v1457 = vld [vmem:[#allocation9 + $0x60] sm:$0xff]
    %v1458 = vld [vmem:[#allocation9 + $0x68] sm:$0xff]
    %v1459 = vld [vmem:[#allocation9 + $0x70] sm:$0xff]
    %v1460 = vld [vmem:[#allocation9 + $0x78] sm:$0xff]
    %v1461 = vld [vmem:[#allocation9 + $0x80] sm:$0xff]
    %v1462 = vld [vmem:[#allocation9 + $0x88] sm:$0xff]
    %v1463 = vld [vmem:[#allocation9 + $0x90] sm:$0xff]
    %v1464 = vld [vmem:[#allocation9 + $0x98] sm:$0xff]
    %v1465 = vld [vmem:[#allocation9 + $0xa0] sm:$0xff]
    %v1466 = vld [vmem:[#allocation9 + $0xa8] sm:$0xff]
    %v1467 = vld [vmem:[#allocation9 + $0xb0] sm:$0xff]
    %v1468 = vld [vmem:[#allocation9 + $0xb8] sm:$0xff]
    %v1469 = vld [vmem:[#allocation9 + $0xc0] sm:$0xff]
    %v1470 = vld [vmem:[#allocation9 + $0xc8] sm:$0xff]
    %v1471 = vld [vmem:[#allocation9 + $0xd0] sm:$0xff]
    %v1472 = vld [vmem:[#allocation9 + $0xd8] sm:$0xff]
    %v1473 = vld [vmem:[#allocation9 + $0xe0] sm:$0xff]
    %v1474 = vld [vmem:[#allocation9 + $0xe8] sm:$0xff]
    %v1475 = vld [vmem:[#allocation9 + $0xf0] sm:$0xff]
    %v1476 = vld [vmem:[#allocation9 + $0xf8] sm:$0xff]
    %v1477 = vld [vmem:[#allocation10] sm:$0xf]
    %v1478 = vpack.c.bf16 %v746, %v635
    %v1479 = vpack.c.bf16 %v968, %v857
    %v1480 = vpack.c.bf16 %v1190, %v1079
    %v1481 = vpack.c.bf16 %v1412, %v1301
    %v1483 = vlaneseq
    %v1484 = vshrl.u32 %v1483, 7
    %v1485 = vsub.s32 0, %v1484
    %v1486 = vrot.slane %v1477, %v1485
    %v1487 = vlaneseq
    %v1488 = vshrl.u32 %v1487, 7
    %v1489 = vsub.s32 1, %v1488
    %v1490 = vrot.slane %v1477, %v1489
    %v1491 = vlaneseq
    %v1492 = vshrl.u32 %v1491, 7
    %v1493 = vsub.s32 2, %v1492
    %v1494 = vrot.slane %v1477, %v1493
    %v1495 = vlaneseq
    %v1496 = vshrl.u32 %v1495, 7
    %v1497 = vsub.s32 3, %v1496
    %v1498 = vrot.slane %v1477, %v1497
    %v1535 = vunpack.c.l.b16 %v1413
    %v1536 = vunpack.c.h.b16 %v1413
    %v1537 = vunpack.c.l.b16 %v1414
    %v1538 = vunpack.c.h.b16 %v1414
    %v1539 = vunpack.c.l.b16 %v1415
    %v1540 = vunpack.c.h.b16 %v1415
    %v1541 = vunpack.c.l.b16 %v1416
    %v1542 = vunpack.c.h.b16 %v1416
    %v1543 = vunpack.c.l.b16 %v1417
    %v1544 = vunpack.c.h.b16 %v1417
    %v1545 = vunpack.c.l.b16 %v1418
    %v1546 = vunpack.c.h.b16 %v1418
    %v1547 = vunpack.c.l.b16 %v1419
    %v1548 = vunpack.c.h.b16 %v1419
    %v1549 = vunpack.c.l.b16 %v1420
    %v1550 = vunpack.c.h.b16 %v1420
    %v1551 = vunpack.c.l.b16 %v1421
    %v1552 = vunpack.c.h.b16 %v1421
    %v1553 = vunpack.c.l.b16 %v1422
    %v1554 = vunpack.c.h.b16 %v1422
    %v1555 = vunpack.c.l.b16 %v1423
    %v1556 = vunpack.c.h.b16 %v1423
    %v1557 = vunpack.c.l.b16 %v1424
    %v1558 = vunpack.c.h.b16 %v1424
    %v1559 = vunpack.c.l.b16 %v1425
    %v1560 = vunpack.c.h.b16 %v1425
    %v1561 = vunpack.c.l.b16 %v1426
    %v1562 = vunpack.c.h.b16 %v1426
    %v1563 = vunpack.c.l.b16 %v1427
    %v1564 = vunpack.c.h.b16 %v1427
    %v1565 = vunpack.c.l.b16 %v1428
    %v1566 = vunpack.c.h.b16 %v1428
    %v1567 = vunpack.c.l.b16 %v1429
    %v1568 = vunpack.c.h.b16 %v1429
    %v1569 = vunpack.c.l.b16 %v1430
    %v1570 = vunpack.c.h.b16 %v1430
    %v1571 = vunpack.c.l.b16 %v1431
    %v1572 = vunpack.c.h.b16 %v1431
    %v1573 = vunpack.c.l.b16 %v1432
    %v1574 = vunpack.c.h.b16 %v1432
    %v1575 = vunpack.c.l.b16 %v1433
    %v1576 = vunpack.c.h.b16 %v1433
    %v1577 = vunpack.c.l.b16 %v1434
    %v1578 = vunpack.c.h.b16 %v1434
    %v1579 = vunpack.c.l.b16 %v1435
    %v1580 = vunpack.c.h.b16 %v1435
    %v1581 = vunpack.c.l.b16 %v1436
    %v1582 = vunpack.c.h.b16 %v1436
    %v1583 = vunpack.c.l.b16 %v1437
    %v1584 = vunpack.c.h.b16 %v1437
    %v1585 = vunpack.c.l.b16 %v1438
    %v1586 = vunpack.c.h.b16 %v1438
    %v1587 = vunpack.c.l.b16 %v1439
    %v1588 = vunpack.c.h.b16 %v1439
    %v1589 = vunpack.c.l.b16 %v1440
    %v1590 = vunpack.c.h.b16 %v1440
    %v1591 = vunpack.c.l.b16 %v1441
    %v1592 = vunpack.c.h.b16 %v1441
    %v1593 = vunpack.c.l.b16 %v1442
    %v1594 = vunpack.c.h.b16 %v1442
    %v1595 = vunpack.c.l.b16 %v1443
    %v1596 = vunpack.c.h.b16 %v1443
    %v1597 = vunpack.c.l.b16 %v1444
    %v1598 = vunpack.c.h.b16 %v1444
    %v1599 = vpack.c.b16 %v1539, %v1535
    %v1600 = vpack.c.b16 %v1540, %v1536
    %v1601 = vpack.c.b16 %v1541, %v1537
    %v1602 = vpack.c.b16 %v1542, %v1538
    %v1603 = vpack.c.b16 %v1547, %v1543
    %v1604 = vpack.c.b16 %v1548, %v1544
    %v1605 = vpack.c.b16 %v1549, %v1545
    %v1606 = vpack.c.b16 %v1550, %v1546
    %v1607 = vpack.c.b16 %v1555, %v1551
    %v1608 = vpack.c.b16 %v1556, %v1552
    %v1609 = vpack.c.b16 %v1557, %v1553
    %v1610 = vpack.c.b16 %v1558, %v1554
    %v1611 = vpack.c.b16 %v1563, %v1559
    %v1612 = vpack.c.b16 %v1564, %v1560
    %v1613 = vpack.c.b16 %v1565, %v1561
    %v1614 = vpack.c.b16 %v1566, %v1562
    %v1615 = vpack.c.b16 %v1571, %v1567
    %v1616 = vpack.c.b16 %v1572, %v1568
    %v1617 = vpack.c.b16 %v1573, %v1569
    %v1618 = vpack.c.b16 %v1574, %v1570
    %v1619 = vpack.c.b16 %v1579, %v1575
    %v1620 = vpack.c.b16 %v1580, %v1576
    %v1621 = vpack.c.b16 %v1581, %v1577
    %v1622 = vpack.c.b16 %v1582, %v1578
    %v1623 = vpack.c.b16 %v1587, %v1583
    %v1624 = vpack.c.b16 %v1588, %v1584
    %v1625 = vpack.c.b16 %v1589, %v1585
    %v1626 = vpack.c.b16 %v1590, %v1586
    %v1627 = vpack.c.b16 %v1595, %v1591
    %v1628 = vpack.c.b16 %v1596, %v1592
    %v1629 = vpack.c.b16 %v1597, %v1593
    %v1630 = vpack.c.b16 %v1598, %v1594
    %1663 = vmatprep.subr.bf16.mxu0 %v1600
    %1664 = vmatpush1.bf16.msra.mxu0 %v1599
    %1665 = vmatprep.subr.bf16.mxu0 %v1604
    %1666 = vmatpush1.bf16.msra.mxu0 %v1603
    %1667 = vmatprep.subr.bf16.mxu0 %v1608
    %1668 = vmatpush1.bf16.msra.mxu0 %v1607
    %1669 = vmatprep.subr.bf16.mxu0 %v1612
    %1670 = vmatpush1.bf16.msra.mxu0 %v1611
    %1671 = vmatprep.subr.bf16.mxu0 %v1616
    %1672 = vmatpush1.bf16.msra.mxu0 %v1615
    %1673 = vmatprep.subr.bf16.mxu0 %v1620
    %1674 = vmatpush1.bf16.msra.mxu0 %v1619
    %1675 = vmatprep.subr.bf16.mxu0 %v1624
    %1676 = vmatpush1.bf16.msra.mxu0 %v1623
    %1677 = vmatprep.subr.bf16.mxu0 %v1628
    %1678 = vmatpush1.bf16.msra.mxu0 %v1627
    %1679 = vmatprep.subr.bf16.mxu0 0
    %1680 = vmatpush1.bf16.msra.mxu0 0
    %1681 = vmatprep.subr.bf16.mxu0 0
    %1682 = vmatpush1.bf16.msra.mxu0 0
    %1683 = vmatprep.subr.bf16.mxu0 0
    %1684 = vmatpush1.bf16.msra.mxu0 0
    %1685 = vmatprep.subr.bf16.mxu0 0
    %1686 = vmatpush1.bf16.msra.mxu0 0
    %1687 = vmatprep.subr.bf16.mxu0 0
    %1688 = vmatpush1.bf16.msra.mxu0 0
    %1689 = vmatprep.subr.bf16.mxu0 0
    %1690 = vmatpush1.bf16.msra.mxu0 0
    %1691 = vmatprep.subr.bf16.mxu0 0
    %1692 = vmatpush1.bf16.msra.mxu0 0
    %1693 = vmatprep.subr.bf16.mxu0 0
    %1694 = vmatpush1.bf16.msra.mxu0 0
    %1695 = vmatprep.mubr.bf16.mxu0 0
    %1696 = vmatmul.mubr.bf16.gmra.mrb[0].mxu0 %v1478
    %v1697 = vpop.f32.mrb[0].mxu0
    %v1698 = vadd.f32 %v1486, %v1697
    %v1699 = vpop.f32.mrb[0].mxu0
    %v1700 = vadd.f32 %v1490, %v1699
    %v1701 = vpop.f32.mrb[0].mxu0
    %v1702 = vadd.f32 %v1486, %v1701
    %v1703 = vpop.f32.mrb[0].mxu0
    %v1704 = vadd.f32 %v1490, %v1703
    %1705 = vmatprep.mubr.bf16.mxu0 0
    %1706 = vmatmul.mubr.bf16.gmra.mrb[0].mxu0 %v1479
    %v1707 = vpop.f32.mrb[0].mxu0
    %v1708 = vadd.f32 %v1486, %v1707
    %v1709 = vpop.f32.mrb[0].mxu0
    %v1710 = vadd.f32 %v1490, %v1709
    %v1711 = vpop.f32.mrb[0].mxu0
    %v1712 = vadd.f32 %v1486, %v1711
    %v1713 = vpop.f32.mrb[0].mxu0
    %v1714 = vadd.f32 %v1490, %v1713
    %1715 = vmatprep.mubr.bf16.mxu0 0
    %1716 = vmatmul.mubr.bf16.gmra.mrb[0].mxu0 %v1480
    %v1717 = vpop.f32.mrb[0].mxu0
    %v1718 = vadd.f32 %v1486, %v1717
    %v1719 = vpop.f32.mrb[0].mxu0
    %v1720 = vadd.f32 %v1490, %v1719
    %v1721 = vpop.f32.mrb[0].mxu0
    %v1722 = vadd.f32 %v1486, %v1721
    %v1723 = vpop.f32.mrb[0].mxu0
    %v1724 = vadd.f32 %v1490, %v1723
    %1725 = vmatprep.mubr.bf16.mxu0 0
    %1726 = vmatmul.mubr.bf16.gmra.mrb[0].mxu0 %v1481
    %v1727 = vpop.f32.mrb[0].mxu0
    %v1728 = vadd.f32 %v1486, %v1727
    %v1729 = vpop.f32.mrb[0].mxu0
    %v1730 = vadd.f32 %v1490, %v1729
    %v1731 = vpop.f32.mrb[0].mxu0
    %v1732 = vadd.f32 %v1486, %v1731
    %v1733 = vpop.f32.mrb[0].mxu0
    %v1734 = vadd.f32 %v1490, %v1733
    %1735 = vdwg.mxu0
    %1736 = vmatprep.subr.bf16.mxu0 %v1602
    %1737 = vmatpush1.bf16.msra.mxu0 %v1601
    %1738 = vmatprep.subr.bf16.mxu0 %v1606
    %1739 = vmatpush1.bf16.msra.mxu0 %v1605
    %1740 = vmatprep.subr.bf16.mxu0 %v1610
    %1741 = vmatpush1.bf16.msra.mxu0 %v1609
    %1742 = vmatprep.subr.bf16.mxu0 %v1614
    %1743 = vmatpush1.bf16.msra.mxu0 %v1613
    %1744 = vmatprep.subr.bf16.mxu0 %v1618
    %1745 = vmatpush1.bf16.msra.mxu0 %v1617
    %1746 = vmatprep.subr.bf16.mxu0 %v1622
    %1747 = vmatpush1.bf16.msra.mxu0 %v1621
    %1748 = vmatprep.subr.bf16.mxu0 %v1626
    %1749 = vmatpush1.bf16.msra.mxu0 %v1625
    %1750 = vmatprep.subr.bf16.mxu0 %v1630
    %1751 = vmatpush1.bf16.msra.mxu0 %v1629
    %1752 = vmatprep.subr.bf16.mxu0 0
    %1753 = vmatpush1.bf16.msra.mxu0 0
    %1754 = vmatprep.subr.bf16.mxu0 0
    %1755 = vmatpush1.bf16.msra.mxu0 0
    %1756 = vmatprep.subr.bf16.mxu0 0
    %1757 = vmatpush1.bf16.msra.mxu0 0
    %1758 = vmatprep.subr.bf16.mxu0 0
    %1759 = vmatpush1.bf16.msra.mxu0 0
    %1760 = vmatprep.subr.bf16.mxu0 0
    %1761 = vmatpush1.bf16.msra.mxu0 0
    %1762 = vmatprep.subr.bf16.mxu0 0
    %1763 = vmatpush1.bf16.msra.mxu0 0
    %1764 = vmatprep.subr.bf16.mxu0 0
    %1765 = vmatpush1.bf16.msra.mxu0 0
    %1766 = vmatprep.subr.bf16.mxu0 0
    %1767 = vmatpush1.bf16.msra.mxu0 0
    %1768 = vmatprep.mubr.bf16.mxu0 0
    %1769 = vmatmul.mubr.bf16.gmra.mrb[0].mxu0 %v1478
    %v1770 = vpop.f32.mrb[0].mxu0
    %v1771 = vadd.f32 %v1494, %v1770
    %v1772 = vpop.f32.mrb[0].mxu0
    %v1773 = vadd.f32 %v1498, %v1772
    %v1774 = vpop.f32.mrb[0].mxu0
    %v1775 = vadd.f32 %v1494, %v1774
    %v1776 = vpop.f32.mrb[0].mxu0
    %v1777 = vadd.f32 %v1498, %v1776
    %1778 = vmatprep.mubr.bf16.mxu0 0
    %1779 = vmatmul.mubr.bf16.gmra.mrb[0].mxu0 %v1479
    %v1780 = vpop.f32.mrb[0].mxu0
    %v1781 = vadd.f32 %v1494, %v1780
    %v1782 = vpop.f32.mrb[0].mxu0
    %v1783 = vadd.f32 %v1498, %v1782
    %v1784 = vpop.f32.mrb[0].mxu0
    %v1785 = vadd.f32 %v1494, %v1784
    %v1786 = vpop.f32.mrb[0].mxu0
    %v1787 = vadd.f32 %v1498, %v1786
    %1788 = vmatprep.mubr.bf16.mxu0 0
    %1789 = vmatmul.mubr.bf16.gmra.mrb[0].mxu0 %v1480
    %v1790 = vpop.f32.mrb[0].mxu0
    %v1791 = vadd.f32 %v1494, %v1790
    %v1792 = vpop.f32.mrb[0].mxu0
    %v1793 = vadd.f32 %v1498, %v1792
    %v1794 = vpop.f32.mrb[0].mxu0
    %v1795 = vadd.f32 %v1494, %v1794
    %v1796 = vpop.f32.mrb[0].mxu0
    %v1797 = vadd.f32 %v1498, %v1796
    %1798 = vmatprep.mubr.bf16.mxu0 0
    %1799 = vmatmul.mubr.bf16.gmra.mrb[0].mxu0 %v1481
    %v1800 = vpop.f32.mrb[0].mxu0
    %v1801 = vadd.f32 %v1494, %v1800
    %v1802 = vpop.f32.mrb[0].mxu0
    %v1803 = vadd.f32 %v1498, %v1802
    %v1804 = vpop.f32.mrb[0].mxu0
    %v1805 = vadd.f32 %v1494, %v1804
    %v1806 = vpop.f32.mrb[0].mxu0
    %v1807 = vadd.f32 %v1498, %v1806
    %1808 = vdwg.mxu0
    %v1841 = vunpack.c.l.b16 %v1445
    %v1842 = vunpack.c.h.b16 %v1445
    %v1843 = vunpack.c.l.b16 %v1446
    %v1844 = vunpack.c.h.b16 %v1446
    %v1845 = vunpack.c.l.b16 %v1447
    %v1846 = vunpack.c.h.b16 %v1447
    %v1847 = vunpack.c.l.b16 %v1448
    %v1848 = vunpack.c.h.b16 %v1448
    %v1849 = vunpack.c.l.b16 %v1449
    %v1850 = vunpack.c.h.b16 %v1449
    %v1851 = vunpack.c.l.b16 %v1450
    %v1852 = vunpack.c.h.b16 %v1450
    %v1853 = vunpack.c.l.b16 %v1451
    %v1854 = vunpack.c.h.b16 %v1451
    %v1855 = vunpack.c.l.b16 %v1452
    %v1856 = vunpack.c.h.b16 %v1452
    %v1857 = vunpack.c.l.b16 %v1453
    %v1858 = vunpack.c.h.b16 %v1453
    %v1859 = vunpack.c.l.b16 %v1454
    %v1860 = vunpack.c.h.b16 %v1454
    %v1861 = vunpack.c.l.b16 %v1455
    %v1862 = vunpack.c.h.b16 %v1455
    %v1863 = vunpack.c.l.b16 %v1456
    %v1864 = vunpack.c.h.b16 %v1456
    %v1865 = vunpack.c.l.b16 %v1457
    %v1866 = vunpack.c.h.b16 %v1457
    %v1867 = vunpack.c.l.b16 %v1458
    %v1868 = vunpack.c.h.b16 %v1458
    %v1869 = vunpack.c.l.b16 %v1459
    %v1870 = vunpack.c.h.b16 %v1459
    %v1871 = vunpack.c.l.b16 %v1460
    %v1872 = vunpack.c.h.b16 %v1460
    %v1873 = vunpack.c.l.b16 %v1461
    %v1874 = vunpack.c.h.b16 %v1461
    %v1875 = vunpack.c.l.b16 %v1462
    %v1876 = vunpack.c.h.b16 %v1462
    %v1877 = vunpack.c.l.b16 %v1463
    %v1878 = vunpack.c.h.b16 %v1463
    %v1879 = vunpack.c.l.b16 %v1464
    %v1880 = vunpack.c.h.b16 %v1464
    %v1881 = vunpack.c.l.b16 %v1465
    %v1882 = vunpack.c.h.b16 %v1465
    %v1883 = vunpack.c.l.b16 %v1466
    %v1884 = vunpack.c.h.b16 %v1466
    %v1885 = vunpack.c.l.b16 %v1467
    %v1886 = vunpack.c.h.b16 %v1467
    %v1887 = vunpack.c.l.b16 %v1468
    %v1888 = vunpack.c.h.b16 %v1468
    %v1889 = vunpack.c.l.b16 %v1469
    %v1890 = vunpack.c.h.b16 %v1469
    %v1891 = vunpack.c.l.b16 %v1470
    %v1892 = vunpack.c.h.b16 %v1470
    %v1893 = vunpack.c.l.b16 %v1471
    %v1894 = vunpack.c.h.b16 %v1471
    %v1895 = vunpack.c.l.b16 %v1472
    %v1896 = vunpack.c.h.b16 %v1472
    %v1897 = vunpack.c.l.b16 %v1473
    %v1898 = vunpack.c.h.b16 %v1473
    %v1899 = vunpack.c.l.b16 %v1474
    %v1900 = vunpack.c.h.b16 %v1474
    %v1901 = vunpack.c.l.b16 %v1475
    %v1902 = vunpack.c.h.b16 %v1475
    %v1903 = vunpack.c.l.b16 %v1476
    %v1904 = vunpack.c.h.b16 %v1476
    %v1905 = vpack.c.b16 %v1845, %v1841
    %v1906 = vpack.c.b16 %v1846, %v1842
    %v1907 = vpack.c.b16 %v1847, %v1843
    %v1908 = vpack.c.b16 %v1848, %v1844
    %v1909 = vpack.c.b16 %v1853, %v1849
    %v1910 = vpack.c.b16 %v1854, %v1850
    %v1911 = vpack.c.b16 %v1855, %v1851
    %v1912 = vpack.c.b16 %v1856, %v1852
    %v1913 = vpack.c.b16 %v1861, %v1857
    %v1914 = vpack.c.b16 %v1862, %v1858
    %v1915 = vpack.c.b16 %v1863, %v1859
    %v1916 = vpack.c.b16 %v1864, %v1860
    %v1917 = vpack.c.b16 %v1869, %v1865
    %v1918 = vpack.c.b16 %v1870, %v1866
    %v1919 = vpack.c.b16 %v1871, %v1867
    %v1920 = vpack.c.b16 %v1872, %v1868
    %v1921 = vpack.c.b16 %v1877, %v1873
    %v1922 = vpack.c.b16 %v1878, %v1874
    %v1923 = vpack.c.b16 %v1879, %v1875
    %v1924 = vpack.c.b16 %v1880, %v1876
    %v1925 = vpack.c.b16 %v1885, %v1881
    %v1926 = vpack.c.b16 %v1886, %v1882
    %v1927 = vpack.c.b16 %v1887, %v1883
    %v1928 = vpack.c.b16 %v1888, %v1884
    %v1929 = vpack.c.b16 %v1893, %v1889
    %v1930 = vpack.c.b16 %v1894, %v1890
    %v1931 = vpack.c.b16 %v1895, %v1891
    %v1932 = vpack.c.b16 %v1896, %v1892
    %v1933 = vpack.c.b16 %v1901, %v1897
    %v1934 = vpack.c.b16 %v1902, %v1898
    %v1935 = vpack.c.b16 %v1903, %v1899
    %v1936 = vpack.c.b16 %v1904, %v1900
    %1969 = vmatprep.subr.bf16.mxu0 %v1906
    %1970 = vmatpush1.bf16.msra.mxu0 %v1905
    %1971 = vmatprep.subr.bf16.mxu0 %v1910
    %1972 = vmatpush1.bf16.msra.mxu0 %v1909
    %1973 = vmatprep.subr.bf16.mxu0 %v1914
    %1974 = vmatpush1.bf16.msra.mxu0 %v1913
    %1975 = vmatprep.subr.bf16.mxu0 %v1918
    %1976 = vmatpush1.bf16.msra.mxu0 %v1917
    %1977 = vmatprep.subr.bf16.mxu0 %v1922
    %1978 = vmatpush1.bf16.msra.mxu0 %v1921
    %1979 = vmatprep.subr.bf16.mxu0 %v1926
    %1980 = vmatpush1.bf16.msra.mxu0 %v1925
    %1981 = vmatprep.subr.bf16.mxu0 %v1930
    %1982 = vmatpush1.bf16.msra.mxu0 %v1929
    %1983 = vmatprep.subr.bf16.mxu0 %v1934
    %1984 = vmatpush1.bf16.msra.mxu0 %v1933
    %1985 = vmatprep.subr.bf16.mxu0 0
    %1986 = vmatpush1.bf16.msra.mxu0 0
    %1987 = vmatprep.subr.bf16.mxu0 0
    %1988 = vmatpush1.bf16.msra.mxu0 0
    %1989 = vmatprep.subr.bf16.mxu0 0
    %1990 = vmatpush1.bf16.msra.mxu0 0
    %1991 = vmatprep.subr.bf16.mxu0 0
    %1992 = vmatpush1.bf16.msra.mxu0 0
    %1993 = vmatprep.subr.bf16.mxu0 0
    %1994 = vmatpush1.bf16.msra.mxu0 0
    %1995 = vmatprep.subr.bf16.mxu0 0
    %1996 = vmatpush1.bf16.msra.mxu0 0
    %1997 = vmatprep.subr.bf16.mxu0 0
    %1998 = vmatpush1.bf16.msra.mxu0 0
    %1999 = vmatprep.subr.bf16.mxu0 0
    %2000 = vmatpush1.bf16.msra.mxu0 0
    %2001 = vmatprep.mubr.bf16.mxu0 0
    %2002 = vmatmul.mubr.bf16.gmra.mrb[0].mxu0 0
    %v2003 = vpop.f32.mrb[0].mxu0
    %v2004 = vadd.f32 0.0, %v2003
    %v2005 = vpop.f32.mrb[0].mxu0
    %v2006 = vadd.f32 0.0, %v2005
    %v2007 = vpop.f32.mrb[0].mxu0
    %v2008 = vpop.f32.mrb[0].mxu0
    %2009 = vdwg.mxu0
    %2010 = vmatprep.subr.bf16.mxu0 %v1908
    %2011 = vmatpush1.bf16.msra.mxu0 %v1907
    %2012 = vmatprep.subr.bf16.mxu0 %v1912
    %2013 = vmatpush1.bf16.msra.mxu0 %v1911
    %2014 = vmatprep.subr.bf16.mxu0 %v1916
    %2015 = vmatpush1.bf16.msra.mxu0 %v1915
    %2016 = vmatprep.subr.bf16.mxu0 %v1920
    %2017 = vmatpush1.bf16.msra.mxu0 %v1919
    %2018 = vmatprep.subr.bf16.mxu0 %v1924
    %2019 = vmatpush1.bf16.msra.mxu0 %v1923
    %2020 = vmatprep.subr.bf16.mxu0 %v1928
    %2021 = vmatpush1.bf16.msra.mxu0 %v1927
    %2022 = vmatprep.subr.bf16.mxu0 %v1932
    %2023 = vmatpush1.bf16.msra.mxu0 %v1931
    %2024 = vmatprep.subr.bf16.mxu0 %v1936
    %2025 = vmatpush1.bf16.msra.mxu0 %v1935
    %2026 = vmatprep.subr.bf16.mxu0 0
    %2027 = vmatpush1.bf16.msra.mxu0 0
    %2028 = vmatprep.subr.bf16.mxu0 0
    %2029 = vmatpush1.bf16.msra.mxu0 0
    %2030 = vmatprep.subr.bf16.mxu0 0
    %2031 = vmatpush1.bf16.msra.mxu0 0
    %2032 = vmatprep.subr.bf16.mxu0 0
    %2033 = vmatpush1.bf16.msra.mxu0 0
    %2034 = vmatprep.subr.bf16.mxu0 0
    %2035 = vmatpush1.bf16.msra.mxu0 0
    %2036 = vmatprep.subr.bf16.mxu0 0
    %2037 = vmatpush1.bf16.msra.mxu0 0
    %2038 = vmatprep.subr.bf16.mxu0 0
    %2039 = vmatpush1.bf16.msra.mxu0 0
    %2040 = vmatprep.subr.bf16.mxu0 0
    %2041 = vmatpush1.bf16.msra.mxu0 0
    %2042 = vmatprep.mubr.bf16.mxu0 0
    %2043 = vmatmul.mubr.bf16.gmra.mrb[0].mxu0 0
    %v2044 = vpop.f32.mrb[0].mxu0
    %v2045 = vadd.f32 0.0, %v2044
    %v2046 = vpop.f32.mrb[0].mxu0
    %v2047 = vadd.f32 0.0, %v2046
    %v2048 = vpop.f32.mrb[0].mxu0
    %v2049 = vpop.f32.mrb[0].mxu0
    %2050 = vdwg.mxu0
    %v2051 = vadd.f32 %v1698, %v2004
    %v2052 = vadd.f32 %v1700, %v2006
    %v2053 = vadd.f32 %v1771, %v2045
    %v2054 = vadd.f32 %v1773, %v2047
    %v2055 = vxor.u32 %v2051, 2147483648
    %v2056 = vmul.f32 %v2055, 1.442695
    %v2057 = vpow.pop %v2056
    %v2058 = vadd.f32 %v2057, 1.0
    %v2059 = vrcp.pop %v2058
    %v2060 = vmul.f32 1.0, %v2059
    %v2061 = vxor.u32 %v2052, 2147483648
    %v2062 = vmul.f32 %v2061, 1.442695
    %v2063 = vpow.pop %v2062
    %v2064 = vadd.f32 %v2063, 1.0
    %v2065 = vrcp.pop %v2064
    %v2066 = vmul.f32 1.0, %v2065
    %v2067 = vtanh.pop %v2053
    %v2068 = vxor.u32 %v2054, 2147483648
    %v2069 = vmul.f32 %v2068, 1.442695
    %v2070 = vpow.pop %v2069
    %v2071 = vadd.f32 %v2070, 1.0
    %v2072 = vrcp.pop %v2071
    %v2073 = vmul.f32 1.0, %v2072
    %v2074 = vmul.f32 %v2066, 0.0
    %v2075 = vmul.f32 %v2060, %v2067
    %v2076 = vadd.f32 %v2074, %v2075
    %v2077 = vtanh.pop %v2076
    %v2078 = vmul.f32 %v2073, %v2077
    %v2079 = vpack.c.bf16 %v2078, %v2078
    %2080 = vmatprep.subr.bf16.mxu0 %v1906
    %2081 = vmatpush1.bf16.msra.mxu0 %v1905
    %2082 = vmatprep.subr.bf16.mxu0 %v1910
    %2083 = vmatpush1.bf16.msra.mxu0 %v1909
    %2084 = vmatprep.subr.bf16.mxu0 %v1914
    %2085 = vmatpush1.bf16.msra.mxu0 %v1913
    %2086 = vmatprep.subr.bf16.mxu0 %v1918
    %2087 = vmatpush1.bf16.msra.mxu0 %v1917
    %2088 = vmatprep.subr.bf16.mxu0 %v1922
    %2089 = vmatpush1.bf16.msra.mxu0 %v1921
    %2090 = vmatprep.subr.bf16.mxu0 %v1926
    %2091 = vmatpush1.bf16.msra.mxu0 %v1925
    %2092 = vmatprep.subr.bf16.mxu0 %v1930
    %2093 = vmatpush1.bf16.msra.mxu0 %v1929
    %2094 = vmatprep.subr.bf16.mxu0 %v1934
    %2095 = vmatpush1.bf16.msra.mxu0 %v1933
    %2096 = vmatprep.subr.bf16.mxu0 0
    %2097 = vmatpush1.bf16.msra.mxu0 0
    %2098 = vmatprep.subr.bf16.mxu0 0
    %2099 = vmatpush1.bf16.msra.mxu0 0
    %2100 = vmatprep.subr.bf16.mxu0 0
    %2101 = vmatpush1.bf16.msra.mxu0 0
    %2102 = vmatprep.subr.bf16.mxu0 0
    %2103 = vmatpush1.bf16.msra.mxu0 0
    %2104 = vmatprep.subr.bf16.mxu0 0
    %2105 = vmatpush1.bf16.msra.mxu0 0
    %2106 = vmatprep.subr.bf16.mxu0 0
    %2107 = vmatpush1.bf16.msra.mxu0 0
    %2108 = vmatprep.subr.bf16.mxu0 0
    %2109 = vmatpush1.bf16.msra.mxu0 0
    %2110 = vmatprep.subr.bf16.mxu0 0
    %2111 = vmatpush1.bf16.msra.mxu0 0
    %2112 = vmatprep.mubr.bf16.mxu0 0
    %2113 = vmatmul.mubr.bf16.gmra.mrb[0].mxu0 %v2079
    %v2114 = vpop.f32.mrb[0].mxu0
    %v2115 = vadd.f32 0.0, %v2114
    %v2116 = vpop.f32.mrb[0].mxu0
    %v2117 = vadd.f32 0.0, %v2116
    %v2118 = vpop.f32.mrb[0].mxu0
    %v2119 = vpop.f32.mrb[0].mxu0
    %2120 = vdwg.mxu0
    %2121 = vmatprep.subr.bf16.mxu0 %v1908
    %2122 = vmatpush1.bf16.msra.mxu0 %v1907
    %2123 = vmatprep.subr.bf16.mxu0 %v1912
    %2124 = vmatpush1.bf16.msra.mxu0 %v1911
    %2125 = vmatprep.subr.bf16.mxu0 %v1916
    %2126 = vmatpush1.bf16.msra.mxu0 %v1915
    %2127 = vmatprep.subr.bf16.mxu0 %v1920
    %2128 = vmatpush1.bf16.msra.mxu0 %v1919
    %2129 = vmatprep.subr.bf16.mxu0 %v1924
    %2130 = vmatpush1.bf16.msra.mxu0 %v1923
    %2131 = vmatprep.subr.bf16.mxu0 %v1928
    %2132 = vmatpush1.bf16.msra.mxu0 %v1927
    %2133 = vmatprep.subr.bf16.mxu0 %v1932
    %2134 = vmatpush1.bf16.msra.mxu0 %v1931
    %2135 = vmatprep.subr.bf16.mxu0 %v1936
    %2136 = vmatpush1.bf16.msra.mxu0 %v1935
    %2137 = vmatprep.subr.bf16.mxu0 0
    %2138 = vmatpush1.bf16.msra.mxu0 0
    %2139 = vmatprep.subr.bf16.mxu0 0
    %2140 = vmatpush1.bf16.msra.mxu0 0
    %2141 = vmatprep.subr.bf16.mxu0 0
    %2142 = vmatpush1.bf16.msra.mxu0 0
    %2143 = vmatprep.subr.bf16.mxu0 0
    %2144 = vmatpush1.bf16.msra.mxu0 0
    %2145 = vmatprep.subr.bf16.mxu0 0
    %2146 = vmatpush1.bf16.msra.mxu0 0
    %2147 = vmatprep.subr.bf16.mxu0 0
    %2148 = vmatpush1.bf16.msra.mxu0 0
    %2149 = vmatprep.subr.bf16.mxu0 0
    %2150 = vmatpush1.bf16.msra.mxu0 0
    %2151 = vmatprep.subr.bf16.mxu0 0
    %2152 = vmatpush1.bf16.msra.mxu0 0
    %2153 = vmatprep.mubr.bf16.mxu0 0
    %2154 = vmatmul.mubr.bf16.gmra.mrb[0].mxu0 %v2079
    %v2155 = vpop.f32.mrb[0].mxu0
    %v2156 = vadd.f32 0.0, %v2155
    %v2157 = vpop.f32.mrb[0].mxu0
    %v2158 = vadd.f32 0.0, %v2157
    %v2159 = vpop.f32.mrb[0].mxu0
    %v2160 = vpop.f32.mrb[0].mxu0
    %2161 = vdwg.mxu0
    %v2162 = vadd.f32 %v1702, %v2115
    %v2163 = vadd.f32 %v1704, %v2117
    %v2164 = vadd.f32 %v1775, %v2156
    %v2165 = vadd.f32 %v1777, %v2158
    %v2166 = vxor.u32 %v2162, 2147483648
    %v2167 = vmul.f32 %v2166, 1.442695
    %v2168 = vpow.pop %v2167
    %v2169 = vadd.f32 %v2168, 1.0
    %v2170 = vrcp.pop %v2169
    %v2171 = vmul.f32 1.0, %v2170
    %v2172 = vxor.u32 %v2163, 2147483648
    %v2173 = vmul.f32 %v2172, 1.442695
    %v2174 = vpow.pop %v2173
    %v2175 = vadd.f32 %v2174, 1.0
    %v2176 = vrcp.pop %v2175
    %v2177 = vmul.f32 1.0, %v2176
    %v2178 = vtanh.pop %v2164
    %v2179 = vxor.u32 %v2165, 2147483648
    %v2180 = vmul.f32 %v2179, 1.442695
    %v2181 = vpow.pop %v2180
    %v2182 = vadd.f32 %v2181, 1.0
    %v2183 = vrcp.pop %v2182
    %v2184 = vmul.f32 1.0, %v2183
    %v2185 = vmul.f32 %v2177, %v2076
    %v2186 = vmul.f32 %v2171, %v2178
    %v2187 = vadd.f32 %v2185, %v2186
    %v2188 = vtanh.pop %v2187
    %v2189 = vmul.f32 %v2184, %v2188
    %v2190 = vpack.c.bf16 %v2189, %v2189
    %2191 = vmatprep.subr.bf16.mxu0 %v1906
    %2192 = vmatpush1.bf16.msra.mxu0 %v1905
    %2193 = vmatprep.subr.bf16.mxu0 %v1910
    %2194 = vmatpush1.bf16.msra.mxu0 %v1909
    %2195 = vmatprep.subr.bf16.mxu0 %v1914
    %2196 = vmatpush1.bf16.msra.mxu0 %v1913
    %2197 = vmatprep.subr.bf16.mxu0 %v1918
    %2198 = vmatpush1.bf16.msra.mxu0 %v1917
    %2199 = vmatprep.subr.bf16.mxu0 %v1922
    %2200 = vmatpush1.bf16.msra.mxu0 %v1921
    %2201 = vmatprep.subr.bf16.mxu0 %v1926
    %2202 = vmatpush1.bf16.msra.mxu0 %v1925
    %2203 = vmatprep.subr.bf16.mxu0 %v1930
    %2204 = vmatpush1.bf16.msra.mxu0 %v1929
    %2205 = vmatprep.subr.bf16.mxu0 %v1934
    %2206 = vmatpush1.bf16.msra.mxu0 %v1933
    %2207 = vmatprep.subr.bf16.mxu0 0
    %2208 = vmatpush1.bf16.msra.mxu0 0
    %2209 = vmatprep.subr.bf16.mxu0 0
    %2210 = vmatpush1.bf16.msra.mxu0 0
    %2211 = vmatprep.subr.bf16.mxu0 0
    %2212 = vmatpush1.bf16.msra.mxu0 0
    %2213 = vmatprep.subr.bf16.mxu0 0
    %2214 = vmatpush1.bf16.msra.mxu0 0
    %2215 = vmatprep.subr.bf16.mxu0 0
    %2216 = vmatpush1.bf16.msra.mxu0 0
    %2217 = vmatprep.subr.bf16.mxu0 0
    %2218 = vmatpush1.bf16.msra.mxu0 0
    %2219 = vmatprep.subr.bf16.mxu0 0
    %2220 = vmatpush1.bf16.msra.mxu0 0
    %2221 = vmatprep.subr.bf16.mxu0 0
    %2222 = vmatpush1.bf16.msra.mxu0 0
    %2223 = vmatprep.mubr.bf16.mxu0 0
    %2224 = vmatmul.mubr.bf16.gmra.mrb[0].mxu0 %v2190
    %v2225 = vpop.f32.mrb[0].mxu0
    %v2226 = vadd.f32 0.0, %v2225
    %v2227 = vpop.f32.mrb[0].mxu0
    %v2228 = vadd.f32 0.0, %v2227
    %v2229 = vpop.f32.mrb[0].mxu0
    %v2230 = vpop.f32.mrb[0].mxu0
    %2231 = vdwg.mxu0
    %2232 = vmatprep.subr.bf16.mxu0 %v1908
    %2233 = vmatpush1.bf16.msra.mxu0 %v1907
    %2234 = vmatprep.subr.bf16.mxu0 %v1912
    %2235 = vmatpush1.bf16.msra.mxu0 %v1911
    %2236 = vmatprep.subr.bf16.mxu0 %v1916
    %2237 = vmatpush1.bf16.msra.mxu0 %v1915
    %2238 = vmatprep.subr.bf16.mxu0 %v1920
    %2239 = vmatpush1.bf16.msra.mxu0 %v1919
    %2240 = vmatprep.subr.bf16.mxu0 %v1924
    %2241 = vmatpush1.bf16.msra.mxu0 %v1923
    %2242 = vmatprep.subr.bf16.mxu0 %v1928
    %2243 = vmatpush1.bf16.msra.mxu0 %v1927
    %2244 = vmatprep.subr.bf16.mxu0 %v1932
    %2245 = vmatpush1.bf16.msra.mxu0 %v1931
    %2246 = vmatprep.subr.bf16.mxu0 %v1936
    %2247 = vmatpush1.bf16.msra.mxu0 %v1935
    %2248 = vmatprep.subr.bf16.mxu0 0
    %2249 = vmatpush1.bf16.msra.mxu0 0
    %2250 = vmatprep.subr.bf16.mxu0 0
    %2251 = vmatpush1.bf16.msra.mxu0 0
    %2252 = vmatprep.subr.bf16.mxu0 0
    %2253 = vmatpush1.bf16.msra.mxu0 0
    %2254 = vmatprep.subr.bf16.mxu0 0
    %2255 = vmatpush1.bf16.msra.mxu0 0
    %2256 = vmatprep.subr.bf16.mxu0 0
    %2257 = vmatpush1.bf16.msra.mxu0 0
    %2258 = vmatprep.subr.bf16.mxu0 0
    %2259 = vmatpush1.bf16.msra.mxu0 0
    %2260 = vmatprep.subr.bf16.mxu0 0
    %2261 = vmatpush1.bf16.msra.mxu0 0
    %2262 = vmatprep.subr.bf16.mxu0 0
    %2263 = vmatpush1.bf16.msra.mxu0 0
    %2264 = vmatprep.mubr.bf16.mxu0 0
    %2265 = vmatmul.mubr.bf16.gmra.mrb[0].mxu0 %v2190
    %v2266 = vpop.f32.mrb[0].mxu0
    %v2267 = vadd.f32 0.0, %v2266
    %v2268 = vpop.f32.mrb[0].mxu0
    %v2269 = vadd.f32 0.0, %v2268
    %v2270 = vpop.f32.mrb[0].mxu0
    %v2271 = vpop.f32.mrb[0].mxu0
    %2272 = vdwg.mxu0
    %v2273 = vadd.f32 %v1708, %v2226
    %v2274 = vadd.f32 %v1710, %v2228
    %v2275 = vadd.f32 %v1781, %v2267
    %v2276 = vadd.f32 %v1783, %v2269
    %v2277 = vxor.u32 %v2273, 2147483648
    %v2278 = vmul.f32 %v2277, 1.442695
    %v2279 = vpow.pop %v2278
    %v2280 = vadd.f32 %v2279, 1.0
    %v2281 = vrcp.pop %v2280
    %v2282 = vmul.f32 1.0, %v2281
    %v2283 = vxor.u32 %v2274, 2147483648
    %v2284 = vmul.f32 %v2283, 1.442695
    %v2285 = vpow.pop %v2284
    %v2286 = vadd.f32 %v2285, 1.0
    %v2287 = vrcp.pop %v2286
    %v2288 = vmul.f32 1.0, %v2287
    %v2289 = vtanh.pop %v2275
    %v2290 = vxor.u32 %v2276, 2147483648
    %v2291 = vmul.f32 %v2290, 1.442695
    %v2292 = vpow.pop %v2291
    %v2293 = vadd.f32 %v2292, 1.0
    %v2294 = vrcp.pop %v2293
    %v2295 = vmul.f32 1.0, %v2294
    %v2296 = vmul.f32 %v2288, %v2187
    %v2297 = vmul.f32 %v2282, %v2289
    %v2298 = vadd.f32 %v2296, %v2297
    %v2299 = vtanh.pop %v2298
    %v2300 = vmul.f32 %v2295, %v2299
    %v2301 = vpack.c.bf16 %v2300, %v2300
    %2302 = vmatprep.subr.bf16.mxu0 %v1906
    %2303 = vmatpush1.bf16.msra.mxu0 %v1905
    %2304 = vmatprep.subr.bf16.mxu0 %v1910
    %2305 = vmatpush1.bf16.msra.mxu0 %v1909
    %2306 = vmatprep.subr.bf16.mxu0 %v1914
    %2307 = vmatpush1.bf16.msra.mxu0 %v1913
    %2308 = vmatprep.subr.bf16.mxu0 %v1918
    %2309 = vmatpush1.bf16.msra.mxu0 %v1917
    %2310 = vmatprep.subr.bf16.mxu0 %v1922
    %2311 = vmatpush1.bf16.msra.mxu0 %v1921
    %2312 = vmatprep.subr.bf16.mxu0 %v1926
    %2313 = vmatpush1.bf16.msra.mxu0 %v1925
    %2314 = vmatprep.subr.bf16.mxu0 %v1930
    %2315 = vmatpush1.bf16.msra.mxu0 %v1929
    %2316 = vmatprep.subr.bf16.mxu0 %v1934
    %2317 = vmatpush1.bf16.msra.mxu0 %v1933
    %2318 = vmatprep.subr.bf16.mxu0 0
    %2319 = vmatpush1.bf16.msra.mxu0 0
    %2320 = vmatprep.subr.bf16.mxu0 0
    %2321 = vmatpush1.bf16.msra.mxu0 0
    %2322 = vmatprep.subr.bf16.mxu0 0
    %2323 = vmatpush1.bf16.msra.mxu0 0
    %2324 = vmatprep.subr.bf16.mxu0 0
    %2325 = vmatpush1.bf16.msra.mxu0 0
    %2326 = vmatprep.subr.bf16.mxu0 0
    %2327 = vmatpush1.bf16.msra.mxu0 0
    %2328 = vmatprep.subr.bf16.mxu0 0
    %2329 = vmatpush1.bf16.msra.mxu0 0
    %2330 = vmatprep.subr.bf16.mxu0 0
    %2331 = vmatpush1.bf16.msra.mxu0 0
    %2332 = vmatprep.subr.bf16.mxu0 0
    %2333 = vmatpush1.bf16.msra.mxu0 0
    %2334 = vmatprep.mubr.bf16.mxu0 0
    %2335 = vmatmul.mubr.bf16.gmra.mrb[0].mxu0 %v2301
    %v2336 = vpop.f32.mrb[0].mxu0
    %v2337 = vadd.f32 0.0, %v2336
    %v2338 = vpop.f32.mrb[0].mxu0
    %v2339 = vadd.f32 0.0, %v2338
    %v2340 = vpop.f32.mrb[0].mxu0
    %v2341 = vpop.f32.mrb[0].mxu0
    %2342 = vdwg.mxu0
    %2343 = vmatprep.subr.bf16.mxu0 %v1908
    %2344 = vmatpush1.bf16.msra.mxu0 %v1907
    %2345 = vmatprep.subr.bf16.mxu0 %v1912
    %2346 = vmatpush1.bf16.msra.mxu0 %v1911
    %2347 = vmatprep.subr.bf16.mxu0 %v1916
    %2348 = vmatpush1.bf16.msra.mxu0 %v1915
    %2349 = vmatprep.subr.bf16.mxu0 %v1920
    %2350 = vmatpush1.bf16.msra.mxu0 %v1919
    %2351 = vmatprep.subr.bf16.mxu0 %v1924
    %2352 = vmatpush1.bf16.msra.mxu0 %v1923
    %2353 = vmatprep.subr.bf16.mxu0 %v1928
    %2354 = vmatpush1.bf16.msra.mxu0 %v1927
    %2355 = vmatprep.subr.bf16.mxu0 %v1932
    %2356 = vmatpush1.bf16.msra.mxu0 %v1931
    %2357 = vmatprep.subr.bf16.mxu0 %v1936
    %2358 = vmatpush1.bf16.msra.mxu0 %v1935
    %2359 = vmatprep.subr.bf16.mxu0 0
    %2360 = vmatpush1.bf16.msra.mxu0 0
    %2361 = vmatprep.subr.bf16.mxu0 0
    %2362 = vmatpush1.bf16.msra.mxu0 0
    %2363 = vmatprep.subr.bf16.mxu0 0
    %2364 = vmatpush1.bf16.msra.mxu0 0
    %2365 = vmatprep.subr.bf16.mxu0 0
    %2366 = vmatpush1.bf16.msra.mxu0 0
    %2367 = vmatprep.subr.bf16.mxu0 0
    %2368 = vmatpush1.bf16.msra.mxu0 0
    %2369 = vmatprep.subr.bf16.mxu0 0
    %2370 = vmatpush1.bf16.msra.mxu0 0
    %2371 = vmatprep.subr.bf16.mxu0 0
    %2372 = vmatpush1.bf16.msra.mxu0 0
    %2373 = vmatprep.subr.bf16.mxu0 0
    %2374 = vmatpush1.bf16.msra.mxu0 0
    %2375 = vmatprep.mubr.bf16.mxu0 0
    %2376 = vmatmul.mubr.bf16.gmra.mrb[0].mxu0 %v2301
    %v2377 = vpop.f32.mrb[0].mxu0
    %v2378 = vadd.f32 0.0, %v2377
    %v2379 = vpop.f32.mrb[0].mxu0
    %v2380 = vadd.f32 0.0, %v2379
    %v2381 = vpop.f32.mrb[0].mxu0
    %v2382 = vpop.f32.mrb[0].mxu0
    %2383 = vdwg.mxu0
    %v2384 = vadd.f32 %v1712, %v2337
    %v2385 = vadd.f32 %v1714, %v2339
    %v2386 = vadd.f32 %v1785, %v2378
    %v2387 = vadd.f32 %v1787, %v2380
    %v2388 = vxor.u32 %v2384, 2147483648
    %v2389 = vmul.f32 %v2388, 1.442695
    %v2390 = vpow.pop %v2389
    %v2391 = vadd.f32 %v2390, 1.0
    %v2392 = vrcp.pop %v2391
    %v2393 = vmul.f32 1.0, %v2392
    %v2394 = vxor.u32 %v2385, 2147483648
    %v2395 = vmul.f32 %v2394, 1.442695
    %v2396 = vpow.pop %v2395
    %v2397 = vadd.f32 %v2396, 1.0
    %v2398 = vrcp.pop %v2397
    %v2399 = vmul.f32 1.0, %v2398
    %v2400 = vtanh.pop %v2386
    %v2401 = vxor.u32 %v2387, 2147483648
    %v2402 = vmul.f32 %v2401, 1.442695
    %v2403 = vpow.pop %v2402
    %v2404 = vadd.f32 %v2403, 1.0
    %v2405 = vrcp.pop %v2404
    %v2406 = vmul.f32 1.0, %v2405
    %v2407 = vmul.f32 %v2399, %v2298
    %v2408 = vmul.f32 %v2393, %v2400
    %v2409 = vadd.f32 %v2407, %v2408
    %v2410 = vtanh.pop %v2409
    %v2411 = vmul.f32 %v2406, %v2410
    %v2412 = vpack.c.bf16 %v2411, %v2411
    %2413 = vmatprep.subr.bf16.mxu0 %v1906
    %2414 = vmatpush1.bf16.msra.mxu0 %v1905
    %2415 = vmatprep.subr.bf16.mxu0 %v1910
    %2416 = vmatpush1.bf16.msra.mxu0 %v1909
    %2417 = vmatprep.subr.bf16.mxu0 %v1914
    %2418 = vmatpush1.bf16.msra.mxu0 %v1913
    %2419 = vmatprep.subr.bf16.mxu0 %v1918
    %2420 = vmatpush1.bf16.msra.mxu0 %v1917
    %2421 = vmatprep.subr.bf16.mxu0 %v1922
    %2422 = vmatpush1.bf16.msra.mxu0 %v1921
    %2423 = vmatprep.subr.bf16.mxu0 %v1926
    %2424 = vmatpush1.bf16.msra.mxu0 %v1925
    %2425 = vmatprep.subr.bf16.mxu0 %v1930
    %2426 = vmatpush1.bf16.msra.mxu0 %v1929
    %2427 = vmatprep.subr.bf16.mxu0 %v1934
    %2428 = vmatpush1.bf16.msra.mxu0 %v1933
    %2429 = vmatprep.subr.bf16.mxu0 0
    %2430 = vmatpush1.bf16.msra.mxu0 0
    %2431 = vmatprep.subr.bf16.mxu0 0
    %2432 = vmatpush1.bf16.msra.mxu0 0
    %2433 = vmatprep.subr.bf16.mxu0 0
    %2434 = vmatpush1.bf16.msra.mxu0 0
    %2435 = vmatprep.subr.bf16.mxu0 0
    %2436 = vmatpush1.bf16.msra.mxu0 0
    %2437 = vmatprep.subr.bf16.mxu0 0
    %2438 = vmatpush1.bf16.msra.mxu0 0
    %2439 = vmatprep.subr.bf16.mxu0 0
    %2440 = vmatpush1.bf16.msra.mxu0 0
    %2441 = vmatprep.subr.bf16.mxu0 0
    %2442 = vmatpush1.bf16.msra.mxu0 0
    %2443 = vmatprep.subr.bf16.mxu0 0
    %2444 = vmatpush1.bf16.msra.mxu0 0
    %2445 = vmatprep.mubr.bf16.mxu0 0
    %2446 = vmatmul.mubr.bf16.gmra.mrb[0].mxu0 %v2412
    %v2447 = vpop.f32.mrb[0].mxu0
    %v2448 = vadd.f32 0.0, %v2447
    %v2449 = vpop.f32.mrb[0].mxu0
    %v2450 = vadd.f32 0.0, %v2449
    %v2451 = vpop.f32.mrb[0].mxu0
    %v2452 = vpop.f32.mrb[0].mxu0
    %2453 = vdwg.mxu0
    %2454 = vmatprep.subr.bf16.mxu0 %v1908
    %2455 = vmatpush1.bf16.msra.mxu0 %v1907
    %2456 = vmatprep.subr.bf16.mxu0 %v1912
    %2457 = vmatpush1.bf16.msra.mxu0 %v1911
    %2458 = vmatprep.subr.bf16.mxu0 %v1916
    %2459 = vmatpush1.bf16.msra.mxu0 %v1915
    %2460 = vmatprep.subr.bf16.mxu0 %v1920
    %2461 = vmatpush1.bf16.msra.mxu0 %v1919
    %2462 = vmatprep.subr.bf16.mxu0 %v1924
    %2463 = vmatpush1.bf16.msra.mxu0 %v1923
    %2464 = vmatprep.subr.bf16.mxu0 %v1928
    %2465 = vmatpush1.bf16.msra.mxu0 %v1927
    %2466 = vmatprep.subr.bf16.mxu0 %v1932
    %2467 = vmatpush1.bf16.msra.mxu0 %v1931
    %2468 = vmatprep.subr.bf16.mxu0 %v1936
    %2469 = vmatpush1.bf16.msra.mxu0 %v1935
    %2470 = vmatprep.subr.bf16.mxu0 0
    %2471 = vmatpush1.bf16.msra.mxu0 0
    %2472 = vmatprep.subr.bf16.mxu0 0
    %2473 = vmatpush1.bf16.msra.mxu0 0
    %2474 = vmatprep.subr.bf16.mxu0 0
    %2475 = vmatpush1.bf16.msra.mxu0 0
    %2476 = vmatprep.subr.bf16.mxu0 0
    %2477 = vmatpush1.bf16.msra.mxu0 0
    %2478 = vmatprep.subr.bf16.mxu0 0
    %2479 = vmatpush1.bf16.msra.mxu0 0
    %2480 = vmatprep.subr.bf16.mxu0 0
    %2481 = vmatpush1.bf16.msra.mxu0 0
    %2482 = vmatprep.subr.bf16.mxu0 0
    %2483 = vmatpush1.bf16.msra.mxu0 0
    %2484 = vmatprep.subr.bf16.mxu0 0
    %2485 = vmatpush1.bf16.msra.mxu0 0
    %2486 = vmatprep.mubr.bf16.mxu0 0
    %2487 = vmatmul.mubr.bf16.gmra.mrb[0].mxu0 %v2412
    %v2488 = vpop.f32.mrb[0].mxu0
    %v2489 = vadd.f32 0.0, %v2488
    %v2490 = vpop.f32.mrb[0].mxu0
    %v2491 = vadd.f32 0.0, %v2490
    %v2492 = vpop.f32.mrb[0].mxu0
    %v2493 = vpop.f32.mrb[0].mxu0
    %2494 = vdwg.mxu0
    %v2495 = vadd.f32 %v1718, %v2448
    %v2496 = vadd.f32 %v1720, %v2450
    %v2497 = vadd.f32 %v1791, %v2489
    %v2498 = vadd.f32 %v1793, %v2491
    %v2499 = vxor.u32 %v2495, 2147483648
    %v2500 = vmul.f32 %v2499, 1.442695
    %v2501 = vpow.pop %v2500
    %v2502 = vadd.f32 %v2501, 1.0
    %v2503 = vrcp.pop %v2502
    %v2504 = vmul.f32 1.0, %v2503
    %v2505 = vxor.u32 %v2496, 2147483648
    %v2506 = vmul.f32 %v2505, 1.442695
    %v2507 = vpow.pop %v2506
    %v2508 = vadd.f32 %v2507, 1.0
    %v2509 = vrcp.pop %v2508
    %v2510 = vmul.f32 1.0, %v2509
    %v2511 = vtanh.pop %v2497
    %v2512 = vxor.u32 %v2498, 2147483648
    %v2513 = vmul.f32 %v2512, 1.442695
    %v2514 = vpow.pop %v2513
    %v2515 = vadd.f32 %v2514, 1.0
    %v2516 = vrcp.pop %v2515
    %v2517 = vmul.f32 1.0, %v2516
    %v2518 = vmul.f32 %v2510, %v2409
    %v2519 = vmul.f32 %v2504, %v2511
    %v2520 = vadd.f32 %v2518, %v2519
    %v2521 = vtanh.pop %v2520
    %v2522 = vmul.f32 %v2517, %v2521
    %v2523 = vpack.c.bf16 %v2522, %v2522
    %2524 = vmatprep.subr.bf16.mxu0 %v1906
    %2525 = vmatpush1.bf16.msra.mxu0 %v1905
    %2526 = vmatprep.subr.bf16.mxu0 %v1910
    %2527 = vmatpush1.bf16.msra.mxu0 %v1909
    %2528 = vmatprep.subr.bf16.mxu0 %v1914
    %2529 = vmatpush1.bf16.msra.mxu0 %v1913
    %2530 = vmatprep.subr.bf16.mxu0 %v1918
    %2531 = vmatpush1.bf16.msra.mxu0 %v1917
    %2532 = vmatprep.subr.bf16.mxu0 %v1922
    %2533 = vmatpush1.bf16.msra.mxu0 %v1921
    %2534 = vmatprep.subr.bf16.mxu0 %v1926
    %2535 = vmatpush1.bf16.msra.mxu0 %v1925
    %2536 = vmatprep.subr.bf16.mxu0 %v1930
    %2537 = vmatpush1.bf16.msra.mxu0 %v1929
    %2538 = vmatprep.subr.bf16.mxu0 %v1934
    %2539 = vmatpush1.bf16.msra.mxu0 %v1933
    %2540 = vmatprep.subr.bf16.mxu0 0
    %2541 = vmatpush1.bf16.msra.mxu0 0
    %2542 = vmatprep.subr.bf16.mxu0 0
    %2543 = vmatpush1.bf16.msra.mxu0 0
    %2544 = vmatprep.subr.bf16.mxu0 0
    %2545 = vmatpush1.bf16.msra.mxu0 0
    %2546 = vmatprep.subr.bf16.mxu0 0
    %2547 = vmatpush1.bf16.msra.mxu0 0
    %2548 = vmatprep.subr.bf16.mxu0 0
    %2549 = vmatpush1.bf16.msra.mxu0 0
    %2550 = vmatprep.subr.bf16.mxu0 0
    %2551 = vmatpush1.bf16.msra.mxu0 0
    %2552 = vmatprep.subr.bf16.mxu0 0
    %2553 = vmatpush1.bf16.msra.mxu0 0
    %2554 = vmatprep.subr.bf16.mxu0 0
    %2555 = vmatpush1.bf16.msra.mxu0 0
    %2556 = vmatprep.mubr.bf16.mxu0 0
    %2557 = vmatmul.mubr.bf16.gmra.mrb[0].mxu0 %v2523
    %v2558 = vpop.f32.mrb[0].mxu0
    %v2559 = vadd.f32 0.0, %v2558
    %v2560 = vpop.f32.mrb[0].mxu0
    %v2561 = vadd.f32 0.0, %v2560
    %v2562 = vpop.f32.mrb[0].mxu0
    %v2563 = vpop.f32.mrb[0].mxu0
    %2564 = vdwg.mxu0
    %2565 = vmatprep.subr.bf16.mxu0 %v1908
    %2566 = vmatpush1.bf16.msra.mxu0 %v1907
    %2567 = vmatprep.subr.bf16.mxu0 %v1912
    %2568 = vmatpush1.bf16.msra.mxu0 %v1911
    %2569 = vmatprep.subr.bf16.mxu0 %v1916
    %2570 = vmatpush1.bf16.msra.mxu0 %v1915
    %2571 = vmatprep.subr.bf16.mxu0 %v1920
    %2572 = vmatpush1.bf16.msra.mxu0 %v1919
    %2573 = vmatprep.subr.bf16.mxu0 %v1924
    %2574 = vmatpush1.bf16.msra.mxu0 %v1923
    %2575 = vmatprep.subr.bf16.mxu0 %v1928
    %2576 = vmatpush1.bf16.msra.mxu0 %v1927
    %2577 = vmatprep.subr.bf16.mxu0 %v1932
    %2578 = vmatpush1.bf16.msra.mxu0 %v1931
    %2579 = vmatprep.subr.bf16.mxu0 %v1936
    %2580 = vmatpush1.bf16.msra.mxu0 %v1935
    %2581 = vmatprep.subr.bf16.mxu0 0
    %2582 = vmatpush1.bf16.msra.mxu0 0
    %2583 = vmatprep.subr.bf16.mxu0 0
    %2584 = vmatpush1.bf16.msra.mxu0 0
    %2585 = vmatprep.subr.bf16.mxu0 0
    %2586 = vmatpush1.bf16.msra.mxu0 0
    %2587 = vmatprep.subr.bf16.mxu0 0
    %2588 = vmatpush1.bf16.msra.mxu0 0
    %2589 = vmatprep.subr.bf16.mxu0 0
    %2590 = vmatpush1.bf16.msra.mxu0 0
    %2591 = vmatprep.subr.bf16.mxu0 0
    %2592 = vmatpush1.bf16.msra.mxu0 0
    %2593 = vmatprep.subr.bf16.mxu0 0
    %2594 = vmatpush1.bf16.msra.mxu0 0
    %2595 = vmatprep.subr.bf16.mxu0 0
    %2596 = vmatpush1.bf16.msra.mxu0 0
    %2597 = vmatprep.mubr.bf16.mxu0 0
    %2598 = vmatmul.mubr.bf16.gmra.mrb[0].mxu0 %v2523
    %v2599 = vpop.f32.mrb[0].mxu0
    %v2600 = vadd.f32 0.0, %v2599
    %v2601 = vpop.f32.mrb[0].mxu0
    %v2602 = vadd.f32 0.0, %v2601
    %v2603 = vpop.f32.mrb[0].mxu0
    %v2604 = vpop.f32.mrb[0].mxu0
    %2605 = vdwg.mxu0
    %v2606 = vadd.f32 %v1722, %v2559
    %v2607 = vadd.f32 %v1724, %v2561
    %v2608 = vadd.f32 %v1795, %v2600
    %v2609 = vadd.f32 %v1797, %v2602
    %v2610 = vxor.u32 %v2606, 2147483648
    %v2611 = vmul.f32 %v2610, 1.442695
    %v2612 = vpow.pop %v2611
    %v2613 = vadd.f32 %v2612, 1.0
    %v2614 = vrcp.pop %v2613
    %v2615 = vmul.f32 1.0, %v2614
    %v2616 = vxor.u32 %v2607, 2147483648
    %v2617 = vmul.f32 %v2616, 1.442695
    %v2618 = vpow.pop %v2617
    %v2619 = vadd.f32 %v2618, 1.0
    %v2620 = vrcp.pop %v2619
    %v2621 = vmul.f32 1.0, %v2620
    %v2622 = vtanh.pop %v2608
    %v2623 = vxor.u32 %v2609, 2147483648
    %v2624 = vmul.f32 %v2623, 1.442695
    %v2625 = vpow.pop %v2624
    %v2626 = vadd.f32 %v2625, 1.0
    %v2627 = vrcp.pop %v2626
    %v2628 = vmul.f32 1.0, %v2627
    %v2629 = vmul.f32 %v2621, %v2520
    %v2630 = vmul.f32 %v2615, %v2622
    %v2631 = vadd.f32 %v2629, %v2630
    %v2632 = vtanh.pop %v2631
    %v2633 = vmul.f32 %v2628, %v2632
    %v2634 = vpack.c.bf16 %v2633, %v2633
    %2635 = vmatprep.subr.bf16.mxu0 %v1906
    %2636 = vmatpush1.bf16.msra.mxu0 %v1905
    %2637 = vmatprep.subr.bf16.mxu0 %v1910
    %2638 = vmatpush1.bf16.msra.mxu0 %v1909
    %2639 = vmatprep.subr.bf16.mxu0 %v1914
    %2640 = vmatpush1.bf16.msra.mxu0 %v1913
    %2641 = vmatprep.subr.bf16.mxu0 %v1918
    %2642 = vmatpush1.bf16.msra.mxu0 %v1917
    %2643 = vmatprep.subr.bf16.mxu0 %v1922
    %2644 = vmatpush1.bf16.msra.mxu0 %v1921
    %2645 = vmatprep.subr.bf16.mxu0 %v1926
    %2646 = vmatpush1.bf16.msra.mxu0 %v1925
    %2647 = vmatprep.subr.bf16.mxu0 %v1930
    %2648 = vmatpush1.bf16.msra.mxu0 %v1929
    %2649 = vmatprep.subr.bf16.mxu0 %v1934
    %2650 = vmatpush1.bf16.msra.mxu0 %v1933
    %2651 = vmatprep.subr.bf16.mxu0 0
    %2652 = vmatpush1.bf16.msra.mxu0 0
    %2653 = vmatprep.subr.bf16.mxu0 0
    %2654 = vmatpush1.bf16.msra.mxu0 0
    %2655 = vmatprep.subr.bf16.mxu0 0
    %2656 = vmatpush1.bf16.msra.mxu0 0
    %2657 = vmatprep.subr.bf16.mxu0 0
    %2658 = vmatpush1.bf16.msra.mxu0 0
    %2659 = vmatprep.subr.bf16.mxu0 0
    %2660 = vmatpush1.bf16.msra.mxu0 0
    %2661 = vmatprep.subr.bf16.mxu0 0
    %2662 = vmatpush1.bf16.msra.mxu0 0
    %2663 = vmatprep.subr.bf16.mxu0 0
    %2664 = vmatpush1.bf16.msra.mxu0 0
    %2665 = vmatprep.subr.bf16.mxu0 0
    %2666 = vmatpush1.bf16.msra.mxu0 0
    %2667 = vmatprep.mubr.bf16.mxu0 0
    %2668 = vmatmul.mubr.bf16.gmra.mrb[0].mxu0 %v2634
    %v2669 = vpop.f32.mrb[0].mxu0
    %v2670 = vadd.f32 0.0, %v2669
    %v2671 = vpop.f32.mrb[0].mxu0
    %v2672 = vadd.f32 0.0, %v2671
    %v2673 = vpop.f32.mrb[0].mxu0
    %v2674 = vpop.f32.mrb[0].mxu0
    %2675 = vdwg.mxu0
    %2676 = vmatprep.subr.bf16.mxu0 %v1908
    %2677 = vmatpush1.bf16.msra.mxu0 %v1907
    %2678 = vmatprep.subr.bf16.mxu0 %v1912
    %2679 = vmatpush1.bf16.msra.mxu0 %v1911
    %2680 = vmatprep.subr.bf16.mxu0 %v1916
    %2681 = vmatpush1.bf16.msra.mxu0 %v1915
    %2682 = vmatprep.subr.bf16.mxu0 %v1920
    %2683 = vmatpush1.bf16.msra.mxu0 %v1919
    %2684 = vmatprep.subr.bf16.mxu0 %v1924
    %2685 = vmatpush1.bf16.msra.mxu0 %v1923
    %2686 = vmatprep.subr.bf16.mxu0 %v1928
    %2687 = vmatpush1.bf16.msra.mxu0 %v1927
    %2688 = vmatprep.subr.bf16.mxu0 %v1932
    %2689 = vmatpush1.bf16.msra.mxu0 %v1931
    %2690 = vmatprep.subr.bf16.mxu0 %v1936
    %2691 = vmatpush1.bf16.msra.mxu0 %v1935
    %2692 = vmatprep.subr.bf16.mxu0 0
    %2693 = vmatpush1.bf16.msra.mxu0 0
    %2694 = vmatprep.subr.bf16.mxu0 0
    %2695 = vmatpush1.bf16.msra.mxu0 0
    %2696 = vmatprep.subr.bf16.mxu0 0
    %2697 = vmatpush1.bf16.msra.mxu0 0
    %2698 = vmatprep.subr.bf16.mxu0 0
    %2699 = vmatpush1.bf16.msra.mxu0 0
    %2700 = vmatprep.subr.bf16.mxu0 0
    %2701 = vmatpush1.bf16.msra.mxu0 0
    %2702 = vmatprep.subr.bf16.mxu0 0
    %2703 = vmatpush1.bf16.msra.mxu0 0
    %2704 = vmatprep.subr.bf16.mxu0 0
    %2705 = vmatpush1.bf16.msra.mxu0 0
    %2706 = vmatprep.subr.bf16.mxu0 0
    %2707 = vmatpush1.bf16.msra.mxu0 0
    %2708 = vmatprep.mubr.bf16.mxu0 0
    %2709 = vmatmul.mubr.bf16.gmra.mrb[0].mxu0 %v2634
    %v2710 = vpop.f32.mrb[0].mxu0
    %v2711 = vadd.f32 0.0, %v2710
    %v2712 = vpop.f32.mrb[0].mxu0
    %v2713 = vadd.f32 0.0, %v2712
    %v2714 = vpop.f32.mrb[0].mxu0
    %v2715 = vpop.f32.mrb[0].mxu0
    %2716 = vdwg.mxu0
    %v2717 = vadd.f32 %v1728, %v2670
    %v2718 = vadd.f32 %v1730, %v2672
    %v2719 = vadd.f32 %v1801, %v2711
    %v2720 = vadd.f32 %v1803, %v2713
    %v2721 = vxor.u32 %v2717, 2147483648
    %v2722 = vmul.f32 %v2721, 1.442695
    %v2723 = vpow.pop %v2722
    %v2724 = vadd.f32 %v2723, 1.0
    %v2725 = vrcp.pop %v2724
    %v2726 = vmul.f32 1.0, %v2725
    %v2727 = vxor.u32 %v2718, 2147483648
    %v2728 = vmul.f32 %v2727, 1.442695
    %v2729 = vpow.pop %v2728
    %v2730 = vadd.f32 %v2729, 1.0
    %v2731 = vrcp.pop %v2730
    %v2732 = vmul.f32 1.0, %v2731
    %v2733 = vtanh.pop %v2719
    %v2734 = vxor.u32 %v2720, 2147483648
    %v2735 = vmul.f32 %v2734, 1.442695
    %v2736 = vpow.pop %v2735
    %v2737 = vadd.f32 %v2736, 1.0
    %v2738 = vrcp.pop %v2737
    %v2739 = vmul.f32 1.0, %v2738
    %v2740 = vmul.f32 %v2732, %v2631
    %v2741 = vmul.f32 %v2726, %v2733
    %v2742 = vadd.f32 %v2740, %v2741
    %v2743 = vtanh.pop %v2742
    %v2744 = vmul.f32 %v2739, %v2743
    %v2745 = vpack.c.bf16 %v2744, %v2744
    %2746 = vmatprep.subr.bf16.mxu0 %v1906
    %2747 = vmatpush1.bf16.msra.mxu0 %v1905
    %2748 = vmatprep.subr.bf16.mxu0 %v1910
    %2749 = vmatpush1.bf16.msra.mxu0 %v1909
    %2750 = vmatprep.subr.bf16.mxu0 %v1914
    %2751 = vmatpush1.bf16.msra.mxu0 %v1913
    %2752 = vmatprep.subr.bf16.mxu0 %v1918
    %2753 = vmatpush1.bf16.msra.mxu0 %v1917
    %2754 = vmatprep.subr.bf16.mxu0 %v1922
    %2755 = vmatpush1.bf16.msra.mxu0 %v1921
    %2756 = vmatprep.subr.bf16.mxu0 %v1926
    %2757 = vmatpush1.bf16.msra.mxu0 %v1925
    %2758 = vmatprep.subr.bf16.mxu0 %v1930
    %2759 = vmatpush1.bf16.msra.mxu0 %v1929
    %2760 = vmatprep.subr.bf16.mxu0 %v1934
    %2761 = vmatpush1.bf16.msra.mxu0 %v1933
    %2762 = vmatprep.subr.bf16.mxu0 0
    %2763 = vmatpush1.bf16.msra.mxu0 0
    %2764 = vmatprep.subr.bf16.mxu0 0
    %2765 = vmatpush1.bf16.msra.mxu0 0
    %2766 = vmatprep.subr.bf16.mxu0 0
    %2767 = vmatpush1.bf16.msra.mxu0 0
    %2768 = vmatprep.subr.bf16.mxu0 0
    %2769 = vmatpush1.bf16.msra.mxu0 0
    %2770 = vmatprep.subr.bf16.mxu0 0
    %2771 = vmatpush1.bf16.msra.mxu0 0
    %2772 = vmatprep.subr.bf16.mxu0 0
    %2773 = vmatpush1.bf16.msra.mxu0 0
    %2774 = vmatprep.subr.bf16.mxu0 0
    %2775 = vmatpush1.bf16.msra.mxu0 0
    %2776 = vmatprep.subr.bf16.mxu0 0
    %2777 = vmatpush1.bf16.msra.mxu0 0
    %2778 = vmatprep.mubr.bf16.mxu0 0
    %2779 = vmatmul.mubr.bf16.gmra.mrb[0].mxu0 %v2745
    %v2780 = vpop.f32.mrb[0].mxu0
    %v2781 = vadd.f32 0.0, %v2780
    %v2782 = vpop.f32.mrb[0].mxu0
    %v2783 = vadd.f32 0.0, %v2782
    %v2784 = vpop.f32.mrb[0].mxu0
    %v2785 = vpop.f32.mrb[0].mxu0
    %2786 = vdwg.mxu0
    %2787 = vmatprep.subr.bf16.mxu0 %v1908
    %2788 = vmatpush1.bf16.msra.mxu0 %v1907
    %2789 = vmatprep.subr.bf16.mxu0 %v1912
    %2790 = vmatpush1.bf16.msra.mxu0 %v1911
    %2791 = vmatprep.subr.bf16.mxu0 %v1916
    %2792 = vmatpush1.bf16.msra.mxu0 %v1915
    %2793 = vmatprep.subr.bf16.mxu0 %v1920
    %2794 = vmatpush1.bf16.msra.mxu0 %v1919
    %2795 = vmatprep.subr.bf16.mxu0 %v1924
    %2796 = vmatpush1.bf16.msra.mxu0 %v1923
    %2797 = vmatprep.subr.bf16.mxu0 %v1928
    %2798 = vmatpush1.bf16.msra.mxu0 %v1927
    %2799 = vmatprep.subr.bf16.mxu0 %v1932
    %2800 = vmatpush1.bf16.msra.mxu0 %v1931
    %2801 = vmatprep.subr.bf16.mxu0 %v1936
    %2802 = vmatpush1.bf16.msra.mxu0 %v1935
    %2803 = vmatprep.subr.bf16.mxu0 0
    %2804 = vmatpush1.bf16.msra.mxu0 0
    %2805 = vmatprep.subr.bf16.mxu0 0
    %2806 = vmatpush1.bf16.msra.mxu0 0
    %2807 = vmatprep.subr.bf16.mxu0 0
    %2808 = vmatpush1.bf16.msra.mxu0 0
    %2809 = vmatprep.subr.bf16.mxu0 0
    %2810 = vmatpush1.bf16.msra.mxu0 0
    %2811 = vmatprep.subr.bf16.mxu0 0
    %2812 = vmatpush1.bf16.msra.mxu0 0
    %2813 = vmatprep.subr.bf16.mxu0 0
    %2814 = vmatpush1.bf16.msra.mxu0 0
    %2815 = vmatprep.subr.bf16.mxu0 0
    %2816 = vmatpush1.bf16.msra.mxu0 0
    %2817 = vmatprep.subr.bf16.mxu0 0
    %2818 = vmatpush1.bf16.msra.mxu0 0
    %2819 = vmatprep.mubr.bf16.mxu0 0
    %2820 = vmatmul.mubr.bf16.gmra.mrb[0].mxu0 %v2745
    %v2821 = vpop.f32.mrb[0].mxu0
    %v2822 = vadd.f32 0.0, %v2821
    %v2823 = vpop.f32.mrb[0].mxu0
    %v2824 = vadd.f32 0.0, %v2823
    %v2825 = vpop.f32.mrb[0].mxu0
    %v2826 = vpop.f32.mrb[0].mxu0
    %2827 = vdwg.mxu0
    %v2828 = vadd.f32 %v1732, %v2781
    %v2829 = vadd.f32 %v1734, %v2783
    %v2830 = vadd.f32 %v1805, %v2822
    %v2831 = vadd.f32 %v1807, %v2824
    %v2832 = vxor.u32 %v2828, 2147483648
    %v2833 = vmul.f32 %v2832, 1.442695
    %v2834 = vpow.pop %v2833
    %v2835 = vadd.f32 %v2834, 1.0
    %v2836 = vrcp.pop %v2835
    %v2837 = vmul.f32 1.0, %v2836
    %v2838 = vxor.u32 %v2829, 2147483648
    %v2839 = vmul.f32 %v2838, 1.442695
    %v2840 = vpow.pop %v2839
    %v2841 = vadd.f32 %v2840, 1.0
    %v2842 = vrcp.pop %v2841
    %v2843 = vmul.f32 1.0, %v2842
    %v2844 = vtanh.pop %v2830
    %v2845 = vxor.u32 %v2831, 2147483648
    %v2846 = vmul.f32 %v2845, 1.442695
    %v2847 = vpow.pop %v2846
    %v2848 = vadd.f32 %v2847, 1.0
    %v2849 = vrcp.pop %v2848
    %v2850 = vmul.f32 1.0, %v2849
    %v2851 = vmul.f32 %v2843, %v2742
    %v2852 = vmul.f32 %v2837, %v2844
    %v2853 = vadd.f32 %v2851, %v2852
    %v2854 = vtanh.pop %v2853
    %v2855 = vmul.f32 %v2850, %v2854
    %v2856 = vpack.c.bf16 %v2855, %v2855
    %v2857 = vld [vmem:[%s7] sm:$0xf]
    %v2858 = vld [vmem:[%s7 + $0x4] sm:$0xf]
    %v2859 = vld [vmem:[%s7 + $0x8] sm:$0xf]
    %v2860 = vld [vmem:[%s7 + $0xc] sm:$0xf]
    %v2861 = vld [vmem:[%s7 + $0x10] sm:$0xf]
    %v2862 = vld [vmem:[%s7 + $0x14] sm:$0xf]
    %v2863 = vld [vmem:[%s7 + $0x18] sm:$0xf]
    %v2864 = vld [vmem:[%s7 + $0x1c] sm:$0xf]
    %v2865 = vld [vmem:[%s7 + $0x20] sm:$0xf]
    %v2866 = vld [vmem:[%s7 + $0x24] sm:$0xf]
    %v2867 = vld [vmem:[%s7 + $0x28] sm:$0xf]
    %v2868 = vld [vmem:[%s7 + $0x2c] sm:$0xf]
    %v2869 = vld [vmem:[%s7 + $0x30] sm:$0xf]
    %v2870 = vld [vmem:[%s7 + $0x34] sm:$0xf]
    %v2871 = vld [vmem:[%s7 + $0x38] sm:$0xf]
    %v2872 = vld [vmem:[%s7 + $0x3c] sm:$0xf]
    %v2873 = vld [vmem:[%s8] sm:$0x1]
    %v2875 = vlaneseq
    %v2876 = vshrl.u32 %v2875, 7
    %v2877 = vsub.s32 0, %v2876
    %v2878 = vrot.slane %v2873, %v2877
    %v2896 = vunpack.c.l.b16 %v2857
    %v2897 = vunpack.c.l.b16 %v2858
    %v2898 = vunpack.c.l.b16 %v2859
    %v2899 = vunpack.c.l.b16 %v2860
    %v2900 = vunpack.c.l.b16 %v2861
    %v2901 = vunpack.c.l.b16 %v2862
    %v2902 = vunpack.c.l.b16 %v2863
    %v2903 = vunpack.c.l.b16 %v2864
    %v2904 = vunpack.c.l.b16 %v2865
    %v2905 = vunpack.c.l.b16 %v2866
    %v2906 = vunpack.c.l.b16 %v2867
    %v2907 = vunpack.c.l.b16 %v2868
    %v2908 = vunpack.c.l.b16 %v2869
    %v2909 = vunpack.c.l.b16 %v2870
    %v2910 = vunpack.c.l.b16 %v2871
    %v2911 = vunpack.c.l.b16 %v2872
    %v2912 = vpack.c.b16 %v2897, %v2896
    %v2913 = vpack.c.b16 %v2899, %v2898
    %v2914 = vpack.c.b16 %v2901, %v2900
    %v2915 = vpack.c.b16 %v2903, %v2902
    %v2916 = vpack.c.b16 %v2905, %v2904
    %v2917 = vpack.c.b16 %v2907, %v2906
    %v2918 = vpack.c.b16 %v2909, %v2908
    %v2919 = vpack.c.b16 %v2911, %v2910
    %2928 = vmatprep.subr.bf16.mxu0 0
    %2929 = vmatpush1.bf16.msra.mxu0 %v2912
    %2930 = vmatprep.subr.bf16.mxu0 0
    %2931 = vmatpush1.bf16.msra.mxu0 %v2913
    %2932 = vmatprep.subr.bf16.mxu0 0
    %2933 = vmatpush1.bf16.msra.mxu0 %v2914
    %2934 = vmatprep.subr.bf16.mxu0 0
    %2935 = vmatpush1.bf16.msra.mxu0 %v2915
    %2936 = vmatprep.subr.bf16.mxu0 0
    %2937 = vmatpush1.bf16.msra.mxu0 %v2916
    %2938 = vmatprep.subr.bf16.mxu0 0
    %2939 = vmatpush1.bf16.msra.mxu0 %v2917
    %2940 = vmatprep.subr.bf16.mxu0 0
    %2941 = vmatpush1.bf16.msra.mxu0 %v2918
    %2942 = vmatprep.subr.bf16.mxu0 0
    %2943 = vmatpush1.bf16.msra.mxu0 %v2919
    %2944 = vmatprep.subr.bf16.mxu0 0
    %2945 = vmatpush1.bf16.msra.mxu0 0
    %2946 = vmatprep.subr.bf16.mxu0 0
    %2947 = vmatpush1.bf16.msra.mxu0 0
    %2948 = vmatprep.subr.bf16.mxu0 0
    %2949 = vmatpush1.bf16.msra.mxu0 0
    %2950 = vmatprep.subr.bf16.mxu0 0
    %2951 = vmatpush1.bf16.msra.mxu0 0
    %2952 = vmatprep.subr.bf16.mxu0 0
    %2953 = vmatpush1.bf16.msra.mxu0 0
    %2954 = vmatprep.subr.bf16.mxu0 0
    %2955 = vmatpush1.bf16.msra.mxu0 0
    %2956 = vmatprep.subr.bf16.mxu0 0
    %2957 = vmatpush1.bf16.msra.mxu0 0
    %2958 = vmatprep.subr.bf16.mxu0 0
    %2959 = vmatpush1.bf16.msra.mxu0 0
    %2960 = vmatprep.mubr.bf16.mxu0 0
    %2961 = vmatmul.mubr.bf16.gmra.mrb[0].mxu0 %v2856
    %v2962 = vpop.f32.mrb[0].mxu0
    %v2963 = vadd.f32 %v2878, %v2962
    %v2964 = vpop.f32.mrb[0].mxu0
    %v2965 = vpop.f32.mrb[0].mxu0
    %v2966 = vpop.f32.mrb[0].mxu0
    %2967 = vdwg.mxu0
    %v2968 = vmax.f32 %v2963, 0.0
    %v2969 = vpack.c.bf16 %v2968, %v2968
    %v2970 = vld [vmem:[%s9] sm:$0xf]
    %v2971 = vld [vmem:[%s9 + $0x4] sm:$0xf]
    %v2972 = vld [vmem:[%s9 + $0x8] sm:$0xf]
    %v2973 = vld [vmem:[%s9 + $0xc] sm:$0xf]
    %v2974 = vld [vmem:[%s9 + $0x10] sm:$0xf]
    %v2975 = vld [vmem:[%s9 + $0x14] sm:$0xf]
    %v2976 = vld [vmem:[%s9 + $0x18] sm:$0xf]
    %v2977 = vld [vmem:[%s9 + $0x1c] sm:$0xf]
    %v2978 = vld [vmem:[%s9 + $0x20] sm:$0xf]
    %v2979 = vld [vmem:[%s9 + $0x24] sm:$0xf]
    %v2980 = vld [vmem:[%s9 + $0x28] sm:$0xf]
    %v2981 = vld [vmem:[%s9 + $0x2c] sm:$0xf]
    %v2982 = vld [vmem:[%s9 + $0x30] sm:$0xf]
    %v2983 = vld [vmem:[%s9 + $0x34] sm:$0xf]
    %v2984 = vld [vmem:[%s9 + $0x38] sm:$0xf]
    %v2985 = vld [vmem:[%s9 + $0x3c] sm:$0xf]
    %v2986 = vld [vmem:[%s10] sm:$0x1]
    %v2988 = vlaneseq
    %v2989 = vshrl.u32 %v2988, 7
    %v2990 = vsub.s32 0, %v2989
    %v2991 = vrot.slane %v2986, %v2990
    %v3009 = vunpack.c.l.b16 %v2970
    %v3010 = vunpack.c.l.b16 %v2971
    %v3011 = vunpack.c.l.b16 %v2972
    %v3012 = vunpack.c.l.b16 %v2973
    %v3013 = vunpack.c.l.b16 %v2974
    %v3014 = vunpack.c.l.b16 %v2975
    %v3015 = vunpack.c.l.b16 %v2976
    %v3016 = vunpack.c.l.b16 %v2977
    %v3017 = vunpack.c.l.b16 %v2978
    %v3018 = vunpack.c.l.b16 %v2979
    %v3019 = vunpack.c.l.b16 %v2980
    %v3020 = vunpack.c.l.b16 %v2981
    %v3021 = vunpack.c.l.b16 %v2982
    %v3022 = vunpack.c.l.b16 %v2983
    %v3023 = vunpack.c.l.b16 %v2984
    %v3024 = vunpack.c.l.b16 %v2985
    %v3025 = vpack.c.b16 %v3010, %v3009
    %v3026 = vpack.c.b16 %v3012, %v3011
    %v3027 = vpack.c.b16 %v3014, %v3013
    %v3028 = vpack.c.b16 %v3016, %v3015
    %v3029 = vpack.c.b16 %v3018, %v3017
    %v3030 = vpack.c.b16 %v3020, %v3019
    %v3031 = vpack.c.b16 %v3022, %v3021
    %v3032 = vpack.c.b16 %v3024, %v3023
    %3041 = vmatprep.subr.bf16.mxu0 0
    %3042 = vmatpush1.bf16.msra.mxu0 %v3025
    %3043 = vmatprep.subr.bf16.mxu0 0
    %3044 = vmatpush1.bf16.msra.mxu0 %v3026
    %3045 = vmatprep.subr.bf16.mxu0 0
    %3046 = vmatpush1.bf16.msra.mxu0 %v3027
    %3047 = vmatprep.subr.bf16.mxu0 0
    %3048 = vmatpush1.bf16.msra.mxu0 %v3028
    %3049 = vmatprep.subr.bf16.mxu0 0
    %3050 = vmatpush1.bf16.msra.mxu0 %v3029
    %3051 = vmatprep.subr.bf16.mxu0 0
    %3052 = vmatpush1.bf16.msra.mxu0 %v3030
    %3053 = vmatprep.subr.bf16.mxu0 0
    %3054 = vmatpush1.bf16.msra.mxu0 %v3031
    %3055 = vmatprep.subr.bf16.mxu0 0
    %3056 = vmatpush1.bf16.msra.mxu0 %v3032
    %3057 = vmatprep.subr.bf16.mxu0 0
    %3058 = vmatpush1.bf16.msra.mxu0 0
    %3059 = vmatprep.subr.bf16.mxu0 0
    %3060 = vmatpush1.bf16.msra.mxu0 0
    %3061 = vmatprep.subr.bf16.mxu0 0
    %3062 = vmatpush1.bf16.msra.mxu0 0
    %3063 = vmatprep.subr.bf16.mxu0 0
    %3064 = vmatpush1.bf16.msra.mxu0 0
    %3065 = vmatprep.subr.bf16.mxu0 0
    %3066 = vmatpush1.bf16.msra.mxu0 0
    %3067 = vmatprep.subr.bf16.mxu0 0
    %3068 = vmatpush1.bf16.msra.mxu0 0
    %3069 = vmatprep.subr.bf16.mxu0 0
    %3070 = vmatpush1.bf16.msra.mxu0 0
    %3071 = vmatprep.subr.bf16.mxu0 0
    %3072 = vmatpush1.bf16.msra.mxu0 0
    %3073 = vmatprep.mubr.bf16.mxu0 0
    %3074 = vmatmul.mubr.bf16.gmra.mrb[0].mxu0 %v2969
    %v3075 = vpop.f32.mrb[0].mxu0
    %v3076 = vadd.f32 %v2991, %v3075
    %v3077 = vpop.f32.mrb[0].mxu0
    %v3078 = vpop.f32.mrb[0].mxu0
    %v3079 = vpop.f32.mrb[0].mxu0
    %3080 = vdwg.mxu0
    %3081 = vst [vmem:[%s11] sm:$0xff] %v3076
    // Predicated region
    $region70: #{neural_network_lstm_forward.1} parent=1 // pred_check
      _
    $region71: #{neural_network_lstm_forward.1} parent=1 // pred_check_branch
      %3083 = sbr.rel (0) target = $region73
    $region72: #{neural_network_lstm_forward.1} parent=1 // pred_region
      _
    $region73: #{neural_network_lstm_forward.1} parent=1 // pred_fallthru
      _
    // Predicated region
    $region74: #{neural_network_lstm_forward.1} parent=1 // pred_check
      _
    $region75: #{neural_network_lstm_forward.1} parent=1 // pred_check_branch
      %3085 = sbr.rel (0) target = $region77
    $region76: #{neural_network_lstm_forward.1} parent=1 // pred_region
      _
    $region77: #{neural_network_lstm_forward.1} parent=1 // pred_fallthru
      _
    %3086 = vsyncpa [#allocation3], 1
    %3087 = vsyncpa [#allocation5], 1
    %3088 = vsyncpa [#allocation8], 1
    %3089 = vsyncpa [#allocation11], 1

</llo_original>
